<compile_context>
chip_gen: v7x
topology: tpu7x:2x2x1
jax: 0.10.0
libtpu: 0.0.40
codegen_flags: <defaults>
</compile_context>

<pallas_src>
import jax
import jax.numpy as jnp
from jax.experimental import pallas as pl
from jax.experimental.pallas import tpu as pltpu

IN_FEATURES = 28 * 28      # 784
H1, H2, H3 = 512, 256, 128


def _round_up(n, m):
    return -(-n // m) * m


def _encoder_kernel(x_ref,
                    w1_ref, b1_ref,
                    w2_ref, b2_ref,
                    w3_ref, b3_ref,
                    wh_ref, bh_ref,
                    out_ref):
    # hidden_1 + ReLU  (bf16 x bf16 -> f32 accumulate, f32 epilogue)
    h = jnp.dot(x_ref[...], w1_ref[...], preferred_element_type=jnp.float32)
    h = jnp.maximum(h + b1_ref[...], 0.0)
    # hidden_2 + ReLU
    h = jnp.dot(h.astype(jnp.bfloat16), w2_ref[...],
                preferred_element_type=jnp.float32)
    h = jnp.maximum(h + b2_ref[...], 0.0)
    # hidden_3 + ReLU
    h = jnp.dot(h.astype(jnp.bfloat16), w3_ref[...],
                preferred_element_type=jnp.float32)
    h = jnp.maximum(h + b3_ref[...], 0.0)
    # fused (mean || log_std) head -> lane-dense [tb, head_pad] output slab
    out_ref[...] = (
        jnp.dot(h.astype(jnp.bfloat16), wh_ref[...],
                preferred_element_type=jnp.float32)
        + bh_ref[...]
    )


def prepare_params(params, latent):
    """Convert f32 [in,out]/[1,out] params into kernel-ready (fused-head, bf16) form."""
    head_pad = _round_up(max(2 * latent, 128), 128)

    # Fuse mean/log_std heads and zero-pad to a lane-dense (multiple-of-128) width.
    wh = jnp.zeros((H3, head_pad), jnp.float32)
    wh = wh.at[:, :latent].set(params["wm"]).at[:, latent:2 * latent].set(params["ws"])
    bh = jnp.zeros((1, head_pad), jnp.float32)
    bh = bh.at[:, :latent].set(params["bm"]).at[:, latent:2 * latent].set(params["bs"])

    return {
        "w1": params["w1"].astype(jnp.bfloat16), "b1": params["b1"].astype(jnp.float32),
        "w2": params["w2"].astype(jnp.bfloat16), "b2": params["b2"].astype(jnp.float32),
        "w3": params["w3"].astype(jnp.bfloat16), "b3": params["b3"].astype(jnp.float32),
        "wh": wh.astype(jnp.bfloat16), "bh": bh,
    }


def _choose_batch_tile(B, target=512):
    """Adaptive batch tile (multiple of 8 sublanes).

    - Tiny batches: one block, no wasted padding.
    - Batches that fit in <= 2*target rows: two balanced blocks (>= 2 grid steps
      so both v7x TensorCores get work; pad overhead is at most 7 rows).
    - Large batches: cap at `target` rows/tile (VMEM-safe on v5e's 16 MiB
      scoped default; >= 2 blocks automatically).
    """
    b8 = _round_up(B, 8)
    if b8 <= 16:
        return b8
    if b8 <= 2 * target:
        return _round_up(pl.cdiv(b8, 2), 8)
    return target


def simple_encoder_forward(x, kparams, *, latent, block_batch=512):
    """x: [B, 784] f32. kparams: output of prepare_params. Returns (mean, log_std) f32."""
    B = x.shape[0]
    head_pad = kparams["wh"].shape[1]

    tb = _choose_batch_tile(B, target=block_batch)
    n_blocks = pl.cdiv(_round_up(B, 8), tb)
    b_pad = n_blocks * tb

    # Cheap bf16 cast; pad only the batch dim (no K padding, no full xp rewrite).
    xb = x.astype(jnp.bfloat16)
    if b_pad != B:
        xb = jnp.pad(xb, ((0, b_pad - B), (0, 0)))

    def resident(shape):
        # Whole array, constant block index -> fetched once, stays VMEM-resident.
        # Single-buffered: double-buffering an unchanging block only burns VMEM.
        return pl.BlockSpec(shape, lambda i: (0, 0), pipeline_mode=pl.Buffered(1))

    # Advisory cost for XLA's scheduler around the custom call.
    flops = 2 * b_pad * (IN_FEATURES * H1 + H1 * H2 + H2 * H3 + H3 * head_pad)
    bytes_accessed = (
        b_pad * IN_FEATURES * 2                                  # bf16 x read
        + sum(int(v.size) * v.dtype.itemsize for v in kparams.values())
        + b_pad * head_pad * 4                                   # f32 out write
    )
    cost = pl.CostEstimate(flops=flops, transcendentals=0,
                           bytes_accessed=bytes_accessed)

    out = pl.pallas_call(
        _encoder_kernel,
        out_shape=jax.ShapeDtypeStruct((b_pad, head_pad), jnp.float32),
        grid=(n_blocks,),
        in_specs=[
            # x tile: double-buffered by default so the next tile's DMA hides
            # behind the current tile's matmuls.
            pl.BlockSpec((tb, IN_FEATURES), lambda i: (i, 0)),
            resident((IN_FEATURES, H1)), resident((1, H1)),
            resident((H1, H2)),          resident((1, H2)),
            resident((H2, H3)),          resident((1, H3)),
            resident((H3, head_pad)),    resident((1, head_pad)),
        ],
        out_specs=pl.BlockSpec((tb, head_pad), lambda i: (i, 0)),
        compiler_params=pltpu.CompilerParams(
            dimension_semantics=("parallel",),   # megacore sharding on v7x
        ),
        cost_estimate=cost,
    )(
        xb,
        kparams["w1"], kparams["b1"],
        kparams["w2"], kparams["b2"],
        kparams["w3"], kparams["b3"],
        kparams["wh"], kparams["bh"],
    )

    mean = out[:B, :latent]
    log_std = out[:B, latent:2 * latent]
    return mean, log_std


def init_params(key, latent_space_size):
    """Deterministic init matching nn.Linear shapes (stored transposed as [in, out])."""
    sizes = [
        ("w1", "b1", IN_FEATURES, H1),
        ("w2", "b2", H1, H2),
        ("w3", "b3", H2, H3),
        ("wm", "bm", H3, latent_space_size),
        ("ws", "bs", H3, latent_space_size),
    ]
    params = {}
    for wname, bname, fan_in, fan_out in sizes:
        key, kw, kb = jax.random.split(key, 3)
        bound = 1.0 / jnp.sqrt(fan_in)  # PyTorch default uniform(-1/sqrt(in), 1/sqrt(in))
        params[wname] = jax.random.uniform(
            kw, (fan_in, fan_out), jnp.float32, minval=-bound, maxval=bound)
        params[bname] = jax.random.uniform(
            kb, (1, fan_out), jnp.float32, minval=-bound, maxval=bound)
    return params


if __name__ == "__main__":
    latent_space_size = 32
    batch = 200   # not a multiple of 8*tile -> exercises the adaptive tiling + pad path

    key = jax.random.PRNGKey(0)
    key, kx = jax.random.split(key)
    x = jax.random.normal(kx, (batch, IN_FEATURES), jnp.float32)  # flattened 28x28 images
    params = init_params(key, latent_space_size)
    kparams = prepare_params(params, latent_space_size)

    fwd = jax.jit(simple_encoder_forward, static_argnames=("latent", "block_batch"))
    mean, log_std = fwd(x, kparams, latent=latent_space_size)
    jax.block_until_ready((mean, log_std))

    # Matched-precision reference (bf16 inputs/weights, f32 accumulation), pure JAX.
    def ref(x, p):
        def mm(a, w):
            return jnp.dot(a.astype(jnp.bfloat16), w.astype(jnp.bfloat16),
                           preferred_element_type=jnp.float32)
        h = jnp.maximum(mm(x, p["w1"]) + p["b1"], 0.0)
        h = jnp.maximum(mm(h, p["w2"]) + p["b2"], 0.0)
        h = jnp.maximum(mm(h, p["w3"]) + p["b3"], 0.0)
        return mm(h, p["wm"]) + p["bm"], mm(h, p["ws"]) + p["bs"]

    rm, rs = ref(x, params)
    assert mean.shape == (batch, latent_space_size)
    assert log_std.shape == (batch, latent_space_size)
    assert jnp.allclose(mean, rm, atol=1e-2, rtol=1e-2)
    assert jnp.allclose(log_std, rs, atol=1e-2, rtol=1e-2)

    print("KERNEL_OK")
</pallas_src>

<mosaic_0001>
module attributes {stable_mosaic.version = 11 : i64} {
  func.func @_encoder_kernel(%arg0: i32, %arg1: memref<104x784xbf16, #tpu.memory_space<vmem>>, %arg2: memref<784x512xbf16, #tpu.memory_space<vmem>>, %arg3: memref<1x512xf32, #tpu.memory_space<vmem>>, %arg4: memref<512x256xbf16, #tpu.memory_space<vmem>>, %arg5: memref<1x256xf32, #tpu.memory_space<vmem>>, %arg6: memref<256x128xbf16, #tpu.memory_space<vmem>>, %arg7: memref<1x128xf32, #tpu.memory_space<vmem>>, %arg8: memref<128x128xbf16, #tpu.memory_space<vmem>>, %arg9: memref<1x128xf32, #tpu.memory_space<vmem>>, %arg10: memref<104x128xf32, #tpu.memory_space<vmem>>) attributes {dimension_semantics = [#tpu.dimension_semantics<parallel>], iteration_bounds = array<i64: 2>, scalar_prefetch = 0 : i64, scratch_operands = 0 : i64, tpu.core_type = #tpu.core_type<tc>, window_params = [{transform_indices = @transform_0, window_bounds = array<i64: 104, 784>}, {pipeline_mode = #tpu.pipeline_mode<synchronous>, transform_indices = @transform_1, window_bounds = array<i64: 784, 512>}, {pipeline_mode = #tpu.pipeline_mode<synchronous>, transform_indices = @transform_2, window_bounds = array<i64: 1, 512>}, {pipeline_mode = #tpu.pipeline_mode<synchronous>, transform_indices = @transform_3, window_bounds = array<i64: 512, 256>}, {pipeline_mode = #tpu.pipeline_mode<synchronous>, transform_indices = @transform_4, window_bounds = array<i64: 1, 256>}, {pipeline_mode = #tpu.pipeline_mode<synchronous>, transform_indices = @transform_5, window_bounds = array<i64: 256, 128>}, {pipeline_mode = #tpu.pipeline_mode<synchronous>, transform_indices = @transform_6, window_bounds = array<i64: 1, 128>}, {pipeline_mode = #tpu.pipeline_mode<synchronous>, transform_indices = @transform_7, window_bounds = array<i64: 128, 128>}, {pipeline_mode = #tpu.pipeline_mode<synchronous>, transform_indices = @transform_8, window_bounds = array<i64: 1, 128>}, {transform_indices = @transform_9, window_bounds = array<i64: 104, 128>}]} {
    %c0 = arith.constant 0 : index
    %c0_0 = arith.constant 0 : index
    %0 = vector.load %arg1[%c0, %c0_0] : memref<104x784xbf16, #tpu.memory_space<vmem>>, vector<104x784xbf16>
    %c0_1 = arith.constant 0 : index
    %c0_2 = arith.constant 0 : index
    %1 = vector.load %arg2[%c0_1, %c0_2] : memref<784x512xbf16, #tpu.memory_space<vmem>>, vector<784x512xbf16>
    %cst = arith.constant dense<0.000000e+00> : vector<104x512xf32>
    %2 = tpu.matmul %0, %1, %cst {dimension_numbers = #tpu.dot_dimension_numbers<[1], [0], [0], [1], [0, 0, 1, 1], [], []>} : vector<104x784xbf16>, vector<784x512xbf16>, vector<104x512xf32> -> vector<104x512xf32>
    %c0_3 = arith.constant 0 : index
    %c0_4 = arith.constant 0 : index
    %3 = vector.load %arg3[%c0_3, %c0_4] : memref<1x512xf32, #tpu.memory_space<vmem>>, vector<1x512xf32>
    %4 = vector.broadcast %3 : vector<1x512xf32> to vector<104x512xf32>
    %5 = arith.addf %2, %4 : vector<104x512xf32>
    %cst_5 = arith.constant 0.000000e+00 : f32
    %6 = vector.broadcast %cst_5 : f32 to vector<104x512xf32>
    %7 = arith.maximumf %5, %6 : vector<104x512xf32>
    %8 = arith.truncf %7 : vector<104x512xf32> to vector<104x512xbf16>
    %c0_6 = arith.constant 0 : index
    %c0_7 = arith.constant 0 : index
    %9 = vector.load %arg4[%c0_6, %c0_7] : memref<512x256xbf16, #tpu.memory_space<vmem>>, vector<512x256xbf16>
    %cst_8 = arith.constant dense<0.000000e+00> : vector<104x256xf32>
    %10 = tpu.matmul %8, %9, %cst_8 {dimension_numbers = #tpu.dot_dimension_numbers<[1], [0], [0], [1], [0, 0, 1, 1], [], []>} : vector<104x512xbf16>, vector<512x256xbf16>, vector<104x256xf32> -> vector<104x256xf32>
    %c0_9 = arith.constant 0 : index
    %c0_10 = arith.constant 0 : index
    %11 = vector.load %arg5[%c0_9, %c0_10] : memref<1x256xf32, #tpu.memory_space<vmem>>, vector<1x256xf32>
    %12 = vector.broadcast %11 : vector<1x256xf32> to vector<104x256xf32>
    %13 = arith.addf %10, %12 : vector<104x256xf32>
    %cst_11 = arith.constant 0.000000e+00 : f32
    %14 = vector.broadcast %cst_11 : f32 to vector<104x256xf32>
    %15 = arith.maximumf %13, %14 : vector<104x256xf32>
    %16 = arith.truncf %15 : vector<104x256xf32> to vector<104x256xbf16>
    %c0_12 = arith.constant 0 : index
    %c0_13 = arith.constant 0 : index
    %17 = vector.load %arg6[%c0_12, %c0_13] : memref<256x128xbf16, #tpu.memory_space<vmem>>, vector<256x128xbf16>
    %cst_14 = arith.constant dense<0.000000e+00> : vector<104x128xf32>
    %18 = tpu.matmul %16, %17, %cst_14 {dimension_numbers = #tpu.dot_dimension_numbers<[1], [0], [0], [1], [0, 0, 1, 1], [], []>} : vector<104x256xbf16>, vector<256x128xbf16>, vector<104x128xf32> -> vector<104x128xf32>
    %c0_15 = arith.constant 0 : index
    %c0_16 = arith.constant 0 : index
    %19 = vector.load %arg7[%c0_15, %c0_16] : memref<1x128xf32, #tpu.memory_space<vmem>>, vector<1x128xf32>
    %20 = vector.broadcast %19 : vector<1x128xf32> to vector<104x128xf32>
    %21 = arith.addf %18, %20 : vector<104x128xf32>
    %cst_17 = arith.constant 0.000000e+00 : f32
    %22 = vector.broadcast %cst_17 : f32 to vector<104x128xf32>
    %23 = arith.maximumf %21, %22 : vector<104x128xf32>
    %24 = arith.truncf %23 : vector<104x128xf32> to vector<104x128xbf16>
    %c0_18 = arith.constant 0 : index
    %c0_19 = arith.constant 0 : index
    %25 = vector.load %arg8[%c0_18, %c0_19] : memref<128x128xbf16, #tpu.memory_space<vmem>>, vector<128x128xbf16>
    %cst_20 = arith.constant dense<0.000000e+00> : vector<104x128xf32>
    %26 = tpu.matmul %24, %25, %cst_20 {dimension_numbers = #tpu.dot_dimension_numbers<[1], [0], [0], [1], [0, 0, 1, 1], [], []>} : vector<104x128xbf16>, vector<128x128xbf16>, vector<104x128xf32> -> vector<104x128xf32>
    %c0_21 = arith.constant 0 : index
    %c0_22 = arith.constant 0 : index
    %27 = vector.load %arg9[%c0_21, %c0_22] : memref<1x128xf32, #tpu.memory_space<vmem>>, vector<1x128xf32>
    %28 = vector.broadcast %27 : vector<1x128xf32> to vector<104x128xf32>
    %29 = arith.addf %26, %28 : vector<104x128xf32>
    %c0_23 = arith.constant 0 : index
    %c0_24 = arith.constant 0 : index
    %30 = vector.load %arg10[%c0_23, %c0_24] : memref<104x128xf32, #tpu.memory_space<vmem>>, vector<104x128xf32>
    tpu.vector_store %arg10[%c0_23, %c0_24], %29 {strides = array<i32>} : memref<104x128xf32, #tpu.memory_space<vmem>>, vector<104x128xf32>,
    return
  }
  func.func @transform_0(%arg0: i32) -> (i32, i32) {
    %c0_i32 = arith.constant 0 : i32
    %c0_i32_0 = arith.constant 0 : i32
    return %arg0, %c0_i32 : i32, i32
  }
  func.func @transform_1(%arg0: i32) -> (i32, i32) {
    %c0_i32 = arith.constant 0 : i32
    %c0_i32_0 = arith.constant 0 : i32
    %c0_i32_1 = arith.constant 0 : i32
    return %c0_i32, %c0_i32_0 : i32, i32
  }
  func.func @transform_2(%arg0: i32) -> (i32, i32) {
    %c0_i32 = arith.constant 0 : i32
    %c0_i32_0 = arith.constant 0 : i32
    %c0_i32_1 = arith.constant 0 : i32
    return %c0_i32, %c0_i32_0 : i32, i32
  }
  func.func @transform_3(%arg0: i32) -> (i32, i32) {
    %c0_i32 = arith.constant 0 : i32
    %c0_i32_0 = arith.constant 0 : i32
    %c0_i32_1 = arith.constant 0 : i32
    return %c0_i32, %c0_i32_0 : i32, i32
  }
  func.func @transform_4(%arg0: i32) -> (i32, i32) {
    %c0_i32 = arith.constant 0 : i32
    %c0_i32_0 = arith.constant 0 : i32
    %c0_i32_1 = arith.constant 0 : i32
    return %c0_i32, %c0_i32_0 : i32, i32
  }
  func.func @transform_5(%arg0: i32) -> (i32, i32) {
    %c0_i32 = arith.constant 0 : i32
    %c0_i32_0 = arith.constant 0 : i32
    %c0_i32_1 = arith.constant 0 : i32
    return %c0_i32, %c0_i32_0 : i32, i32
  }
  func.func @transform_6(%arg0: i32) -> (i32, i32) {
    %c0_i32 = arith.constant 0 : i32
    %c0_i32_0 = arith.constant 0 : i32
    %c0_i32_1 = arith.constant 0 : i32
    return %c0_i32, %c0_i32_0 : i32, i32
  }
  func.func @transform_7(%arg0: i32) -> (i32, i32) {
    %c0_i32 = arith.constant 0 : i32
    %c0_i32_0 = arith.constant 0 : i32
    %c0_i32_1 = arith.constant 0 : i32
    return %c0_i32, %c0_i32_0 : i32, i32
  }
  func.func @transform_8(%arg0: i32) -> (i32, i32) {
    %c0_i32 = arith.constant 0 : i32
    %c0_i32_0 = arith.constant 0 : i32
    %c0_i32_1 = arith.constant 0 : i32
    return %c0_i32, %c0_i32_0 : i32, i32
  }
  func.func @transform_9(%arg0: i32) -> (i32, i32) {
    %c0_i32 = arith.constant 0 : i32
    %c0_i32_0 = arith.constant 0 : i32
    return %arg0, %c0_i32 : i32, i32
  }
}

</mosaic_0001>

<llo_original>
// kernel: simple_encoder_forward.1
$region0: #{simple_encoder_forward.1}
  #allocation0 [shape = 'u32[]', space=smem, size = 0x4, offset = 0x4, fixed_abs, tag = 'smem constant byte address 0x4 - core index']
  #allocation1 [shape = 'u32[144,128]{1,0:T(1,128)}', space=vmem, size = 0x12000, scoped, tag = 'internal scratch']
  %s0 = inlined_call_operand.vmem [shape: bf16[208,784], index: 0, kind: input, shape index: {}]
  %s1 = inlined_call_operand.vmem [shape: bf16[784,512], index: 1, kind: input, shape index: {}]
  %s2 = inlined_call_operand.vmem [shape: f32[1,512], index: 2, kind: input, shape index: {}]
  %s3 = inlined_call_operand.vmem [shape: bf16[512,256], index: 3, kind: input, shape index: {}]
  %s4 = inlined_call_operand.vmem [shape: f32[1,256], index: 4, kind: input, shape index: {}]
  %s5 = inlined_call_operand.vmem [shape: bf16[256,128], index: 5, kind: input, shape index: {}]
  %s6 = inlined_call_operand.vmem [shape: f32[1,128], index: 6, kind: input, shape index: {}]
  %s7 = inlined_call_operand.vmem [shape: bf16[128,128], index: 7, kind: input, shape index: {}]
  %s8 = inlined_call_operand.vmem [shape: f32[1,128], index: 8, kind: input, shape index: {}]
  %s9 = inlined_call_operand.vmem [shape: f32[208,128], index: 9, kind: output, shape index: {}]
  %s10 = sld [smem:[#allocation0]]
  $region69: #{simple_encoder_forward.1} parent=0
    _
  %s12 = ssub.s32 1, %s10
  %s13 = scalar_select 0, %s12, %s10
  loop: start=0, step=1, limit=4
  $region2: #{simple_encoder_forward.1} parent=0 // loop_pre_header
    _
  $region3: #{simple_encoder_forward.1} parent=0 // loop_header
    %s15 = sphi 0, %s19
    %p16 = scmp.ge.s32.totalorder %s15, 4
    %s25 = sphi 0, %s27
    %s28 = sphi 0, %s25
    %s29 = sphi 0, %s28
    %s45 = sphi 0, %s29
    %s49 = sphi 0, %s49
    %s51 = sphi 0, %s49
    %s52 = sphi 0, %s51
    %s66 = sphi 0, %s52
    %s70 = sphi 0, %s70
    %s72 = sphi 0, %s70
    %s73 = sphi 0, %s72
    %s87 = sphi 0, %s73
    %s91 = sphi 0, %s91
    %s93 = sphi 0, %s91
    %s94 = sphi 0, %s93
    %s108 = sphi 0, %s94
    %s112 = sphi 0, %s112
    %s114 = sphi 0, %s112
    %s115 = sphi 0, %s114
    %s129 = sphi 0, %s115
    %s133 = sphi 0, %s133
    %s135 = sphi 0, %s133
    %s136 = sphi 0, %s135
    %s150 = sphi 0, %s136
    %s154 = sphi 0, %s154
    %s156 = sphi 0, %s154
    %s157 = sphi 0, %s156
    %s171 = sphi 0, %s157
    %s175 = sphi 0, %s175
    %s177 = sphi 0, %s175
    %s178 = sphi 0, %s177
    %s192 = sphi 0, %s178
    %s196 = sphi 0, %s196
    %s198 = sphi 0, %s196
    %s199 = sphi 0, %s198
    %s213 = sphi 0, %s199
    %s219 = sphi 0, %s221
    %s222 = sphi 0, %s219
    %s223 = sphi 0, %s222
    %s239 = sphi 0, %s223
  $region4: #{simple_encoder_forward.1} parent=0 // loop_header_branch
    %18 = sbr.rel (%p16) target = $region8
  $region5: #{simple_encoder_forward.1} parent=0 // loop_body
    %s20 = ssub.s32 %s15, 1
    %s21 = ssub.s32 %s15, 2
    %s22 = sadd.s32 %s15, 1
    %s23 = ssub.s32 %s15, %s22
    %p24 = scmp.eq.s32.totalorder %s23, 0
    %s26 = sadd.s32 %s25, 1
    %s27 = scalar_select %p24, %s25, %s26
    %p30 = pneg %p24
    %p31 = scmp.eq.s32.totalorder %s15, 1
    %p32 = por %p30, %p31
    %p33 = scmp.ne.s32.totalorder %s25, %s28
    %p34 = scmp.eq.s32.totalorder %s15, 0
    %p35 = por %p33, %p34
    %p36 = scmp.ne.s32.totalorder %s25, %s28
    %p37 = scmp.eq.s32.totalorder %s20, 1
    %p38 = por %p36, %p37
    %p39 = scmp.ne.s32.totalorder %s28, %s29
    %p40 = scmp.eq.s32.totalorder %s20, 0
    %p41 = por %p39, %p40
    %p42 = scmp.ne.s32.totalorder %s28, %s29
    %p43 = scmp.eq.s32.totalorder %s21, 1
    %p44 = por %p42, %p43
    %p46 = scmp.ne.s32.totalorder %s29, %s45
    %p47 = scmp.eq.s32.totalorder %s21, 0
    %p48 = por %p46, %p47
    %s50 = sadd.s32 %s49, 1
    %p53 = scmp.eq.s32.totalorder %s15, 1
    %p54 = scmp.ne.s32.totalorder %s49, %s51
    %p55 = scmp.eq.s32.totalorder %s15, 0
    %p56 = por %p54, %p55
    %p57 = scmp.ne.s32.totalorder %s49, %s51
    %p58 = scmp.eq.s32.totalorder %s20, 1
    %p59 = por %p57, %p58
    %p60 = scmp.ne.s32.totalorder %s51, %s52
    %p61 = scmp.eq.s32.totalorder %s20, 0
    %p62 = por %p60, %p61
    %p63 = scmp.ne.s32.totalorder %s51, %s52
    %p64 = scmp.eq.s32.totalorder %s21, 1
    %p65 = por %p63, %p64
    %p67 = scmp.ne.s32.totalorder %s52, %s66
    %p68 = scmp.eq.s32.totalorder %s21, 0
    %p69 = por %p67, %p68
    %s71 = sadd.s32 %s70, 1
    %p74 = scmp.eq.s32.totalorder %s15, 1
    %p75 = scmp.ne.s32.totalorder %s70, %s72
    %p76 = scmp.eq.s32.totalorder %s15, 0
    %p77 = por %p75, %p76
    %p78 = scmp.ne.s32.totalorder %s70, %s72
    %p79 = scmp.eq.s32.totalorder %s20, 1
    %p80 = por %p78, %p79
    %p81 = scmp.ne.s32.totalorder %s72, %s73
    %p82 = scmp.eq.s32.totalorder %s20, 0
    %p83 = por %p81, %p82
    %p84 = scmp.ne.s32.totalorder %s72, %s73
    %p85 = scmp.eq.s32.totalorder %s21, 1
    %p86 = por %p84, %p85
    %p88 = scmp.ne.s32.totalorder %s73, %s87
    %p89 = scmp.eq.s32.totalorder %s21, 0
    %p90 = por %p88, %p89
    %s92 = sadd.s32 %s91, 1
    %p95 = scmp.eq.s32.totalorder %s15, 1
    %p96 = scmp.ne.s32.totalorder %s91, %s93
    %p97 = scmp.eq.s32.totalorder %s15, 0
    %p98 = por %p96, %p97
    %p99 = scmp.ne.s32.totalorder %s91, %s93
    %p100 = scmp.eq.s32.totalorder %s20, 1
    %p101 = por %p99, %p100
    %p102 = scmp.ne.s32.totalorder %s93, %s94
    %p103 = scmp.eq.s32.totalorder %s20, 0
    %p104 = por %p102, %p103
    %p105 = scmp.ne.s32.totalorder %s93, %s94
    %p106 = scmp.eq.s32.totalorder %s21, 1
    %p107 = por %p105, %p106
    %p109 = scmp.ne.s32.totalorder %s94, %s108
    %p110 = scmp.eq.s32.totalorder %s21, 0
    %p111 = por %p109, %p110
    %s113 = sadd.s32 %s112, 1
    %p116 = scmp.eq.s32.totalorder %s15, 1
    %p117 = scmp.ne.s32.totalorder %s112, %s114
    %p118 = scmp.eq.s32.totalorder %s15, 0
    %p119 = por %p117, %p118
    %p120 = scmp.ne.s32.totalorder %s112, %s114
    %p121 = scmp.eq.s32.totalorder %s20, 1
    %p122 = por %p120, %p121
    %p123 = scmp.ne.s32.totalorder %s114, %s115
    %p124 = scmp.eq.s32.totalorder %s20, 0
    %p125 = por %p123, %p124
    %p126 = scmp.ne.s32.totalorder %s114, %s115
    %p127 = scmp.eq.s32.totalorder %s21, 1
    %p128 = por %p126, %p127
    %p130 = scmp.ne.s32.totalorder %s115, %s129
    %p131 = scmp.eq.s32.totalorder %s21, 0
    %p132 = por %p130, %p131
    %s134 = sadd.s32 %s133, 1
    %p137 = scmp.eq.s32.totalorder %s15, 1
    %p138 = scmp.ne.s32.totalorder %s133, %s135
    %p139 = scmp.eq.s32.totalorder %s15, 0
    %p140 = por %p138, %p139
    %p141 = scmp.ne.s32.totalorder %s133, %s135
    %p142 = scmp.eq.s32.totalorder %s20, 1
    %p143 = por %p141, %p142
    %p144 = scmp.ne.s32.totalorder %s135, %s136
    %p145 = scmp.eq.s32.totalorder %s20, 0
    %p146 = por %p144, %p145
    %p147 = scmp.ne.s32.totalorder %s135, %s136
    %p148 = scmp.eq.s32.totalorder %s21, 1
    %p149 = por %p147, %p148
    %p151 = scmp.ne.s32.totalorder %s136, %s150
    %p152 = scmp.eq.s32.totalorder %s21, 0
    %p153 = por %p151, %p152
    %s155 = sadd.s32 %s154, 1
    %p158 = scmp.eq.s32.totalorder %s15, 1
    %p159 = scmp.ne.s32.totalorder %s154, %s156
    %p160 = scmp.eq.s32.totalorder %s15, 0
    %p161 = por %p159, %p160
    %p162 = scmp.ne.s32.totalorder %s154, %s156
    %p163 = scmp.eq.s32.totalorder %s20, 1
    %p164 = por %p162, %p163
    %p165 = scmp.ne.s32.totalorder %s156, %s157
    %p166 = scmp.eq.s32.totalorder %s20, 0
    %p167 = por %p165, %p166
    %p168 = scmp.ne.s32.totalorder %s156, %s157
    %p169 = scmp.eq.s32.totalorder %s21, 1
    %p170 = por %p168, %p169
    %p172 = scmp.ne.s32.totalorder %s157, %s171
    %p173 = scmp.eq.s32.totalorder %s21, 0
    %p174 = por %p172, %p173
    %s176 = sadd.s32 %s175, 1
    %p179 = scmp.eq.s32.totalorder %s15, 1
    %p180 = scmp.ne.s32.totalorder %s175, %s177
    %p181 = scmp.eq.s32.totalorder %s15, 0
    %p182 = por %p180, %p181
    %p183 = scmp.ne.s32.totalorder %s175, %s177
    %p184 = scmp.eq.s32.totalorder %s20, 1
    %p185 = por %p183, %p184
    %p186 = scmp.ne.s32.totalorder %s177, %s178
    %p187 = scmp.eq.s32.totalorder %s20, 0
    %p188 = por %p186, %p187
    %p189 = scmp.ne.s32.totalorder %s177, %s178
    %p190 = scmp.eq.s32.totalorder %s21, 1
    %p191 = por %p189, %p190
    %p193 = scmp.ne.s32.totalorder %s178, %s192
    %p194 = scmp.eq.s32.totalorder %s21, 0
    %p195 = por %p193, %p194
    %s197 = sadd.s32 %s196, 1
    %p200 = scmp.eq.s32.totalorder %s15, 1
    %p201 = scmp.ne.s32.totalorder %s196, %s198
    %p202 = scmp.eq.s32.totalorder %s15, 0
    %p203 = por %p201, %p202
    %p204 = scmp.ne.s32.totalorder %s196, %s198
    %p205 = scmp.eq.s32.totalorder %s20, 1
    %p206 = por %p204, %p205
    %p207 = scmp.ne.s32.totalorder %s198, %s199
    %p208 = scmp.eq.s32.totalorder %s20, 0
    %p209 = por %p207, %p208
    %p210 = scmp.ne.s32.totalorder %s198, %s199
    %p211 = scmp.eq.s32.totalorder %s21, 1
    %p212 = por %p210, %p211
    %p214 = scmp.ne.s32.totalorder %s199, %s213
    %p215 = scmp.eq.s32.totalorder %s21, 0
    %p216 = por %p214, %p215
    %s217 = ssub.s32 %s15, %s22
    %p218 = scmp.eq.s32.totalorder %s217, 0
    %s220 = sadd.s32 %s219, 1
    %s221 = scalar_select %p218, %s219, %s220
    %p224 = pneg %p218
    %p225 = scmp.eq.s32.totalorder %s15, 1
    %p226 = por %p224, %p225
    %p227 = scmp.ne.s32.totalorder %s219, %s222
    %p228 = scmp.eq.s32.totalorder %s15, 0
    %p229 = por %p227, %p228
    %p230 = scmp.ne.s32.totalorder %s219, %s222
    %p231 = scmp.eq.s32.totalorder %s20, 1
    %p232 = por %p230, %p231
    %p233 = scmp.ne.s32.totalorder %s222, %s223
    %p234 = scmp.eq.s32.totalorder %s20, 0
    %p235 = por %p233, %p234
    %p236 = scmp.ne.s32.totalorder %s222, %s223
    %p237 = scmp.eq.s32.totalorder %s21, 1
    %p238 = por %p236, %p237
    %p240 = scmp.ne.s32.totalorder %s223, %s239
    %p241 = scmp.eq.s32.totalorder %s21, 0
    %p242 = por %p240, %p241
    %p243 = scmp.le.s32.totalorder 1, %s15
    %p244 = scmp.lt.s32.totalorder %s15, 3
    %p245 = pnand %p243, %p244
    %p246 = pneg %p245
    // Predicated region
    $region9: #{simple_encoder_forward.1} parent=5 // pred_check
      _
    $region10: #{simple_encoder_forward.1} parent=5 // pred_check_branch
      %248 = sbr.rel (%p245) target = $region12
    $region11: #{simple_encoder_forward.1} parent=5 // pred_region
      %s249 = ssub.s32 %s15, 1
      // Predicated region
      $region13: #{simple_encoder_forward.1} parent=11 // pred_check
        %p250 = pneg %p62
      $region14: #{simple_encoder_forward.1} parent=11 // pred_check_branch
        %252 = sbr.rel (%p250) target = $region16
      $region15: #{simple_encoder_forward.1} parent=11 // pred_region
        _
      $region16: #{simple_encoder_forward.1} parent=11 // pred_fallthru
        _
      // Predicated region
      $region17: #{simple_encoder_forward.1} parent=11 // pred_check
        %p253 = pneg %p83
      $region18: #{simple_encoder_forward.1} parent=11 // pred_check_branch
        %255 = sbr.rel (%p253) target = $region20
      $region19: #{simple_encoder_forward.1} parent=11 // pred_region
        _
      $region20: #{simple_encoder_forward.1} parent=11 // pred_fallthru
        _
      // Predicated region
      $region21: #{simple_encoder_forward.1} parent=11 // pred_check
        %p256 = pneg %p104
      $region22: #{simple_encoder_forward.1} parent=11 // pred_check_branch
        %258 = sbr.rel (%p256) target = $region24
      $region23: #{simple_encoder_forward.1} parent=11 // pred_region
        _
      $region24: #{simple_encoder_forward.1} parent=11 // pred_fallthru
        _
      // Predicated region
      $region25: #{simple_encoder_forward.1} parent=11 // pred_check
        %p259 = pneg %p125
      $region26: #{simple_encoder_forward.1} parent=11 // pred_check_branch
        %261 = sbr.rel (%p259) target = $region28
      $region27: #{simple_encoder_forward.1} parent=11 // pred_region
        _
      $region28: #{simple_encoder_forward.1} parent=11 // pred_fallthru
        _
      // Predicated region
      $region29: #{simple_encoder_forward.1} parent=11 // pred_check
        %p262 = pneg %p146
      $region30: #{simple_encoder_forward.1} parent=11 // pred_check_branch
        %264 = sbr.rel (%p262) target = $region32
      $region31: #{simple_encoder_forward.1} parent=11 // pred_region
        _
      $region32: #{simple_encoder_forward.1} parent=11 // pred_fallthru
        _
      // Predicated region
      $region33: #{simple_encoder_forward.1} parent=11 // pred_check
        %p265 = pneg %p167
      $region34: #{simple_encoder_forward.1} parent=11 // pred_check_branch
        %267 = sbr.rel (%p265) target = $region36
      $region35: #{simple_encoder_forward.1} parent=11 // pred_region
        _
      $region36: #{simple_encoder_forward.1} parent=11 // pred_fallthru
        _
      // Predicated region
      $region37: #{simple_encoder_forward.1} parent=11 // pred_check
        %p268 = pneg %p188
      $region38: #{simple_encoder_forward.1} parent=11 // pred_check_branch
        %270 = sbr.rel (%p268) target = $region40
      $region39: #{simple_encoder_forward.1} parent=11 // pred_region
        _
      $region40: #{simple_encoder_forward.1} parent=11 // pred_fallthru
        _
      // Predicated region
      $region41: #{simple_encoder_forward.1} parent=11 // pred_check
        %p271 = pneg %p209
      $region42: #{simple_encoder_forward.1} parent=11 // pred_check_branch
        %273 = sbr.rel (%p271) target = $region44
      $region43: #{simple_encoder_forward.1} parent=11 // pred_region
        _
      $region44: #{simple_encoder_forward.1} parent=11 // pred_fallthru
        _
    $region12: #{simple_encoder_forward.1} parent=5 // pred_fallthru
      _
    %p274 = scmp.lt.s32.totalorder %s15, 2
    // Predicated region
    $region45: #{simple_encoder_forward.1} parent=5 // pred_check
      %p275 = pneg %p274
    $region46: #{simple_encoder_forward.1} parent=5 // pred_check_branch
      %277 = sbr.rel (%p275) target = $region48
    $region47: #{simple_encoder_forward.1} parent=5 // pred_region
      // Predicated region
      $region49: #{simple_encoder_forward.1} parent=47 // pred_check
        %p278 = pneg %p35
      $region50: #{simple_encoder_forward.1} parent=47 // pred_check_branch
        %280 = sbr.rel (%p278) target = $region52
      $region51: #{simple_encoder_forward.1} parent=47 // pred_region
        %s281 = smul.u32 13, %s15
        %p282 = scmp.lt.s32.totalorder %s281, 25
        %s283 = scalar_select %p282, %s281, 25
        %s284 = smul.addr %s283, 7
        %s285 = smul.addr %s284, 4
        %s286 = scalar_lea.vmem %s0, %s285
        %s287 = smul.u32 13, %s15
      $region52: #{simple_encoder_forward.1} parent=47 // pred_fallthru
        _
    $region48: #{simple_encoder_forward.1} parent=5 // pred_fallthru
      _
    %p288 = scmp.le.s32.totalorder 1, %s15
    %p289 = scmp.lt.s32.totalorder %s15, 3
    %p290 = pnand %p288, %p289
    %p291 = pneg %p290
    // Predicated region
    $region53: #{simple_encoder_forward.1} parent=5 // pred_check
      _
    $region54: #{simple_encoder_forward.1} parent=5 // pred_check_branch
      %293 = sbr.rel (%p290) target = $region56
    $region55: #{simple_encoder_forward.1} parent=5 // pred_region
      %s294 = ssub.s32 %s15, 1
      %s295 = smul.u32 13, %s20
      %p296 = scmp.lt.s32.totalorder %s295, 25
      %s297 = scalar_select %p296, %s295, 25
      %s298 = smul.addr %s297, 7
      %s299 = smul.addr %s298, 4
      %s300 = scalar_lea.vmem %s0, %s299
      %p301 = pneg %p41
      %p302 = pneg %p38
      %p303 = pneg %p62
      %p304 = pneg %p59
      %p305 = pneg %p83
      %p306 = pneg %p80
      %p307 = pneg %p104
      %p308 = pneg %p101
      %p309 = pneg %p125
      %p310 = pneg %p122
      %p311 = pneg %p146
      %p312 = pneg %p143
      %p313 = pneg %p167
      %p314 = pneg %p164
      %p315 = pneg %p188
      %p316 = pneg %p185
      %p317 = pneg %p209
      %p318 = pneg %p206
      %p319 = pneg %p235
      %p320 = pneg %p232
      %s321 = smul.u32 13, %s20
      %p322 = scmp.lt.s32.totalorder %s321, 25
      %s323 = scalar_select %p322, %s321, 25
      %s324 = smul.addr %s323, 8
      %s325 = scalar_lea.vmem %s9, %s324
      %s326 = smul.u32 13, %s20
      %p327 = scmp.lt.s32.totalorder %s326, 25
      %s328 = scalar_select %p327, %s326, 25
      %s329 = smul.addr %s328, 7
      %s330 = smul.addr %s329, 4
      %s331 = scalar_lea.vmem %s0, %s330
      %s332 = smul.u32 13, %s20
      %s333 = smul.u32 13, %s20
      %p334 = scmp.lt.s32.totalorder %s333, 25
      %s335 = scalar_select %p334, %s333, 25
      %s336 = smul.addr %s335, 8
      %s337 = scalar_lea.vmem %s9, %s336
      %s338 = smul.u32 13, %s20
      %v340 = vld [vmem:[%s331] sm:$0xff]
      %v341 = vld [vmem:[%s331 + $0x8] sm:$0xff]
      %v342 = vld [vmem:[%s331 + $0x10] sm:$0xff]
      %v343 = vld [vmem:[%s331 + $0x18] sm:$0xf]
      %v344 = vld [vmem:[%s331 + $0x1c] sm:$0xff]
      %v345 = vld [vmem:[%s331 + $0x24] sm:$0xff]
      %v346 = vld [vmem:[%s331 + $0x2c] sm:$0xff]
      %v347 = vld [vmem:[%s331 + $0x34] sm:$0xf]
      %v348 = vld [vmem:[%s331 + $0x38] sm:$0xff]
      %v349 = vld [vmem:[%s331 + $0x40] sm:$0xff]
      %v350 = vld [vmem:[%s331 + $0x48] sm:$0xff]
      %v351 = vld [vmem:[%s331 + $0x50] sm:$0xf]
      %v352 = vld [vmem:[%s331 + $0x54] sm:$0xff]
      %v353 = vld [vmem:[%s331 + $0x5c] sm:$0xff]
      %v354 = vld [vmem:[%s331 + $0x64] sm:$0xff]
      %v355 = vld [vmem:[%s331 + $0x6c] sm:$0xf]
      %v356 = vld [vmem:[%s331 + $0x70] sm:$0xff]
      %v357 = vld [vmem:[%s331 + $0x78] sm:$0xff]
      %v358 = vld [vmem:[%s331 + $0x80] sm:$0xff]
      %v359 = vld [vmem:[%s331 + $0x88] sm:$0xf]
      %v360 = vld [vmem:[%s331 + $0x8c] sm:$0xff]
      %v361 = vld [vmem:[%s331 + $0x94] sm:$0xff]
      %v362 = vld [vmem:[%s331 + $0x9c] sm:$0xff]
      %v363 = vld [vmem:[%s331 + $0xa4] sm:$0xf]
      %v364 = vld [vmem:[%s331 + $0xa8] sm:$0xff]
      %v365 = vld [vmem:[%s331 + $0xb0] sm:$0xff]
      %v366 = vld [vmem:[%s331 + $0xb8] sm:$0xff]
      %v367 = vld [vmem:[%s331 + $0xc0] sm:$0xf]
      %v368 = vld [vmem:[%s331 + $0xc4] sm:$0xff]
      %v369 = vld [vmem:[%s331 + $0xcc] sm:$0xff]
      %v370 = vld [vmem:[%s331 + $0xd4] sm:$0xff]
      %v371 = vld [vmem:[%s331 + $0xdc] sm:$0xf]
      %v372 = vld [vmem:[%s331 + $0xe0] sm:$0xff]
      %v373 = vld [vmem:[%s331 + $0xe8] sm:$0xff]
      %v374 = vld [vmem:[%s331 + $0xf0] sm:$0xff]
      %v375 = vld [vmem:[%s331 + $0xf8] sm:$0xf]
      %v376 = vld [vmem:[%s331 + $0xfc] sm:$0xff]
      %v377 = vld [vmem:[%s331 + $0x104] sm:$0xff]
      %v378 = vld [vmem:[%s331 + $0x10c] sm:$0xff]
      %v379 = vld [vmem:[%s331 + $0x114] sm:$0xf]
      %v380 = vld [vmem:[%s331 + $0x118] sm:$0xff]
      %v381 = vld [vmem:[%s331 + $0x120] sm:$0xff]
      %v382 = vld [vmem:[%s331 + $0x128] sm:$0xff]
      %v383 = vld [vmem:[%s331 + $0x130] sm:$0xf]
      %v384 = vld [vmem:[%s331 + $0x134] sm:$0xff]
      %v385 = vld [vmem:[%s331 + $0x13c] sm:$0xff]
      %v386 = vld [vmem:[%s331 + $0x144] sm:$0xff]
      %v387 = vld [vmem:[%s331 + $0x14c] sm:$0xf]
      %v388 = vld [vmem:[%s331 + $0x150] sm:$0xff]
      %v389 = vld [vmem:[%s331 + $0x158] sm:$0xff]
      %v390 = vld [vmem:[%s331 + $0x160] sm:$0xff]
      %v391 = vld [vmem:[%s331 + $0x168] sm:$0xf]
      %v392 = vld [vmem:[%s1] sm:$0xff]
      %v393 = vld [vmem:[%s1 + $0x8] sm:$0xff]
      %v394 = vld [vmem:[%s1 + $0x10] sm:$0xff]
      %v395 = vld [vmem:[%s1 + $0x18] sm:$0xff]
      %v396 = vld [vmem:[%s1 + $0x20] sm:$0xff]
      %v397 = vld [vmem:[%s1 + $0x28] sm:$0xff]
      %v398 = vld [vmem:[%s1 + $0x30] sm:$0xff]
      %v399 = vld [vmem:[%s1 + $0x38] sm:$0xff]
      %v400 = vld [vmem:[%s1 + $0x40] sm:$0xff]
      %v401 = vld [vmem:[%s1 + $0x48] sm:$0xff]
      %v402 = vld [vmem:[%s1 + $0x50] sm:$0xff]
      %v403 = vld [vmem:[%s1 + $0x58] sm:$0xff]
      %v404 = vld [vmem:[%s1 + $0x60] sm:$0xff]
      %v405 = vld [vmem:[%s1 + $0x68] sm:$0xff]
      %v406 = vld [vmem:[%s1 + $0x70] sm:$0xff]
      %v407 = vld [vmem:[%s1 + $0x78] sm:$0xff]
      %v408 = vld [vmem:[%s1 + $0x80] sm:$0xff]
      %v409 = vld [vmem:[%s1 + $0x88] sm:$0xff]
      %v410 = vld [vmem:[%s1 + $0x90] sm:$0xff]
      %v411 = vld [vmem:[%s1 + $0x98] sm:$0xff]
      %v412 = vld [vmem:[%s1 + $0xa0] sm:$0xff]
      %v413 = vld [vmem:[%s1 + $0xa8] sm:$0xff]
      %v414 = vld [vmem:[%s1 + $0xb0] sm:$0xff]
      %v415 = vld [vmem:[%s1 + $0xb8] sm:$0xff]
      %v416 = vld [vmem:[%s1 + $0xc0] sm:$0xff]
      %v417 = vld [vmem:[%s1 + $0xc8] sm:$0xff]
      %v418 = vld [vmem:[%s1 + $0xd0] sm:$0xff]
      %v419 = vld [vmem:[%s1 + $0xd8] sm:$0xff]
      %v420 = vld [vmem:[%s1 + $0xe0] sm:$0xff]
      %v421 = vld [vmem:[%s1 + $0xe8] sm:$0xff]
      %v422 = vld [vmem:[%s1 + $0xf0] sm:$0xff]
      %v423 = vld [vmem:[%s1 + $0xf8] sm:$0xff]
      %v424 = vld [vmem:[%s1 + $0x100] sm:$0xff]
      %v425 = vld [vmem:[%s1 + $0x108] sm:$0xff]
      %v426 = vld [vmem:[%s1 + $0x110] sm:$0xff]
      %v427 = vld [vmem:[%s1 + $0x118] sm:$0xff]
      %v428 = vld [vmem:[%s1 + $0x120] sm:$0xff]
      %v429 = vld [vmem:[%s1 + $0x128] sm:$0xff]
      %v430 = vld [vmem:[%s1 + $0x130] sm:$0xff]
      %v431 = vld [vmem:[%s1 + $0x138] sm:$0xff]
      %v432 = vld [vmem:[%s1 + $0x140] sm:$0xff]
      %v433 = vld [vmem:[%s1 + $0x148] sm:$0xff]
      %v434 = vld [vmem:[%s1 + $0x150] sm:$0xff]
      %v435 = vld [vmem:[%s1 + $0x158] sm:$0xff]
      %v436 = vld [vmem:[%s1 + $0x160] sm:$0xff]
      %v437 = vld [vmem:[%s1 + $0x168] sm:$0xff]
      %v438 = vld [vmem:[%s1 + $0x170] sm:$0xff]
      %v439 = vld [vmem:[%s1 + $0x178] sm:$0xff]
      %v440 = vld [vmem:[%s1 + $0x180] sm:$0xff]
      %v441 = vld [vmem:[%s1 + $0x188] sm:$0xff]
      %v442 = vld [vmem:[%s1 + $0x190] sm:$0xff]
      %v443 = vld [vmem:[%s1 + $0x198] sm:$0xff]
      %v444 = vld [vmem:[%s1 + $0x1a0] sm:$0xff]
      %v445 = vld [vmem:[%s1 + $0x1a8] sm:$0xff]
      %v446 = vld [vmem:[%s1 + $0x1b0] sm:$0xff]
      %v447 = vld [vmem:[%s1 + $0x1b8] sm:$0xff]
      %v448 = vld [vmem:[%s1 + $0x1c0] sm:$0xff]
      %v449 = vld [vmem:[%s1 + $0x1c8] sm:$0xff]
      %v450 = vld [vmem:[%s1 + $0x1d0] sm:$0xff]
      %v451 = vld [vmem:[%s1 + $0x1d8] sm:$0xff]
      %v452 = vld [vmem:[%s1 + $0x1e0] sm:$0xff]
      %v453 = vld [vmem:[%s1 + $0x1e8] sm:$0xff]
      %v454 = vld [vmem:[%s1 + $0x1f0] sm:$0xff]
      %v455 = vld [vmem:[%s1 + $0x1f8] sm:$0xff]
      %v456 = vld [vmem:[%s1 + $0x200] sm:$0xff]
      %v457 = vld [vmem:[%s1 + $0x208] sm:$0xff]
      %v458 = vld [vmem:[%s1 + $0x210] sm:$0xff]
      %v459 = vld [vmem:[%s1 + $0x218] sm:$0xff]
      %v460 = vld [vmem:[%s1 + $0x220] sm:$0xff]
      %v461 = vld [vmem:[%s1 + $0x228] sm:$0xff]
      %v462 = vld [vmem:[%s1 + $0x230] sm:$0xff]
      %v463 = vld [vmem:[%s1 + $0x238] sm:$0xff]
      %v464 = vld [vmem:[%s1 + $0x240] sm:$0xff]
      %v465 = vld [vmem:[%s1 + $0x248] sm:$0xff]
      %v466 = vld [vmem:[%s1 + $0x250] sm:$0xff]
      %v467 = vld [vmem:[%s1 + $0x258] sm:$0xff]
      %v468 = vld [vmem:[%s1 + $0x260] sm:$0xff]
      %v469 = vld [vmem:[%s1 + $0x268] sm:$0xff]
      %v470 = vld [vmem:[%s1 + $0x270] sm:$0xff]
      %v471 = vld [vmem:[%s1 + $0x278] sm:$0xff]
      %v472 = vld [vmem:[%s1 + $0x280] sm:$0xff]
      %v473 = vld [vmem:[%s1 + $0x288] sm:$0xff]
      %v474 = vld [vmem:[%s1 + $0x290] sm:$0xff]
      %v475 = vld [vmem:[%s1 + $0x298] sm:$0xff]
      %v476 = vld [vmem:[%s1 + $0x2a0] sm:$0xff]
      %v477 = vld [vmem:[%s1 + $0x2a8] sm:$0xff]
      %v478 = vld [vmem:[%s1 + $0x2b0] sm:$0xff]
      %v479 = vld [vmem:[%s1 + $0x2b8] sm:$0xff]
      %v480 = vld [vmem:[%s1 + $0x2c0] sm:$0xff]
      %v481 = vld [vmem:[%s1 + $0x2c8] sm:$0xff]
      %v482 = vld [vmem:[%s1 + $0x2d0] sm:$0xff]
      %v483 = vld [vmem:[%s1 + $0x2d8] sm:$0xff]
      %v484 = vld [vmem:[%s1 + $0x2e0] sm:$0xff]
      %v485 = vld [vmem:[%s1 + $0x2e8] sm:$0xff]
      %v486 = vld [vmem:[%s1 + $0x2f0] sm:$0xff]
      %v487 = vld [vmem:[%s1 + $0x2f8] sm:$0xff]
      %v488 = vld [vmem:[%s1 + $0x300] sm:$0xff]
      %v489 = vld [vmem:[%s1 + $0x308] sm:$0xff]
      %v490 = vld [vmem:[%s1 + $0x310] sm:$0xff]
      %v491 = vld [vmem:[%s1 + $0x318] sm:$0xff]
      %v492 = vld [vmem:[%s1 + $0x320] sm:$0xff]
      %v493 = vld [vmem:[%s1 + $0x328] sm:$0xff]
      %v494 = vld [vmem:[%s1 + $0x330] sm:$0xff]
      %v495 = vld [vmem:[%s1 + $0x338] sm:$0xff]
      %v496 = vld [vmem:[%s1 + $0x340] sm:$0xff]
      %v497 = vld [vmem:[%s1 + $0x348] sm:$0xff]
      %v498 = vld [vmem:[%s1 + $0x350] sm:$0xff]
      %v499 = vld [vmem:[%s1 + $0x358] sm:$0xff]
      %v500 = vld [vmem:[%s1 + $0x360] sm:$0xff]
      %v501 = vld [vmem:[%s1 + $0x368] sm:$0xff]
      %v502 = vld [vmem:[%s1 + $0x370] sm:$0xff]
      %v503 = vld [vmem:[%s1 + $0x378] sm:$0xff]
      %v504 = vld [vmem:[%s1 + $0x380] sm:$0xff]
      %v505 = vld [vmem:[%s1 + $0x388] sm:$0xff]
      %v506 = vld [vmem:[%s1 + $0x390] sm:$0xff]
      %v507 = vld [vmem:[%s1 + $0x398] sm:$0xff]
      %v508 = vld [vmem:[%s1 + $0x3a0] sm:$0xff]
      %v509 = vld [vmem:[%s1 + $0x3a8] sm:$0xff]
      %v510 = vld [vmem:[%s1 + $0x3b0] sm:$0xff]
      %v511 = vld [vmem:[%s1 + $0x3b8] sm:$0xff]
      %v512 = vld [vmem:[%s1 + $0x3c0] sm:$0xff]
      %v513 = vld [vmem:[%s1 + $0x3c8] sm:$0xff]
      %v514 = vld [vmem:[%s1 + $0x3d0] sm:$0xff]
      %v515 = vld [vmem:[%s1 + $0x3d8] sm:$0xff]
      %v516 = vld [vmem:[%s1 + $0x3e0] sm:$0xff]
      %v517 = vld [vmem:[%s1 + $0x3e8] sm:$0xff]
      %v518 = vld [vmem:[%s1 + $0x3f0] sm:$0xff]
      %v519 = vld [vmem:[%s1 + $0x3f8] sm:$0xff]
      %v520 = vld [vmem:[%s1 + $0x400] sm:$0xff]
      %v521 = vld [vmem:[%s1 + $0x408] sm:$0xff]
      %v522 = vld [vmem:[%s1 + $0x410] sm:$0xff]
      %v523 = vld [vmem:[%s1 + $0x418] sm:$0xff]
      %v524 = vld [vmem:[%s1 + $0x420] sm:$0xff]
      %v525 = vld [vmem:[%s1 + $0x428] sm:$0xff]
      %v526 = vld [vmem:[%s1 + $0x430] sm:$0xff]
      %v527 = vld [vmem:[%s1 + $0x438] sm:$0xff]
      %v528 = vld [vmem:[%s1 + $0x440] sm:$0xff]
      %v529 = vld [vmem:[%s1 + $0x448] sm:$0xff]
      %v530 = vld [vmem:[%s1 + $0x450] sm:$0xff]
      %v531 = vld [vmem:[%s1 + $0x458] sm:$0xff]
      %v532 = vld [vmem:[%s1 + $0x460] sm:$0xff]
      %v533 = vld [vmem:[%s1 + $0x468] sm:$0xff]
      %v534 = vld [vmem:[%s1 + $0x470] sm:$0xff]
      %v535 = vld [vmem:[%s1 + $0x478] sm:$0xff]
      %v536 = vld [vmem:[%s1 + $0x480] sm:$0xff]
      %v537 = vld [vmem:[%s1 + $0x488] sm:$0xff]
      %v538 = vld [vmem:[%s1 + $0x490] sm:$0xff]
      %v539 = vld [vmem:[%s1 + $0x498] sm:$0xff]
      %v540 = vld [vmem:[%s1 + $0x4a0] sm:$0xff]
      %v541 = vld [vmem:[%s1 + $0x4a8] sm:$0xff]
      %v542 = vld [vmem:[%s1 + $0x4b0] sm:$0xff]
      %v543 = vld [vmem:[%s1 + $0x4b8] sm:$0xff]
      %v544 = vld [vmem:[%s1 + $0x4c0] sm:$0xff]
      %v545 = vld [vmem:[%s1 + $0x4c8] sm:$0xff]
      %v546 = vld [vmem:[%s1 + $0x4d0] sm:$0xff]
      %v547 = vld [vmem:[%s1 + $0x4d8] sm:$0xff]
      %v548 = vld [vmem:[%s1 + $0x4e0] sm:$0xff]
      %v549 = vld [vmem:[%s1 + $0x4e8] sm:$0xff]
      %v550 = vld [vmem:[%s1 + $0x4f0] sm:$0xff]
      %v551 = vld [vmem:[%s1 + $0x4f8] sm:$0xff]
      %v552 = vld [vmem:[%s1 + $0x500] sm:$0xff]
      %v553 = vld [vmem:[%s1 + $0x508] sm:$0xff]
      %v554 = vld [vmem:[%s1 + $0x510] sm:$0xff]
      %v555 = vld [vmem:[%s1 + $0x518] sm:$0xff]
      %v556 = vld [vmem:[%s1 + $0x520] sm:$0xff]
      %v557 = vld [vmem:[%s1 + $0x528] sm:$0xff]
      %v558 = vld [vmem:[%s1 + $0x530] sm:$0xff]
      %v559 = vld [vmem:[%s1 + $0x538] sm:$0xff]
      %v560 = vld [vmem:[%s1 + $0x540] sm:$0xff]
      %v561 = vld [vmem:[%s1 + $0x548] sm:$0xff]
      %v562 = vld [vmem:[%s1 + $0x550] sm:$0xff]
      %v563 = vld [vmem:[%s1 + $0x558] sm:$0xff]
      %v564 = vld [vmem:[%s1 + $0x560] sm:$0xff]
      %v565 = vld [vmem:[%s1 + $0x568] sm:$0xff]
      %v566 = vld [vmem:[%s1 + $0x570] sm:$0xff]
      %v567 = vld [vmem:[%s1 + $0x578] sm:$0xff]
      %v568 = vld [vmem:[%s1 + $0x580] sm:$0xff]
      %v569 = vld [vmem:[%s1 + $0x588] sm:$0xff]
      %v570 = vld [vmem:[%s1 + $0x590] sm:$0xff]
      %v571 = vld [vmem:[%s1 + $0x598] sm:$0xff]
      %v572 = vld [vmem:[%s1 + $0x5a0] sm:$0xff]
      %v573 = vld [vmem:[%s1 + $0x5a8] sm:$0xff]
      %v574 = vld [vmem:[%s1 + $0x5b0] sm:$0xff]
      %v575 = vld [vmem:[%s1 + $0x5b8] sm:$0xff]
      %v576 = vld [vmem:[%s1 + $0x5c0] sm:$0xff]
      %v577 = vld [vmem:[%s1 + $0x5c8] sm:$0xff]
      %v578 = vld [vmem:[%s1 + $0x5d0] sm:$0xff]
      %v579 = vld [vmem:[%s1 + $0x5d8] sm:$0xff]
      %v580 = vld [vmem:[%s1 + $0x5e0] sm:$0xff]
      %v581 = vld [vmem:[%s1 + $0x5e8] sm:$0xff]
      %v582 = vld [vmem:[%s1 + $0x5f0] sm:$0xff]
      %v583 = vld [vmem:[%s1 + $0x5f8] sm:$0xff]
      %v584 = vld [vmem:[%s1 + $0x600] sm:$0xff]
      %v585 = vld [vmem:[%s1 + $0x608] sm:$0xff]
      %v586 = vld [vmem:[%s1 + $0x610] sm:$0xff]
      %v587 = vld [vmem:[%s1 + $0x618] sm:$0xff]
      %v588 = vld [vmem:[%s2] sm:$0xf]
      %v590 = vlaneseq
      %v591 = vshrl.u32 %v590, 7
      %v592 = vsub.s32 0, %v591
      %v593 = vrot.slane %v588, %v592
      %v594 = vlaneseq
      %v595 = vshrl.u32 %v594, 7
      %v596 = vsub.s32 1, %v595
      %v597 = vrot.slane %v588, %v596
      %v598 = vlaneseq
      %v599 = vshrl.u32 %v598, 7
      %v600 = vsub.s32 2, %v599
      %v601 = vrot.slane %v588, %v600
      %v602 = vlaneseq
      %v603 = vshrl.u32 %v602, 7
      %v604 = vsub.s32 3, %v603
      %v605 = vrot.slane %v588, %v604
      %v662 = vunpack.c.l.b16 %v340
      %v663 = vunpack.c.h.b16 %v340
      %v664 = vunpack.c.l.b16 %v341
      %v665 = vunpack.c.h.b16 %v341
      %v666 = vunpack.c.l.b16 %v342
      %v667 = vunpack.c.h.b16 %v342
      %v668 = vunpack.c.l.b16 %v343
      %v669 = vunpack.c.l.b16 %v344
      %v670 = vunpack.c.h.b16 %v344
      %v671 = vunpack.c.l.b16 %v345
      %v672 = vunpack.c.h.b16 %v345
      %v673 = vunpack.c.l.b16 %v346
      %v674 = vunpack.c.h.b16 %v346
      %v675 = vunpack.c.l.b16 %v347
      %v676 = vunpack.c.l.b16 %v348
      %v677 = vunpack.c.h.b16 %v348
      %v678 = vunpack.c.l.b16 %v349
      %v679 = vunpack.c.h.b16 %v349
      %v680 = vunpack.c.l.b16 %v350
      %v681 = vunpack.c.h.b16 %v350
      %v682 = vunpack.c.l.b16 %v351
      %v683 = vunpack.c.l.b16 %v352
      %v684 = vunpack.c.h.b16 %v352
      %v685 = vunpack.c.l.b16 %v353
      %v686 = vunpack.c.h.b16 %v353
      %v687 = vunpack.c.l.b16 %v354
      %v688 = vunpack.c.h.b16 %v354
      %v689 = vunpack.c.l.b16 %v355
      %v690 = vunpack.c.l.b16 %v356
      %v691 = vunpack.c.h.b16 %v356
      %v692 = vunpack.c.l.b16 %v357
      %v693 = vunpack.c.h.b16 %v357
      %v694 = vunpack.c.l.b16 %v358
      %v695 = vunpack.c.h.b16 %v358
      %v696 = vunpack.c.l.b16 %v359
      %v697 = vunpack.c.l.b16 %v360
      %v698 = vunpack.c.h.b16 %v360
      %v699 = vunpack.c.l.b16 %v361
      %v700 = vunpack.c.h.b16 %v361
      %v701 = vunpack.c.l.b16 %v362
      %v702 = vunpack.c.h.b16 %v362
      %v703 = vunpack.c.l.b16 %v363
      %v704 = vunpack.c.l.b16 %v364
      %v705 = vunpack.c.h.b16 %v364
      %v706 = vunpack.c.l.b16 %v365
      %v707 = vunpack.c.h.b16 %v365
      %v708 = vunpack.c.l.b16 %v366
      %v709 = vunpack.c.h.b16 %v366
      %v710 = vunpack.c.l.b16 %v367
      %v711 = vunpack.c.l.b16 %v368
      %v712 = vunpack.c.h.b16 %v368
      %v713 = vunpack.c.l.b16 %v369
      %v714 = vunpack.c.h.b16 %v369
      %v715 = vunpack.c.l.b16 %v370
      %v716 = vunpack.c.h.b16 %v370
      %v717 = vunpack.c.l.b16 %v371
      %v718 = vunpack.c.l.b16 %v372
      %v719 = vunpack.c.h.b16 %v372
      %v720 = vunpack.c.l.b16 %v373
      %v721 = vunpack.c.h.b16 %v373
      %v722 = vunpack.c.l.b16 %v374
      %v723 = vunpack.c.h.b16 %v374
      %v724 = vunpack.c.l.b16 %v375
      %v725 = vunpack.c.l.b16 %v376
      %v726 = vunpack.c.h.b16 %v376
      %v727 = vunpack.c.l.b16 %v377
      %v728 = vunpack.c.h.b16 %v377
      %v729 = vunpack.c.l.b16 %v378
      %v730 = vunpack.c.h.b16 %v378
      %v731 = vunpack.c.l.b16 %v379
      %v732 = vunpack.c.l.b16 %v380
      %v733 = vunpack.c.h.b16 %v380
      %v734 = vunpack.c.l.b16 %v381
      %v735 = vunpack.c.h.b16 %v381
      %v736 = vunpack.c.l.b16 %v382
      %v737 = vunpack.c.h.b16 %v382
      %v738 = vunpack.c.l.b16 %v383
      %v739 = vunpack.c.l.b16 %v384
      %v740 = vunpack.c.h.b16 %v384
      %v741 = vunpack.c.l.b16 %v385
      %v742 = vunpack.c.h.b16 %v385
      %v743 = vunpack.c.l.b16 %v386
      %v744 = vunpack.c.h.b16 %v386
      %v745 = vunpack.c.l.b16 %v387
      %v746 = vunpack.c.l.b16 %v388
      %v747 = vunpack.c.h.b16 %v388
      %v748 = vunpack.c.l.b16 %v389
      %v749 = vunpack.c.h.b16 %v389
      %v750 = vunpack.c.l.b16 %v390
      %v751 = vunpack.c.h.b16 %v390
      %v752 = vunpack.c.l.b16 %v391
      %v753 = vpack.c.b16 %v669, %v662
      %v754 = vpack.c.b16 %v670, %v663
      %v755 = vpack.c.b16 %v671, %v664
      %v756 = vpack.c.b16 %v672, %v665
      %v757 = vpack.c.b16 %v673, %v666
      %v758 = vpack.c.b16 %v674, %v667
      %v759 = vpack.c.b16 %v675, %v668
      %v760 = vpack.c.b16 %v683, %v676
      %v761 = vpack.c.b16 %v684, %v677
      %v762 = vpack.c.b16 %v685, %v678
      %v763 = vpack.c.b16 %v686, %v679
      %v764 = vpack.c.b16 %v687, %v680
      %v765 = vpack.c.b16 %v688, %v681
      %v766 = vpack.c.b16 %v689, %v682
      %v767 = vpack.c.b16 %v697, %v690
      %v768 = vpack.c.b16 %v698, %v691
      %v769 = vpack.c.b16 %v699, %v692
      %v770 = vpack.c.b16 %v700, %v693
      %v771 = vpack.c.b16 %v701, %v694
      %v772 = vpack.c.b16 %v702, %v695
      %v773 = vpack.c.b16 %v703, %v696
      %v774 = vpack.c.b16 %v711, %v704
      %v775 = vpack.c.b16 %v712, %v705
      %v776 = vpack.c.b16 %v713, %v706
      %v777 = vpack.c.b16 %v714, %v707
      %v778 = vpack.c.b16 %v715, %v708
      %v779 = vpack.c.b16 %v716, %v709
      %v780 = vpack.c.b16 %v717, %v710
      %v781 = vpack.c.b16 %v725, %v718
      %v782 = vpack.c.b16 %v726, %v719
      %v783 = vpack.c.b16 %v727, %v720
      %v784 = vpack.c.b16 %v728, %v721
      %v785 = vpack.c.b16 %v729, %v722
      %v786 = vpack.c.b16 %v730, %v723
      %v787 = vpack.c.b16 %v731, %v724
      %v788 = vpack.c.b16 %v739, %v732
      %v789 = vpack.c.b16 %v740, %v733
      %v790 = vpack.c.b16 %v741, %v734
      %v791 = vpack.c.b16 %v742, %v735
      %v792 = vpack.c.b16 %v743, %v736
      %v793 = vpack.c.b16 %v744, %v737
      %v794 = vpack.c.b16 %v745, %v738
      %v795 = vpack.c.b16 %v746, %v746
      %v796 = vpack.c.b16 %v747, %v747
      %v797 = vpack.c.b16 %v748, %v748
      %v798 = vpack.c.b16 %v749, %v749
      %v799 = vpack.c.b16 %v750, %v750
      %v800 = vpack.c.b16 %v751, %v751
      %v801 = vpack.c.b16 %v752, %v752
      %v1040 = vunpack.c.l.b16 %v392
      %v1041 = vunpack.c.h.b16 %v392
      %v1042 = vunpack.c.l.b16 %v393
      %v1043 = vunpack.c.h.b16 %v393
      %v1044 = vunpack.c.l.b16 %v394
      %v1045 = vunpack.c.h.b16 %v394
      %v1046 = vunpack.c.l.b16 %v395
      %v1047 = vunpack.c.h.b16 %v395
      %v1048 = vunpack.c.l.b16 %v396
      %v1049 = vunpack.c.h.b16 %v396
      %v1050 = vunpack.c.l.b16 %v397
      %v1051 = vunpack.c.h.b16 %v397
      %v1052 = vunpack.c.l.b16 %v398
      %v1053 = vunpack.c.h.b16 %v398
      %v1054 = vunpack.c.l.b16 %v399
      %v1055 = vunpack.c.h.b16 %v399
      %v1056 = vunpack.c.l.b16 %v400
      %v1057 = vunpack.c.h.b16 %v400
      %v1058 = vunpack.c.l.b16 %v401
      %v1059 = vunpack.c.h.b16 %v401
      %v1060 = vunpack.c.l.b16 %v402
      %v1061 = vunpack.c.h.b16 %v402
      %v1062 = vunpack.c.l.b16 %v403
      %v1063 = vunpack.c.h.b16 %v403
      %v1064 = vunpack.c.l.b16 %v404
      %v1065 = vunpack.c.h.b16 %v404
      %v1066 = vunpack.c.l.b16 %v405
      %v1067 = vunpack.c.h.b16 %v405
      %v1068 = vunpack.c.l.b16 %v406
      %v1069 = vunpack.c.h.b16 %v406
      %v1070 = vunpack.c.l.b16 %v407
      %v1071 = vunpack.c.h.b16 %v407
      %v1072 = vunpack.c.l.b16 %v408
      %v1073 = vunpack.c.h.b16 %v408
      %v1074 = vunpack.c.l.b16 %v409
      %v1075 = vunpack.c.h.b16 %v409
      %v1076 = vunpack.c.l.b16 %v410
      %v1077 = vunpack.c.h.b16 %v410
      %v1078 = vunpack.c.l.b16 %v411
      %v1079 = vunpack.c.h.b16 %v411
      %v1080 = vunpack.c.l.b16 %v412
      %v1081 = vunpack.c.h.b16 %v412
      %v1082 = vunpack.c.l.b16 %v413
      %v1083 = vunpack.c.h.b16 %v413
      %v1084 = vunpack.c.l.b16 %v414
      %v1085 = vunpack.c.h.b16 %v414
      %v1086 = vunpack.c.l.b16 %v415
      %v1087 = vunpack.c.h.b16 %v415
      %v1088 = vunpack.c.l.b16 %v416
      %v1089 = vunpack.c.h.b16 %v416
      %v1090 = vunpack.c.l.b16 %v417
      %v1091 = vunpack.c.h.b16 %v417
      %v1092 = vunpack.c.l.b16 %v418
      %v1093 = vunpack.c.h.b16 %v418
      %v1094 = vunpack.c.l.b16 %v419
      %v1095 = vunpack.c.h.b16 %v419
      %v1096 = vunpack.c.l.b16 %v420
      %v1097 = vunpack.c.h.b16 %v420
      %v1098 = vunpack.c.l.b16 %v421
      %v1099 = vunpack.c.h.b16 %v421
      %v1100 = vunpack.c.l.b16 %v422
      %v1101 = vunpack.c.h.b16 %v422
      %v1102 = vunpack.c.l.b16 %v423
      %v1103 = vunpack.c.h.b16 %v423
      %v1104 = vunpack.c.l.b16 %v424
      %v1105 = vunpack.c.h.b16 %v424
      %v1106 = vunpack.c.l.b16 %v425
      %v1107 = vunpack.c.h.b16 %v425
      %v1108 = vunpack.c.l.b16 %v426
      %v1109 = vunpack.c.h.b16 %v426
      %v1110 = vunpack.c.l.b16 %v427
      %v1111 = vunpack.c.h.b16 %v427
      %v1112 = vunpack.c.l.b16 %v428
      %v1113 = vunpack.c.h.b16 %v428
      %v1114 = vunpack.c.l.b16 %v429
      %v1115 = vunpack.c.h.b16 %v429
      %v1116 = vunpack.c.l.b16 %v430
      %v1117 = vunpack.c.h.b16 %v430
      %v1118 = vunpack.c.l.b16 %v431
      %v1119 = vunpack.c.h.b16 %v431
      %v1120 = vunpack.c.l.b16 %v432
      %v1121 = vunpack.c.h.b16 %v432
      %v1122 = vunpack.c.l.b16 %v433
      %v1123 = vunpack.c.h.b16 %v433
      %v1124 = vunpack.c.l.b16 %v434
      %v1125 = vunpack.c.h.b16 %v434
      %v1126 = vunpack.c.l.b16 %v435
      %v1127 = vunpack.c.h.b16 %v435
      %v1128 = vunpack.c.l.b16 %v436
      %v1129 = vunpack.c.h.b16 %v436
      %v1130 = vunpack.c.l.b16 %v437
      %v1131 = vunpack.c.h.b16 %v437
      %v1132 = vunpack.c.l.b16 %v438
      %v1133 = vunpack.c.h.b16 %v438
      %v1134 = vunpack.c.l.b16 %v439
      %v1135 = vunpack.c.h.b16 %v439
      %v1136 = vunpack.c.l.b16 %v440
      %v1137 = vunpack.c.h.b16 %v440
      %v1138 = vunpack.c.l.b16 %v441
      %v1139 = vunpack.c.h.b16 %v441
      %v1140 = vunpack.c.l.b16 %v442
      %v1141 = vunpack.c.h.b16 %v442
      %v1142 = vunpack.c.l.b16 %v443
      %v1143 = vunpack.c.h.b16 %v443
      %v1144 = vunpack.c.l.b16 %v444
      %v1145 = vunpack.c.h.b16 %v444
      %v1146 = vunpack.c.l.b16 %v445
      %v1147 = vunpack.c.h.b16 %v445
      %v1148 = vunpack.c.l.b16 %v446
      %v1149 = vunpack.c.h.b16 %v446
      %v1150 = vunpack.c.l.b16 %v447
      %v1151 = vunpack.c.h.b16 %v447
      %v1152 = vunpack.c.l.b16 %v448
      %v1153 = vunpack.c.h.b16 %v448
      %v1154 = vunpack.c.l.b16 %v449
      %v1155 = vunpack.c.h.b16 %v449
      %v1156 = vunpack.c.l.b16 %v450
      %v1157 = vunpack.c.h.b16 %v450
      %v1158 = vunpack.c.l.b16 %v451
      %v1159 = vunpack.c.h.b16 %v451
      %v1160 = vunpack.c.l.b16 %v452
      %v1161 = vunpack.c.h.b16 %v452
      %v1162 = vunpack.c.l.b16 %v453
      %v1163 = vunpack.c.h.b16 %v453
      %v1164 = vunpack.c.l.b16 %v454
      %v1165 = vunpack.c.h.b16 %v454
      %v1166 = vunpack.c.l.b16 %v455
      %v1167 = vunpack.c.h.b16 %v455
      %v1168 = vunpack.c.l.b16 %v456
      %v1169 = vunpack.c.h.b16 %v456
      %v1170 = vunpack.c.l.b16 %v457
      %v1171 = vunpack.c.h.b16 %v457
      %v1172 = vunpack.c.l.b16 %v458
      %v1173 = vunpack.c.h.b16 %v458
      %v1174 = vunpack.c.l.b16 %v459
      %v1175 = vunpack.c.h.b16 %v459
      %v1176 = vunpack.c.l.b16 %v460
      %v1177 = vunpack.c.h.b16 %v460
      %v1178 = vunpack.c.l.b16 %v461
      %v1179 = vunpack.c.h.b16 %v461
      %v1180 = vunpack.c.l.b16 %v462
      %v1181 = vunpack.c.h.b16 %v462
      %v1182 = vunpack.c.l.b16 %v463
      %v1183 = vunpack.c.h.b16 %v463
      %v1184 = vunpack.c.l.b16 %v464
      %v1185 = vunpack.c.h.b16 %v464
      %v1186 = vunpack.c.l.b16 %v465
      %v1187 = vunpack.c.h.b16 %v465
      %v1188 = vunpack.c.l.b16 %v466
      %v1189 = vunpack.c.h.b16 %v466
      %v1190 = vunpack.c.l.b16 %v467
      %v1191 = vunpack.c.h.b16 %v467
      %v1192 = vunpack.c.l.b16 %v468
      %v1193 = vunpack.c.h.b16 %v468
      %v1194 = vunpack.c.l.b16 %v469
      %v1195 = vunpack.c.h.b16 %v469
      %v1196 = vunpack.c.l.b16 %v470
      %v1197 = vunpack.c.h.b16 %v470
      %v1198 = vunpack.c.l.b16 %v471
      %v1199 = vunpack.c.h.b16 %v471
      %v1200 = vunpack.c.l.b16 %v472
      %v1201 = vunpack.c.h.b16 %v472
      %v1202 = vunpack.c.l.b16 %v473
      %v1203 = vunpack.c.h.b16 %v473
      %v1204 = vunpack.c.l.b16 %v474
      %v1205 = vunpack.c.h.b16 %v474
      %v1206 = vunpack.c.l.b16 %v475
      %v1207 = vunpack.c.h.b16 %v475
      %v1208 = vunpack.c.l.b16 %v476
      %v1209 = vunpack.c.h.b16 %v476
      %v1210 = vunpack.c.l.b16 %v477
      %v1211 = vunpack.c.h.b16 %v477
      %v1212 = vunpack.c.l.b16 %v478
      %v1213 = vunpack.c.h.b16 %v478
      %v1214 = vunpack.c.l.b16 %v479
      %v1215 = vunpack.c.h.b16 %v479
      %v1216 = vunpack.c.l.b16 %v480
      %v1217 = vunpack.c.h.b16 %v480
      %v1218 = vunpack.c.l.b16 %v481
      %v1219 = vunpack.c.h.b16 %v481
      %v1220 = vunpack.c.l.b16 %v482
      %v1221 = vunpack.c.h.b16 %v482
      %v1222 = vunpack.c.l.b16 %v483
      %v1223 = vunpack.c.h.b16 %v483
      %v1224 = vunpack.c.l.b16 %v484
      %v1225 = vunpack.c.h.b16 %v484
      %v1226 = vunpack.c.l.b16 %v485
      %v1227 = vunpack.c.h.b16 %v485
      %v1228 = vunpack.c.l.b16 %v486
      %v1229 = vunpack.c.h.b16 %v486
      %v1230 = vunpack.c.l.b16 %v487
      %v1231 = vunpack.c.h.b16 %v487
      %v1232 = vunpack.c.l.b16 %v488
      %v1233 = vunpack.c.h.b16 %v488
      %v1234 = vunpack.c.l.b16 %v489
      %v1235 = vunpack.c.h.b16 %v489
      %v1236 = vunpack.c.l.b16 %v490
      %v1237 = vunpack.c.h.b16 %v490
      %v1238 = vunpack.c.l.b16 %v491
      %v1239 = vunpack.c.h.b16 %v491
      %v1240 = vunpack.c.l.b16 %v492
      %v1241 = vunpack.c.h.b16 %v492
      %v1242 = vunpack.c.l.b16 %v493
      %v1243 = vunpack.c.h.b16 %v493
      %v1244 = vunpack.c.l.b16 %v494
      %v1245 = vunpack.c.h.b16 %v494
      %v1246 = vunpack.c.l.b16 %v495
      %v1247 = vunpack.c.h.b16 %v495
      %v1248 = vunpack.c.l.b16 %v496
      %v1249 = vunpack.c.h.b16 %v496
      %v1250 = vunpack.c.l.b16 %v497
      %v1251 = vunpack.c.h.b16 %v497
      %v1252 = vunpack.c.l.b16 %v498
      %v1253 = vunpack.c.h.b16 %v498
      %v1254 = vunpack.c.l.b16 %v499
      %v1255 = vunpack.c.h.b16 %v499
      %v1256 = vunpack.c.l.b16 %v500
      %v1257 = vunpack.c.h.b16 %v500
      %v1258 = vunpack.c.l.b16 %v501
      %v1259 = vunpack.c.h.b16 %v501
      %v1260 = vunpack.c.l.b16 %v502
      %v1261 = vunpack.c.h.b16 %v502
      %v1262 = vunpack.c.l.b16 %v503
      %v1263 = vunpack.c.h.b16 %v503
      %v1264 = vunpack.c.l.b16 %v504
      %v1265 = vunpack.c.h.b16 %v504
      %v1266 = vunpack.c.l.b16 %v505
      %v1267 = vunpack.c.h.b16 %v505
      %v1268 = vunpack.c.l.b16 %v506
      %v1269 = vunpack.c.h.b16 %v506
      %v1270 = vunpack.c.l.b16 %v507
      %v1271 = vunpack.c.h.b16 %v507
      %v1272 = vunpack.c.l.b16 %v508
      %v1273 = vunpack.c.h.b16 %v508
      %v1274 = vunpack.c.l.b16 %v509
      %v1275 = vunpack.c.h.b16 %v509
      %v1276 = vunpack.c.l.b16 %v510
      %v1277 = vunpack.c.h.b16 %v510
      %v1278 = vunpack.c.l.b16 %v511
      %v1279 = vunpack.c.h.b16 %v511
      %v1280 = vunpack.c.l.b16 %v512
      %v1281 = vunpack.c.h.b16 %v512
      %v1282 = vunpack.c.l.b16 %v513
      %v1283 = vunpack.c.h.b16 %v513
      %v1284 = vunpack.c.l.b16 %v514
      %v1285 = vunpack.c.h.b16 %v514
      %v1286 = vunpack.c.l.b16 %v515
      %v1287 = vunpack.c.h.b16 %v515
      %v1288 = vunpack.c.l.b16 %v516
      %v1289 = vunpack.c.h.b16 %v516
      %v1290 = vunpack.c.l.b16 %v517
      %v1291 = vunpack.c.h.b16 %v517
      %v1292 = vunpack.c.l.b16 %v518
      %v1293 = vunpack.c.h.b16 %v518
      %v1294 = vunpack.c.l.b16 %v519
      %v1295 = vunpack.c.h.b16 %v519
      %v1296 = vunpack.c.l.b16 %v520
      %v1297 = vunpack.c.h.b16 %v520
      %v1298 = vunpack.c.l.b16 %v521
      %v1299 = vunpack.c.h.b16 %v521
      %v1300 = vunpack.c.l.b16 %v522
      %v1301 = vunpack.c.h.b16 %v522
      %v1302 = vunpack.c.l.b16 %v523
      %v1303 = vunpack.c.h.b16 %v523
      %v1304 = vunpack.c.l.b16 %v524
      %v1305 = vunpack.c.h.b16 %v524
      %v1306 = vunpack.c.l.b16 %v525
      %v1307 = vunpack.c.h.b16 %v525
      %v1308 = vunpack.c.l.b16 %v526
      %v1309 = vunpack.c.h.b16 %v526
      %v1310 = vunpack.c.l.b16 %v527
      %v1311 = vunpack.c.h.b16 %v527
      %v1312 = vunpack.c.l.b16 %v528
      %v1313 = vunpack.c.h.b16 %v528
      %v1314 = vunpack.c.l.b16 %v529
      %v1315 = vunpack.c.h.b16 %v529
      %v1316 = vunpack.c.l.b16 %v530
      %v1317 = vunpack.c.h.b16 %v530
      %v1318 = vunpack.c.l.b16 %v531
      %v1319 = vunpack.c.h.b16 %v531
      %v1320 = vunpack.c.l.b16 %v532
      %v1321 = vunpack.c.h.b16 %v532
      %v1322 = vunpack.c.l.b16 %v533
      %v1323 = vunpack.c.h.b16 %v533
      %v1324 = vunpack.c.l.b16 %v534
      %v1325 = vunpack.c.h.b16 %v534
      %v1326 = vunpack.c.l.b16 %v535
      %v1327 = vunpack.c.h.b16 %v535
      %v1328 = vunpack.c.l.b16 %v536
      %v1329 = vunpack.c.h.b16 %v536
      %v1330 = vunpack.c.l.b16 %v537
      %v1331 = vunpack.c.h.b16 %v537
      %v1332 = vunpack.c.l.b16 %v538
      %v1333 = vunpack.c.h.b16 %v538
      %v1334 = vunpack.c.l.b16 %v539
      %v1335 = vunpack.c.h.b16 %v539
      %v1336 = vunpack.c.l.b16 %v540
      %v1337 = vunpack.c.h.b16 %v540
      %v1338 = vunpack.c.l.b16 %v541
      %v1339 = vunpack.c.h.b16 %v541
      %v1340 = vunpack.c.l.b16 %v542
      %v1341 = vunpack.c.h.b16 %v542
      %v1342 = vunpack.c.l.b16 %v543
      %v1343 = vunpack.c.h.b16 %v543
      %v1344 = vunpack.c.l.b16 %v544
      %v1345 = vunpack.c.h.b16 %v544
      %v1346 = vunpack.c.l.b16 %v545
      %v1347 = vunpack.c.h.b16 %v545
      %v1348 = vunpack.c.l.b16 %v546
      %v1349 = vunpack.c.h.b16 %v546
      %v1350 = vunpack.c.l.b16 %v547
      %v1351 = vunpack.c.h.b16 %v547
      %v1352 = vunpack.c.l.b16 %v548
      %v1353 = vunpack.c.h.b16 %v548
      %v1354 = vunpack.c.l.b16 %v549
      %v1355 = vunpack.c.h.b16 %v549
      %v1356 = vunpack.c.l.b16 %v550
      %v1357 = vunpack.c.h.b16 %v550
      %v1358 = vunpack.c.l.b16 %v551
      %v1359 = vunpack.c.h.b16 %v551
      %v1360 = vunpack.c.l.b16 %v552
      %v1361 = vunpack.c.h.b16 %v552
      %v1362 = vunpack.c.l.b16 %v553
      %v1363 = vunpack.c.h.b16 %v553
      %v1364 = vunpack.c.l.b16 %v554
      %v1365 = vunpack.c.h.b16 %v554
      %v1366 = vunpack.c.l.b16 %v555
      %v1367 = vunpack.c.h.b16 %v555
      %v1368 = vunpack.c.l.b16 %v556
      %v1369 = vunpack.c.h.b16 %v556
      %v1370 = vunpack.c.l.b16 %v557
      %v1371 = vunpack.c.h.b16 %v557
      %v1372 = vunpack.c.l.b16 %v558
      %v1373 = vunpack.c.h.b16 %v558
      %v1374 = vunpack.c.l.b16 %v559
      %v1375 = vunpack.c.h.b16 %v559
      %v1376 = vunpack.c.l.b16 %v560
      %v1377 = vunpack.c.h.b16 %v560
      %v1378 = vunpack.c.l.b16 %v561
      %v1379 = vunpack.c.h.b16 %v561
      %v1380 = vunpack.c.l.b16 %v562
      %v1381 = vunpack.c.h.b16 %v562
      %v1382 = vunpack.c.l.b16 %v563
      %v1383 = vunpack.c.h.b16 %v563
      %v1384 = vunpack.c.l.b16 %v564
      %v1385 = vunpack.c.h.b16 %v564
      %v1386 = vunpack.c.l.b16 %v565
      %v1387 = vunpack.c.h.b16 %v565
      %v1388 = vunpack.c.l.b16 %v566
      %v1389 = vunpack.c.h.b16 %v566
      %v1390 = vunpack.c.l.b16 %v567
      %v1391 = vunpack.c.h.b16 %v567
      %v1392 = vunpack.c.l.b16 %v568
      %v1393 = vunpack.c.h.b16 %v568
      %v1394 = vunpack.c.l.b16 %v569
      %v1395 = vunpack.c.h.b16 %v569
      %v1396 = vunpack.c.l.b16 %v570
      %v1397 = vunpack.c.h.b16 %v570
      %v1398 = vunpack.c.l.b16 %v571
      %v1399 = vunpack.c.h.b16 %v571
      %v1400 = vunpack.c.l.b16 %v572
      %v1401 = vunpack.c.h.b16 %v572
      %v1402 = vunpack.c.l.b16 %v573
      %v1403 = vunpack.c.h.b16 %v573
      %v1404 = vunpack.c.l.b16 %v574
      %v1405 = vunpack.c.h.b16 %v574
      %v1406 = vunpack.c.l.b16 %v575
      %v1407 = vunpack.c.h.b16 %v575
      %v1408 = vunpack.c.l.b16 %v576
      %v1409 = vunpack.c.h.b16 %v576
      %v1410 = vunpack.c.l.b16 %v577
      %v1411 = vunpack.c.h.b16 %v577
      %v1412 = vunpack.c.l.b16 %v578
      %v1413 = vunpack.c.h.b16 %v578
      %v1414 = vunpack.c.l.b16 %v579
      %v1415 = vunpack.c.h.b16 %v579
      %v1416 = vunpack.c.l.b16 %v580
      %v1417 = vunpack.c.h.b16 %v580
      %v1418 = vunpack.c.l.b16 %v581
      %v1419 = vunpack.c.h.b16 %v581
      %v1420 = vunpack.c.l.b16 %v582
      %v1421 = vunpack.c.h.b16 %v582
      %v1422 = vunpack.c.l.b16 %v583
      %v1423 = vunpack.c.h.b16 %v583
      %v1424 = vunpack.c.l.b16 %v584
      %v1425 = vunpack.c.h.b16 %v584
      %v1426 = vunpack.c.l.b16 %v585
      %v1427 = vunpack.c.h.b16 %v585
      %v1428 = vunpack.c.l.b16 %v586
      %v1429 = vunpack.c.h.b16 %v586
      %v1430 = vunpack.c.l.b16 %v587
      %v1431 = vunpack.c.h.b16 %v587
      %v1432 = vpack.c.b16 %v1044, %v1040
      %v1433 = vpack.c.b16 %v1045, %v1041
      %v1434 = vpack.c.b16 %v1046, %v1042
      %v1435 = vpack.c.b16 %v1047, %v1043
      %v1436 = vpack.c.b16 %v1052, %v1048
      %v1437 = vpack.c.b16 %v1053, %v1049
      %v1438 = vpack.c.b16 %v1054, %v1050
      %v1439 = vpack.c.b16 %v1055, %v1051
      %v1440 = vpack.c.b16 %v1060, %v1056
      %v1441 = vpack.c.b16 %v1061, %v1057
      %v1442 = vpack.c.b16 %v1062, %v1058
      %v1443 = vpack.c.b16 %v1063, %v1059
      %v1444 = vpack.c.b16 %v1068, %v1064
      %v1445 = vpack.c.b16 %v1069, %v1065
      %v1446 = vpack.c.b16 %v1070, %v1066
      %v1447 = vpack.c.b16 %v1071, %v1067
      %v1448 = vpack.c.b16 %v1076, %v1072
      %v1449 = vpack.c.b16 %v1077, %v1073
      %v1450 = vpack.c.b16 %v1078, %v1074
      %v1451 = vpack.c.b16 %v1079, %v1075
      %v1452 = vpack.c.b16 %v1084, %v1080
      %v1453 = vpack.c.b16 %v1085, %v1081
      %v1454 = vpack.c.b16 %v1086, %v1082
      %v1455 = vpack.c.b16 %v1087, %v1083
      %v1456 = vpack.c.b16 %v1092, %v1088
      %v1457 = vpack.c.b16 %v1093, %v1089
      %v1458 = vpack.c.b16 %v1094, %v1090
      %v1459 = vpack.c.b16 %v1095, %v1091
      %v1460 = vpack.c.b16 %v1100, %v1096
      %v1461 = vpack.c.b16 %v1101, %v1097
      %v1462 = vpack.c.b16 %v1102, %v1098
      %v1463 = vpack.c.b16 %v1103, %v1099
      %v1464 = vpack.c.b16 %v1108, %v1104
      %v1465 = vpack.c.b16 %v1109, %v1105
      %v1466 = vpack.c.b16 %v1110, %v1106
      %v1467 = vpack.c.b16 %v1111, %v1107
      %v1468 = vpack.c.b16 %v1116, %v1112
      %v1469 = vpack.c.b16 %v1117, %v1113
      %v1470 = vpack.c.b16 %v1118, %v1114
      %v1471 = vpack.c.b16 %v1119, %v1115
      %v1472 = vpack.c.b16 %v1124, %v1120
      %v1473 = vpack.c.b16 %v1125, %v1121
      %v1474 = vpack.c.b16 %v1126, %v1122
      %v1475 = vpack.c.b16 %v1127, %v1123
      %v1476 = vpack.c.b16 %v1132, %v1128
      %v1477 = vpack.c.b16 %v1133, %v1129
      %v1478 = vpack.c.b16 %v1134, %v1130
      %v1479 = vpack.c.b16 %v1135, %v1131
      %v1480 = vpack.c.b16 %v1140, %v1136
      %v1481 = vpack.c.b16 %v1141, %v1137
      %v1482 = vpack.c.b16 %v1142, %v1138
      %v1483 = vpack.c.b16 %v1143, %v1139
      %v1484 = vpack.c.b16 %v1148, %v1144
      %v1485 = vpack.c.b16 %v1149, %v1145
      %v1486 = vpack.c.b16 %v1150, %v1146
      %v1487 = vpack.c.b16 %v1151, %v1147
      %v1488 = vpack.c.b16 %v1156, %v1152
      %v1489 = vpack.c.b16 %v1157, %v1153
      %v1490 = vpack.c.b16 %v1158, %v1154
      %v1491 = vpack.c.b16 %v1159, %v1155
      %v1492 = vpack.c.b16 %v1164, %v1160
      %v1493 = vpack.c.b16 %v1165, %v1161
      %v1494 = vpack.c.b16 %v1166, %v1162
      %v1495 = vpack.c.b16 %v1167, %v1163
      %v1496 = vpack.c.b16 %v1172, %v1168
      %v1497 = vpack.c.b16 %v1173, %v1169
      %v1498 = vpack.c.b16 %v1174, %v1170
      %v1499 = vpack.c.b16 %v1175, %v1171
      %v1500 = vpack.c.b16 %v1180, %v1176
      %v1501 = vpack.c.b16 %v1181, %v1177
      %v1502 = vpack.c.b16 %v1182, %v1178
      %v1503 = vpack.c.b16 %v1183, %v1179
      %v1504 = vpack.c.b16 %v1188, %v1184
      %v1505 = vpack.c.b16 %v1189, %v1185
      %v1506 = vpack.c.b16 %v1190, %v1186
      %v1507 = vpack.c.b16 %v1191, %v1187
      %v1508 = vpack.c.b16 %v1196, %v1192
      %v1509 = vpack.c.b16 %v1197, %v1193
      %v1510 = vpack.c.b16 %v1198, %v1194
      %v1511 = vpack.c.b16 %v1199, %v1195
      %v1512 = vpack.c.b16 %v1204, %v1200
      %v1513 = vpack.c.b16 %v1205, %v1201
      %v1514 = vpack.c.b16 %v1206, %v1202
      %v1515 = vpack.c.b16 %v1207, %v1203
      %v1516 = vpack.c.b16 %v1212, %v1208
      %v1517 = vpack.c.b16 %v1213, %v1209
      %v1518 = vpack.c.b16 %v1214, %v1210
      %v1519 = vpack.c.b16 %v1215, %v1211
      %v1520 = vpack.c.b16 %v1220, %v1216
      %v1521 = vpack.c.b16 %v1221, %v1217
      %v1522 = vpack.c.b16 %v1222, %v1218
      %v1523 = vpack.c.b16 %v1223, %v1219
      %v1524 = vpack.c.b16 %v1228, %v1224
      %v1525 = vpack.c.b16 %v1229, %v1225
      %v1526 = vpack.c.b16 %v1230, %v1226
      %v1527 = vpack.c.b16 %v1231, %v1227
      %v1528 = vpack.c.b16 %v1236, %v1232
      %v1529 = vpack.c.b16 %v1237, %v1233
      %v1530 = vpack.c.b16 %v1238, %v1234
      %v1531 = vpack.c.b16 %v1239, %v1235
      %v1532 = vpack.c.b16 %v1244, %v1240
      %v1533 = vpack.c.b16 %v1245, %v1241
      %v1534 = vpack.c.b16 %v1246, %v1242
      %v1535 = vpack.c.b16 %v1247, %v1243
      %v1536 = vpack.c.b16 %v1252, %v1248
      %v1537 = vpack.c.b16 %v1253, %v1249
      %v1538 = vpack.c.b16 %v1254, %v1250
      %v1539 = vpack.c.b16 %v1255, %v1251
      %v1540 = vpack.c.b16 %v1260, %v1256
      %v1541 = vpack.c.b16 %v1261, %v1257
      %v1542 = vpack.c.b16 %v1262, %v1258
      %v1543 = vpack.c.b16 %v1263, %v1259
      %v1544 = vpack.c.b16 %v1268, %v1264
      %v1545 = vpack.c.b16 %v1269, %v1265
      %v1546 = vpack.c.b16 %v1270, %v1266
      %v1547 = vpack.c.b16 %v1271, %v1267
      %v1548 = vpack.c.b16 %v1276, %v1272
      %v1549 = vpack.c.b16 %v1277, %v1273
      %v1550 = vpack.c.b16 %v1278, %v1274
      %v1551 = vpack.c.b16 %v1279, %v1275
      %v1552 = vpack.c.b16 %v1284, %v1280
      %v1553 = vpack.c.b16 %v1285, %v1281
      %v1554 = vpack.c.b16 %v1286, %v1282
      %v1555 = vpack.c.b16 %v1287, %v1283
      %v1556 = vpack.c.b16 %v1292, %v1288
      %v1557 = vpack.c.b16 %v1293, %v1289
      %v1558 = vpack.c.b16 %v1294, %v1290
      %v1559 = vpack.c.b16 %v1295, %v1291
      %v1560 = vpack.c.b16 %v1300, %v1296
      %v1561 = vpack.c.b16 %v1301, %v1297
      %v1562 = vpack.c.b16 %v1302, %v1298
      %v1563 = vpack.c.b16 %v1303, %v1299
      %v1564 = vpack.c.b16 %v1308, %v1304
      %v1565 = vpack.c.b16 %v1309, %v1305
      %v1566 = vpack.c.b16 %v1310, %v1306
      %v1567 = vpack.c.b16 %v1311, %v1307
      %v1568 = vpack.c.b16 %v1316, %v1312
      %v1569 = vpack.c.b16 %v1317, %v1313
      %v1570 = vpack.c.b16 %v1318, %v1314
      %v1571 = vpack.c.b16 %v1319, %v1315
      %v1572 = vpack.c.b16 %v1324, %v1320
      %v1573 = vpack.c.b16 %v1325, %v1321
      %v1574 = vpack.c.b16 %v1326, %v1322
      %v1575 = vpack.c.b16 %v1327, %v1323
      %v1576 = vpack.c.b16 %v1332, %v1328
      %v1577 = vpack.c.b16 %v1333, %v1329
      %v1578 = vpack.c.b16 %v1334, %v1330
      %v1579 = vpack.c.b16 %v1335, %v1331
      %v1580 = vpack.c.b16 %v1340, %v1336
      %v1581 = vpack.c.b16 %v1341, %v1337
      %v1582 = vpack.c.b16 %v1342, %v1338
      %v1583 = vpack.c.b16 %v1343, %v1339
      %v1584 = vpack.c.b16 %v1348, %v1344
      %v1585 = vpack.c.b16 %v1349, %v1345
      %v1586 = vpack.c.b16 %v1350, %v1346
      %v1587 = vpack.c.b16 %v1351, %v1347
      %v1588 = vpack.c.b16 %v1356, %v1352
      %v1589 = vpack.c.b16 %v1357, %v1353
      %v1590 = vpack.c.b16 %v1358, %v1354
      %v1591 = vpack.c.b16 %v1359, %v1355
      %v1592 = vpack.c.b16 %v1364, %v1360
      %v1593 = vpack.c.b16 %v1365, %v1361
      %v1594 = vpack.c.b16 %v1366, %v1362
      %v1595 = vpack.c.b16 %v1367, %v1363
      %v1596 = vpack.c.b16 %v1372, %v1368
      %v1597 = vpack.c.b16 %v1373, %v1369
      %v1598 = vpack.c.b16 %v1374, %v1370
      %v1599 = vpack.c.b16 %v1375, %v1371
      %v1600 = vpack.c.b16 %v1380, %v1376
      %v1601 = vpack.c.b16 %v1381, %v1377
      %v1602 = vpack.c.b16 %v1382, %v1378
      %v1603 = vpack.c.b16 %v1383, %v1379
      %v1604 = vpack.c.b16 %v1388, %v1384
      %v1605 = vpack.c.b16 %v1389, %v1385
      %v1606 = vpack.c.b16 %v1390, %v1386
      %v1607 = vpack.c.b16 %v1391, %v1387
      %v1608 = vpack.c.b16 %v1396, %v1392
      %v1609 = vpack.c.b16 %v1397, %v1393
      %v1610 = vpack.c.b16 %v1398, %v1394
      %v1611 = vpack.c.b16 %v1399, %v1395
      %v1612 = vpack.c.b16 %v1404, %v1400
      %v1613 = vpack.c.b16 %v1405, %v1401
      %v1614 = vpack.c.b16 %v1406, %v1402
      %v1615 = vpack.c.b16 %v1407, %v1403
      %v1616 = vpack.c.b16 %v1412, %v1408
      %v1617 = vpack.c.b16 %v1413, %v1409
      %v1618 = vpack.c.b16 %v1414, %v1410
      %v1619 = vpack.c.b16 %v1415, %v1411
      %v1620 = vpack.c.b16 %v1420, %v1416
      %v1621 = vpack.c.b16 %v1421, %v1417
      %v1622 = vpack.c.b16 %v1422, %v1418
      %v1623 = vpack.c.b16 %v1423, %v1419
      %v1624 = vpack.c.b16 %v1428, %v1424
      %v1625 = vpack.c.b16 %v1429, %v1425
      %v1626 = vpack.c.b16 %v1430, %v1426
      %v1627 = vpack.c.b16 %v1431, %v1427
      %vm1824 = vcmask 130048
      %v1826 = vsel %vm1824, %v759, 0
      %v1829 = vsel %vm1824, %v766, 0
      %v1832 = vsel %vm1824, %v773, 0
      %v1835 = vsel %vm1824, %v780, 0
      %v1838 = vsel %vm1824, %v787, 0
      %v1841 = vsel %vm1824, %v794, 0
      %v1844 = vsel %vm1824, %v801, 0
      %1846 = vmatprep.subr.bf16.mxu0 %v1433
      %1847 = vmatpush1.bf16.msra.mxu0 %v1432
      %1848 = vmatprep.subr.bf16.mxu0 %v1437
      %1849 = vmatpush1.bf16.msra.mxu0 %v1436
      %1850 = vmatprep.subr.bf16.mxu0 %v1441
      %1851 = vmatpush1.bf16.msra.mxu0 %v1440
      %1852 = vmatprep.subr.bf16.mxu0 %v1445
      %1853 = vmatpush1.bf16.msra.mxu0 %v1444
      %1854 = vmatprep.subr.bf16.mxu0 %v1449
      %1855 = vmatpush1.bf16.msra.mxu0 %v1448
      %1856 = vmatprep.subr.bf16.mxu0 %v1453
      %1857 = vmatpush1.bf16.msra.mxu0 %v1452
      %1858 = vmatprep.subr.bf16.mxu0 %v1457
      %1859 = vmatpush1.bf16.msra.mxu0 %v1456
      %1860 = vmatprep.subr.bf16.mxu0 %v1461
      %1861 = vmatpush1.bf16.msra.mxu0 %v1460
      %1862 = vmatprep.subr.bf16.mxu0 %v1465
      %1863 = vmatpush1.bf16.msra.mxu0 %v1464
      %1864 = vmatprep.subr.bf16.mxu0 %v1469
      %1865 = vmatpush1.bf16.msra.mxu0 %v1468
      %1866 = vmatprep.subr.bf16.mxu0 %v1473
      %1867 = vmatpush1.bf16.msra.mxu0 %v1472
      %1868 = vmatprep.subr.bf16.mxu0 %v1477
      %1869 = vmatpush1.bf16.msra.mxu0 %v1476
      %1870 = vmatprep.subr.bf16.mxu0 %v1481
      %1871 = vmatpush1.bf16.msra.mxu0 %v1480
      %1872 = vmatprep.subr.bf16.mxu0 %v1485
      %1873 = vmatpush1.bf16.msra.mxu0 %v1484
      %1874 = vmatprep.subr.bf16.mxu0 %v1489
      %1875 = vmatpush1.bf16.msra.mxu0 %v1488
      %1876 = vmatprep.subr.bf16.mxu0 %v1493
      %1877 = vmatpush1.bf16.msra.mxu0 %v1492
      %1878 = vmatprep.mubr.bf16.mxu0 %v754
      %1879 = vmatmul.mubr.bf16.gmra.mrb[0].mxu0 %v753
      %v1880 = vpop.f32.mrb[0].mxu0
      %v1881 = vadd.f32 %v593, %v1880
      %v1882 = vpop.f32.mrb[0].mxu0
      %v1883 = vadd.f32 %v597, %v1882
      %v1884 = vpop.f32.mrb[0].mxu0
      %v1885 = vadd.f32 %v593, %v1884
      %v1886 = vpop.f32.mrb[0].mxu0
      %v1887 = vadd.f32 %v597, %v1886
      %1888 = vmatprep.mubr.bf16.mxu0 %v761
      %1889 = vmatmul.mubr.bf16.gmra.mrb[0].mxu0 %v760
      %v1890 = vpop.f32.mrb[0].mxu0
      %v1891 = vadd.f32 %v593, %v1890
      %v1892 = vpop.f32.mrb[0].mxu0
      %v1893 = vadd.f32 %v597, %v1892
      %v1894 = vpop.f32.mrb[0].mxu0
      %v1895 = vadd.f32 %v593, %v1894
      %v1896 = vpop.f32.mrb[0].mxu0
      %v1897 = vadd.f32 %v597, %v1896
      %1898 = vmatprep.mubr.bf16.mxu0 %v768
      %1899 = vmatmul.mubr.bf16.gmra.mrb[0].mxu0 %v767
      %v1900 = vpop.f32.mrb[0].mxu0
      %v1901 = vadd.f32 %v593, %v1900
      %v1902 = vpop.f32.mrb[0].mxu0
      %v1903 = vadd.f32 %v597, %v1902
      %v1904 = vpop.f32.mrb[0].mxu0
      %v1905 = vadd.f32 %v593, %v1904
      %v1906 = vpop.f32.mrb[0].mxu0
      %v1907 = vadd.f32 %v597, %v1906
      %1908 = vmatprep.mubr.bf16.mxu0 %v775
      %1909 = vmatmul.mubr.bf16.gmra.mrb[0].mxu0 %v774
      %v1910 = vpop.f32.mrb[0].mxu0
      %v1911 = vadd.f32 %v593, %v1910
      %v1912 = vpop.f32.mrb[0].mxu0
      %v1913 = vadd.f32 %v597, %v1912
      %v1914 = vpop.f32.mrb[0].mxu0
      %v1915 = vadd.f32 %v593, %v1914
      %v1916 = vpop.f32.mrb[0].mxu0
      %v1917 = vadd.f32 %v597, %v1916
      %1918 = vmatprep.mubr.bf16.mxu0 %v782
      %1919 = vmatmul.mubr.bf16.gmra.mrb[0].mxu0 %v781
      %v1920 = vpop.f32.mrb[0].mxu0
      %v1921 = vadd.f32 %v593, %v1920
      %v1922 = vpop.f32.mrb[0].mxu0
      %v1923 = vadd.f32 %v597, %v1922
      %v1924 = vpop.f32.mrb[0].mxu0
      %v1925 = vadd.f32 %v593, %v1924
      %v1926 = vpop.f32.mrb[0].mxu0
      %v1927 = vadd.f32 %v597, %v1926
      %1928 = vmatprep.mubr.bf16.mxu0 %v789
      %1929 = vmatmul.mubr.bf16.gmra.mrb[0].mxu0 %v788
      %v1930 = vpop.f32.mrb[0].mxu0
      %v1931 = vadd.f32 %v593, %v1930
      %v1932 = vpop.f32.mrb[0].mxu0
      %v1933 = vadd.f32 %v597, %v1932
      %v1934 = vpop.f32.mrb[0].mxu0
      %v1935 = vadd.f32 %v593, %v1934
      %v1936 = vpop.f32.mrb[0].mxu0
      %v1937 = vadd.f32 %v597, %v1936
      %1938 = vmatprep.mubr.bf16.mxu0 %v796
      %1939 = vmatmul.mubr.bf16.gmra.mrb[0].mxu0 %v795
      %v1940 = vpop.f32.mrb[0].mxu0
      %v1941 = vadd.f32 %v593, %v1940
      %v1942 = vpop.f32.mrb[0].mxu0
      %v1943 = vadd.f32 %v597, %v1942
      %v1944 = vpop.f32.mrb[0].mxu0
      %v1945 = vpop.f32.mrb[0].mxu0
      %1946 = vdwg.mxu0
      %1947 = vmatprep.subr.bf16.mxu0 %v1497
      %1948 = vmatpush1.bf16.msra.mxu0 %v1496
      %1949 = vmatprep.subr.bf16.mxu0 %v1501
      %1950 = vmatpush1.bf16.msra.mxu0 %v1500
      %1951 = vmatprep.subr.bf16.mxu0 %v1505
      %1952 = vmatpush1.bf16.msra.mxu0 %v1504
      %1953 = vmatprep.subr.bf16.mxu0 %v1509
      %1954 = vmatpush1.bf16.msra.mxu0 %v1508
      %1955 = vmatprep.subr.bf16.mxu0 %v1513
      %1956 = vmatpush1.bf16.msra.mxu0 %v1512
      %1957 = vmatprep.subr.bf16.mxu0 %v1517
      %1958 = vmatpush1.bf16.msra.mxu0 %v1516
      %1959 = vmatprep.subr.bf16.mxu0 %v1521
      %1960 = vmatpush1.bf16.msra.mxu0 %v1520
      %1961 = vmatprep.subr.bf16.mxu0 %v1525
      %1962 = vmatpush1.bf16.msra.mxu0 %v1524
      %1963 = vmatprep.subr.bf16.mxu0 %v1529
      %1964 = vmatpush1.bf16.msra.mxu0 %v1528
      %1965 = vmatprep.subr.bf16.mxu0 %v1533
      %1966 = vmatpush1.bf16.msra.mxu0 %v1532
      %1967 = vmatprep.subr.bf16.mxu0 %v1537
      %1968 = vmatpush1.bf16.msra.mxu0 %v1536
      %1969 = vmatprep.subr.bf16.mxu0 %v1541
      %1970 = vmatpush1.bf16.msra.mxu0 %v1540
      %1971 = vmatprep.subr.bf16.mxu0 %v1545
      %1972 = vmatpush1.bf16.msra.mxu0 %v1544
      %1973 = vmatprep.subr.bf16.mxu0 %v1549
      %1974 = vmatpush1.bf16.msra.mxu0 %v1548
      %1975 = vmatprep.subr.bf16.mxu0 %v1553
      %1976 = vmatpush1.bf16.msra.mxu0 %v1552
      %1977 = vmatprep.subr.bf16.mxu0 %v1557
      %1978 = vmatpush1.bf16.msra.mxu0 %v1556
      %1979 = vmatprep.mubr.bf16.mxu0 %v756
      %1980 = vmatmul.mubr.bf16.gmra.mrb[0].mxu0 %v755
      %v1981 = vpop.f32.mrb[0].mxu0
      %v1982 = vadd.f32 %v1881, %v1981
      %v1983 = vpop.f32.mrb[0].mxu0
      %v1984 = vadd.f32 %v1883, %v1983
      %v1985 = vpop.f32.mrb[0].mxu0
      %v1986 = vadd.f32 %v1885, %v1985
      %v1987 = vpop.f32.mrb[0].mxu0
      %v1988 = vadd.f32 %v1887, %v1987
      %1989 = vmatprep.mubr.bf16.mxu0 %v763
      %1990 = vmatmul.mubr.bf16.gmra.mrb[0].mxu0 %v762
      %v1991 = vpop.f32.mrb[0].mxu0
      %v1992 = vadd.f32 %v1891, %v1991
      %v1993 = vpop.f32.mrb[0].mxu0
      %v1994 = vadd.f32 %v1893, %v1993
      %v1995 = vpop.f32.mrb[0].mxu0
      %v1996 = vadd.f32 %v1895, %v1995
      %v1997 = vpop.f32.mrb[0].mxu0
      %v1998 = vadd.f32 %v1897, %v1997
      %1999 = vmatprep.mubr.bf16.mxu0 %v770
      %2000 = vmatmul.mubr.bf16.gmra.mrb[0].mxu0 %v769
      %v2001 = vpop.f32.mrb[0].mxu0
      %v2002 = vadd.f32 %v1901, %v2001
      %v2003 = vpop.f32.mrb[0].mxu0
      %v2004 = vadd.f32 %v1903, %v2003
      %v2005 = vpop.f32.mrb[0].mxu0
      %v2006 = vadd.f32 %v1905, %v2005
      %v2007 = vpop.f32.mrb[0].mxu0
      %v2008 = vadd.f32 %v1907, %v2007
      %2009 = vmatprep.mubr.bf16.mxu0 %v777
      %2010 = vmatmul.mubr.bf16.gmra.mrb[0].mxu0 %v776
      %v2011 = vpop.f32.mrb[0].mxu0
      %v2012 = vadd.f32 %v1911, %v2011
      %v2013 = vpop.f32.mrb[0].mxu0
      %v2014 = vadd.f32 %v1913, %v2013
      %v2015 = vpop.f32.mrb[0].mxu0
      %v2016 = vadd.f32 %v1915, %v2015
      %v2017 = vpop.f32.mrb[0].mxu0
      %v2018 = vadd.f32 %v1917, %v2017
      %2019 = vmatprep.mubr.bf16.mxu0 %v784
      %2020 = vmatmul.mubr.bf16.gmra.mrb[0].mxu0 %v783
      %v2021 = vpop.f32.mrb[0].mxu0
      %v2022 = vadd.f32 %v1921, %v2021
      %v2023 = vpop.f32.mrb[0].mxu0
      %v2024 = vadd.f32 %v1923, %v2023
      %v2025 = vpop.f32.mrb[0].mxu0
      %v2026 = vadd.f32 %v1925, %v2025
      %v2027 = vpop.f32.mrb[0].mxu0
      %v2028 = vadd.f32 %v1927, %v2027
      %2029 = vmatprep.mubr.bf16.mxu0 %v791
      %2030 = vmatmul.mubr.bf16.gmra.mrb[0].mxu0 %v790
      %v2031 = vpop.f32.mrb[0].mxu0
      %v2032 = vadd.f32 %v1931, %v2031
      %v2033 = vpop.f32.mrb[0].mxu0
      %v2034 = vadd.f32 %v1933, %v2033
      %v2035 = vpop.f32.mrb[0].mxu0
      %v2036 = vadd.f32 %v1935, %v2035
      %v2037 = vpop.f32.mrb[0].mxu0
      %v2038 = vadd.f32 %v1937, %v2037
      %2039 = vmatprep.mubr.bf16.mxu0 %v798
      %2040 = vmatmul.mubr.bf16.gmra.mrb[0].mxu0 %v797
      %v2041 = vpop.f32.mrb[0].mxu0
      %v2042 = vadd.f32 %v1941, %v2041
      %v2043 = vpop.f32.mrb[0].mxu0
      %v2044 = vadd.f32 %v1943, %v2043
      %v2045 = vpop.f32.mrb[0].mxu0
      %v2046 = vpop.f32.mrb[0].mxu0
      %2047 = vdwg.mxu0
      %2048 = vmatprep.subr.bf16.mxu0 %v1561
      %2049 = vmatpush1.bf16.msra.mxu0 %v1560
      %2050 = vmatprep.subr.bf16.mxu0 %v1565
      %2051 = vmatpush1.bf16.msra.mxu0 %v1564
      %2052 = vmatprep.subr.bf16.mxu0 %v1569
      %2053 = vmatpush1.bf16.msra.mxu0 %v1568
      %2054 = vmatprep.subr.bf16.mxu0 %v1573
      %2055 = vmatpush1.bf16.msra.mxu0 %v1572
      %2056 = vmatprep.subr.bf16.mxu0 %v1577
      %2057 = vmatpush1.bf16.msra.mxu0 %v1576
      %2058 = vmatprep.subr.bf16.mxu0 %v1581
      %2059 = vmatpush1.bf16.msra.mxu0 %v1580
      %2060 = vmatprep.subr.bf16.mxu0 %v1585
      %2061 = vmatpush1.bf16.msra.mxu0 %v1584
      %2062 = vmatprep.subr.bf16.mxu0 %v1589
      %2063 = vmatpush1.bf16.msra.mxu0 %v1588
      %2064 = vmatprep.subr.bf16.mxu0 %v1593
      %2065 = vmatpush1.bf16.msra.mxu0 %v1592
      %2066 = vmatprep.subr.bf16.mxu0 %v1597
      %2067 = vmatpush1.bf16.msra.mxu0 %v1596
      %2068 = vmatprep.subr.bf16.mxu0 %v1601
      %2069 = vmatpush1.bf16.msra.mxu0 %v1600
      %2070 = vmatprep.subr.bf16.mxu0 %v1605
      %2071 = vmatpush1.bf16.msra.mxu0 %v1604
      %2072 = vmatprep.subr.bf16.mxu0 %v1609
      %2073 = vmatpush1.bf16.msra.mxu0 %v1608
      %2074 = vmatprep.subr.bf16.mxu0 %v1613
      %2075 = vmatpush1.bf16.msra.mxu0 %v1612
      %2076 = vmatprep.subr.bf16.mxu0 %v1617
      %2077 = vmatpush1.bf16.msra.mxu0 %v1616
      %2078 = vmatprep.subr.bf16.mxu0 %v1621
      %2079 = vmatpush1.bf16.msra.mxu0 %v1620
      %2080 = vmatprep.mubr.bf16.mxu0 %v758
      %2081 = vmatmul.mubr.bf16.gmra.mrb[0].mxu0 %v757
      %v2082 = vpop.f32.mrb[0].mxu0
      %v2083 = vadd.f32 %v1982, %v2082
      %v2084 = vpop.f32.mrb[0].mxu0
      %v2085 = vadd.f32 %v1984, %v2084
      %v2086 = vpop.f32.mrb[0].mxu0
      %v2087 = vadd.f32 %v1986, %v2086
      %v2088 = vpop.f32.mrb[0].mxu0
      %v2089 = vadd.f32 %v1988, %v2088
      %2090 = vmatprep.mubr.bf16.mxu0 %v765
      %2091 = vmatmul.mubr.bf16.gmra.mrb[0].mxu0 %v764
      %v2092 = vpop.f32.mrb[0].mxu0
      %v2093 = vadd.f32 %v1992, %v2092
      %v2094 = vpop.f32.mrb[0].mxu0
      %v2095 = vadd.f32 %v1994, %v2094
      %v2096 = vpop.f32.mrb[0].mxu0
      %v2097 = vadd.f32 %v1996, %v2096
      %v2098 = vpop.f32.mrb[0].mxu0
      %v2099 = vadd.f32 %v1998, %v2098
      %2100 = vmatprep.mubr.bf16.mxu0 %v772
      %2101 = vmatmul.mubr.bf16.gmra.mrb[0].mxu0 %v771
      %v2102 = vpop.f32.mrb[0].mxu0
      %v2103 = vadd.f32 %v2002, %v2102
      %v2104 = vpop.f32.mrb[0].mxu0
      %v2105 = vadd.f32 %v2004, %v2104
      %v2106 = vpop.f32.mrb[0].mxu0
      %v2107 = vadd.f32 %v2006, %v2106
      %v2108 = vpop.f32.mrb[0].mxu0
      %v2109 = vadd.f32 %v2008, %v2108
      %2110 = vmatprep.mubr.bf16.mxu0 %v779
      %2111 = vmatmul.mubr.bf16.gmra.mrb[0].mxu0 %v778
      %v2112 = vpop.f32.mrb[0].mxu0
      %v2113 = vadd.f32 %v2012, %v2112
      %v2114 = vpop.f32.mrb[0].mxu0
      %v2115 = vadd.f32 %v2014, %v2114
      %v2116 = vpop.f32.mrb[0].mxu0
      %v2117 = vadd.f32 %v2016, %v2116
      %v2118 = vpop.f32.mrb[0].mxu0
      %v2119 = vadd.f32 %v2018, %v2118
      %2120 = vmatprep.mubr.bf16.mxu0 %v786
      %2121 = vmatmul.mubr.bf16.gmra.mrb[0].mxu0 %v785
      %v2122 = vpop.f32.mrb[0].mxu0
      %v2123 = vadd.f32 %v2022, %v2122
      %v2124 = vpop.f32.mrb[0].mxu0
      %v2125 = vadd.f32 %v2024, %v2124
      %v2126 = vpop.f32.mrb[0].mxu0
      %v2127 = vadd.f32 %v2026, %v2126
      %v2128 = vpop.f32.mrb[0].mxu0
      %v2129 = vadd.f32 %v2028, %v2128
      %2130 = vmatprep.mubr.bf16.mxu0 %v793
      %2131 = vmatmul.mubr.bf16.gmra.mrb[0].mxu0 %v792
      %v2132 = vpop.f32.mrb[0].mxu0
      %v2133 = vadd.f32 %v2032, %v2132
      %v2134 = vpop.f32.mrb[0].mxu0
      %v2135 = vadd.f32 %v2034, %v2134
      %v2136 = vpop.f32.mrb[0].mxu0
      %v2137 = vadd.f32 %v2036, %v2136
      %v2138 = vpop.f32.mrb[0].mxu0
      %v2139 = vadd.f32 %v2038, %v2138
      %2140 = vmatprep.mubr.bf16.mxu0 %v800
      %2141 = vmatmul.mubr.bf16.gmra.mrb[0].mxu0 %v799
      %v2142 = vpop.f32.mrb[0].mxu0
      %v2143 = vadd.f32 %v2042, %v2142
      %v2144 = vpop.f32.mrb[0].mxu0
      %v2145 = vadd.f32 %v2044, %v2144
      %v2146 = vpop.f32.mrb[0].mxu0
      %v2147 = vpop.f32.mrb[0].mxu0
      %2148 = vdwg.mxu0
      %2149 = vmatprep.subr.bf16.mxu0 %v1625
      %2150 = vmatpush1.bf16.msra.mxu0 %v1624
      %2151 = vmatprep.subr.bf16.mxu0 0
      %2152 = vmatpush1.bf16.msra.mxu0 0
      %2153 = vmatprep.subr.bf16.mxu0 0
      %2154 = vmatpush1.bf16.msra.mxu0 0
      %2155 = vmatprep.subr.bf16.mxu0 0
      %2156 = vmatpush1.bf16.msra.mxu0 0
      %2157 = vmatprep.subr.bf16.mxu0 0
      %2158 = vmatpush1.bf16.msra.mxu0 0
      %2159 = vmatprep.subr.bf16.mxu0 0
      %2160 = vmatpush1.bf16.msra.mxu0 0
      %2161 = vmatprep.subr.bf16.mxu0 0
      %2162 = vmatpush1.bf16.msra.mxu0 0
      %2163 = vmatprep.subr.bf16.mxu0 0
      %2164 = vmatpush1.bf16.msra.mxu0 0
      %2165 = vmatprep.subr.bf16.mxu0 0
      %2166 = vmatpush1.bf16.msra.mxu0 0
      %2167 = vmatprep.subr.bf16.mxu0 0
      %2168 = vmatpush1.bf16.msra.mxu0 0
      %2169 = vmatprep.subr.bf16.mxu0 0
      %2170 = vmatpush1.bf16.msra.mxu0 0
      %2171 = vmatprep.subr.bf16.mxu0 0
      %2172 = vmatpush1.bf16.msra.mxu0 0
      %2173 = vmatprep.subr.bf16.mxu0 0
      %2174 = vmatpush1.bf16.msra.mxu0 0
      %2175 = vmatprep.subr.bf16.mxu0 0
      %2176 = vmatpush1.bf16.msra.mxu0 0
      %2177 = vmatprep.subr.bf16.mxu0 0
      %2178 = vmatpush1.bf16.msra.mxu0 0
      %2179 = vmatprep.subr.bf16.mxu0 0
      %2180 = vmatpush1.bf16.msra.mxu0 0
      %2181 = vmatprep.mubr.bf16.mxu0 0
      %2182 = vmatmul.mubr.bf16.gmra.mrb[0].mxu0 %v1826
      %v2183 = vpop.f32.mrb[0].mxu0
      %v2184 = vadd.f32 %v2083, %v2183
      %v2185 = vpop.f32.mrb[0].mxu0
      %v2186 = vadd.f32 %v2085, %v2185
      %v2187 = vpop.f32.mrb[0].mxu0
      %v2188 = vadd.f32 %v2087, %v2187
      %v2189 = vpop.f32.mrb[0].mxu0
      %v2190 = vadd.f32 %v2089, %v2189
      %2191 = vmatprep.mubr.bf16.mxu0 0
      %2192 = vmatmul.mubr.bf16.gmra.mrb[0].mxu0 %v1829
      %v2193 = vpop.f32.mrb[0].mxu0
      %v2194 = vadd.f32 %v2093, %v2193
      %v2195 = vpop.f32.mrb[0].mxu0
      %v2196 = vadd.f32 %v2095, %v2195
      %v2197 = vpop.f32.mrb[0].mxu0
      %v2198 = vadd.f32 %v2097, %v2197
      %v2199 = vpop.f32.mrb[0].mxu0
      %v2200 = vadd.f32 %v2099, %v2199
      %2201 = vmatprep.mubr.bf16.mxu0 0
      %2202 = vmatmul.mubr.bf16.gmra.mrb[0].mxu0 %v1832
      %v2203 = vpop.f32.mrb[0].mxu0
      %v2204 = vadd.f32 %v2103, %v2203
      %v2205 = vpop.f32.mrb[0].mxu0
      %v2206 = vadd.f32 %v2105, %v2205
      %v2207 = vpop.f32.mrb[0].mxu0
      %v2208 = vadd.f32 %v2107, %v2207
      %v2209 = vpop.f32.mrb[0].mxu0
      %v2210 = vadd.f32 %v2109, %v2209
      %2211 = vmatprep.mubr.bf16.mxu0 0
      %2212 = vmatmul.mubr.bf16.gmra.mrb[0].mxu0 %v1835
      %v2213 = vpop.f32.mrb[0].mxu0
      %v2214 = vadd.f32 %v2113, %v2213
      %v2215 = vpop.f32.mrb[0].mxu0
      %v2216 = vadd.f32 %v2115, %v2215
      %v2217 = vpop.f32.mrb[0].mxu0
      %v2218 = vadd.f32 %v2117, %v2217
      %v2219 = vpop.f32.mrb[0].mxu0
      %v2220 = vadd.f32 %v2119, %v2219
      %2221 = vmatprep.mubr.bf16.mxu0 0
      %2222 = vmatmul.mubr.bf16.gmra.mrb[0].mxu0 %v1838
      %v2223 = vpop.f32.mrb[0].mxu0
      %v2224 = vadd.f32 %v2123, %v2223
      %v2225 = vpop.f32.mrb[0].mxu0
      %v2226 = vadd.f32 %v2125, %v2225
      %v2227 = vpop.f32.mrb[0].mxu0
      %v2228 = vadd.f32 %v2127, %v2227
      %v2229 = vpop.f32.mrb[0].mxu0
      %v2230 = vadd.f32 %v2129, %v2229
      %2231 = vmatprep.mubr.bf16.mxu0 0
      %2232 = vmatmul.mubr.bf16.gmra.mrb[0].mxu0 %v1841
      %v2233 = vpop.f32.mrb[0].mxu0
      %v2234 = vadd.f32 %v2133, %v2233
      %v2235 = vpop.f32.mrb[0].mxu0
      %v2236 = vadd.f32 %v2135, %v2235
      %v2237 = vpop.f32.mrb[0].mxu0
      %v2238 = vadd.f32 %v2137, %v2237
      %v2239 = vpop.f32.mrb[0].mxu0
      %v2240 = vadd.f32 %v2139, %v2239
      %2241 = vmatprep.mubr.bf16.mxu0 0
      %2242 = vmatmul.mubr.bf16.gmra.mrb[0].mxu0 %v1844
      %v2243 = vpop.f32.mrb[0].mxu0
      %v2244 = vadd.f32 %v2143, %v2243
      %v2245 = vpop.f32.mrb[0].mxu0
      %v2246 = vadd.f32 %v2145, %v2245
      %v2247 = vpop.f32.mrb[0].mxu0
      %v2248 = vpop.f32.mrb[0].mxu0
      %2249 = vdwg.mxu0
      %2250 = vmatprep.subr.bf16.mxu0 %v1435
      %2251 = vmatpush1.bf16.msra.mxu0 %v1434
      %2252 = vmatprep.subr.bf16.mxu0 %v1439
      %2253 = vmatpush1.bf16.msra.mxu0 %v1438
      %2254 = vmatprep.subr.bf16.mxu0 %v1443
      %2255 = vmatpush1.bf16.msra.mxu0 %v1442
      %2256 = vmatprep.subr.bf16.mxu0 %v1447
      %2257 = vmatpush1.bf16.msra.mxu0 %v1446
      %2258 = vmatprep.subr.bf16.mxu0 %v1451
      %2259 = vmatpush1.bf16.msra.mxu0 %v1450
      %2260 = vmatprep.subr.bf16.mxu0 %v1455
      %2261 = vmatpush1.bf16.msra.mxu0 %v1454
      %2262 = vmatprep.subr.bf16.mxu0 %v1459
      %2263 = vmatpush1.bf16.msra.mxu0 %v1458
      %2264 = vmatprep.subr.bf16.mxu0 %v1463
      %2265 = vmatpush1.bf16.msra.mxu0 %v1462
      %2266 = vmatprep.subr.bf16.mxu0 %v1467
      %2267 = vmatpush1.bf16.msra.mxu0 %v1466
      %2268 = vmatprep.subr.bf16.mxu0 %v1471
      %2269 = vmatpush1.bf16.msra.mxu0 %v1470
      %2270 = vmatprep.subr.bf16.mxu0 %v1475
      %2271 = vmatpush1.bf16.msra.mxu0 %v1474
      %2272 = vmatprep.subr.bf16.mxu0 %v1479
      %2273 = vmatpush1.bf16.msra.mxu0 %v1478
      %2274 = vmatprep.subr.bf16.mxu0 %v1483
      %2275 = vmatpush1.bf16.msra.mxu0 %v1482
      %2276 = vmatprep.subr.bf16.mxu0 %v1487
      %2277 = vmatpush1.bf16.msra.mxu0 %v1486
      %2278 = vmatprep.subr.bf16.mxu0 %v1491
      %2279 = vmatpush1.bf16.msra.mxu0 %v1490
      %2280 = vmatprep.subr.bf16.mxu0 %v1495
      %2281 = vmatpush1.bf16.msra.mxu0 %v1494
      %2282 = vmatprep.mubr.bf16.mxu0 %v754
      %2283 = vmatmul.mubr.bf16.gmra.mrb[0].mxu0 %v753
      %v2284 = vpop.f32.mrb[0].mxu0
      %v2285 = vadd.f32 %v601, %v2284
      %v2286 = vpop.f32.mrb[0].mxu0
      %v2287 = vadd.f32 %v605, %v2286
      %v2288 = vpop.f32.mrb[0].mxu0
      %v2289 = vadd.f32 %v601, %v2288
      %v2290 = vpop.f32.mrb[0].mxu0
      %v2291 = vadd.f32 %v605, %v2290
      %2292 = vmatprep.mubr.bf16.mxu0 %v761
      %2293 = vmatmul.mubr.bf16.gmra.mrb[0].mxu0 %v760
      %v2294 = vpop.f32.mrb[0].mxu0
      %v2295 = vadd.f32 %v601, %v2294
      %v2296 = vpop.f32.mrb[0].mxu0
      %v2297 = vadd.f32 %v605, %v2296
      %v2298 = vpop.f32.mrb[0].mxu0
      %v2299 = vadd.f32 %v601, %v2298
      %v2300 = vpop.f32.mrb[0].mxu0
      %v2301 = vadd.f32 %v605, %v2300
      %2302 = vmatprep.mubr.bf16.mxu0 %v768
      %2303 = vmatmul.mubr.bf16.gmra.mrb[0].mxu0 %v767
      %v2304 = vpop.f32.mrb[0].mxu0
      %v2305 = vadd.f32 %v601, %v2304
      %v2306 = vpop.f32.mrb[0].mxu0
      %v2307 = vadd.f32 %v605, %v2306
      %v2308 = vpop.f32.mrb[0].mxu0
      %v2309 = vadd.f32 %v601, %v2308
      %v2310 = vpop.f32.mrb[0].mxu0
      %v2311 = vadd.f32 %v605, %v2310
      %2312 = vmatprep.mubr.bf16.mxu0 %v775
      %2313 = vmatmul.mubr.bf16.gmra.mrb[0].mxu0 %v774
      %v2314 = vpop.f32.mrb[0].mxu0
      %v2315 = vadd.f32 %v601, %v2314
      %v2316 = vpop.f32.mrb[0].mxu0
      %v2317 = vadd.f32 %v605, %v2316
      %v2318 = vpop.f32.mrb[0].mxu0
      %v2319 = vadd.f32 %v601, %v2318
      %v2320 = vpop.f32.mrb[0].mxu0
      %v2321 = vadd.f32 %v605, %v2320
      %2322 = vmatprep.mubr.bf16.mxu0 %v782
      %2323 = vmatmul.mubr.bf16.gmra.mrb[0].mxu0 %v781
      %v2324 = vpop.f32.mrb[0].mxu0
      %v2325 = vadd.f32 %v601, %v2324
      %v2326 = vpop.f32.mrb[0].mxu0
      %v2327 = vadd.f32 %v605, %v2326
      %v2328 = vpop.f32.mrb[0].mxu0
      %v2329 = vadd.f32 %v601, %v2328
      %v2330 = vpop.f32.mrb[0].mxu0
      %v2331 = vadd.f32 %v605, %v2330
      %2332 = vmatprep.mubr.bf16.mxu0 %v789
      %2333 = vmatmul.mubr.bf16.gmra.mrb[0].mxu0 %v788
      %v2334 = vpop.f32.mrb[0].mxu0
      %v2335 = vadd.f32 %v601, %v2334
      %v2336 = vpop.f32.mrb[0].mxu0
      %v2337 = vadd.f32 %v605, %v2336
      %v2338 = vpop.f32.mrb[0].mxu0
      %v2339 = vadd.f32 %v601, %v2338
      %v2340 = vpop.f32.mrb[0].mxu0
      %v2341 = vadd.f32 %v605, %v2340
      %2342 = vmatprep.mubr.bf16.mxu0 %v796
      %2343 = vmatmul.mubr.bf16.gmra.mrb[0].mxu0 %v795
      %v2344 = vpop.f32.mrb[0].mxu0
      %v2345 = vadd.f32 %v601, %v2344
      %v2346 = vpop.f32.mrb[0].mxu0
      %v2347 = vadd.f32 %v605, %v2346
      %v2348 = vpop.f32.mrb[0].mxu0
      %v2349 = vpop.f32.mrb[0].mxu0
      %2350 = vdwg.mxu0
      %2351 = vmatprep.subr.bf16.mxu0 %v1499
      %2352 = vmatpush1.bf16.msra.mxu0 %v1498
      %2353 = vmatprep.subr.bf16.mxu0 %v1503
      %2354 = vmatpush1.bf16.msra.mxu0 %v1502
      %2355 = vmatprep.subr.bf16.mxu0 %v1507
      %2356 = vmatpush1.bf16.msra.mxu0 %v1506
      %2357 = vmatprep.subr.bf16.mxu0 %v1511
      %2358 = vmatpush1.bf16.msra.mxu0 %v1510
      %2359 = vmatprep.subr.bf16.mxu0 %v1515
      %2360 = vmatpush1.bf16.msra.mxu0 %v1514
      %2361 = vmatprep.subr.bf16.mxu0 %v1519
      %2362 = vmatpush1.bf16.msra.mxu0 %v1518
      %2363 = vmatprep.subr.bf16.mxu0 %v1523
      %2364 = vmatpush1.bf16.msra.mxu0 %v1522
      %2365 = vmatprep.subr.bf16.mxu0 %v1527
      %2366 = vmatpush1.bf16.msra.mxu0 %v1526
      %2367 = vmatprep.subr.bf16.mxu0 %v1531
      %2368 = vmatpush1.bf16.msra.mxu0 %v1530
      %2369 = vmatprep.subr.bf16.mxu0 %v1535
      %2370 = vmatpush1.bf16.msra.mxu0 %v1534
      %2371 = vmatprep.subr.bf16.mxu0 %v1539
      %2372 = vmatpush1.bf16.msra.mxu0 %v1538
      %2373 = vmatprep.subr.bf16.mxu0 %v1543
      %2374 = vmatpush1.bf16.msra.mxu0 %v1542
      %2375 = vmatprep.subr.bf16.mxu0 %v1547
      %2376 = vmatpush1.bf16.msra.mxu0 %v1546
      %2377 = vmatprep.subr.bf16.mxu0 %v1551
      %2378 = vmatpush1.bf16.msra.mxu0 %v1550
      %2379 = vmatprep.subr.bf16.mxu0 %v1555
      %2380 = vmatpush1.bf16.msra.mxu0 %v1554
      %2381 = vmatprep.subr.bf16.mxu0 %v1559
      %2382 = vmatpush1.bf16.msra.mxu0 %v1558
      %2383 = vmatprep.mubr.bf16.mxu0 %v756
      %2384 = vmatmul.mubr.bf16.gmra.mrb[0].mxu0 %v755
      %v2385 = vpop.f32.mrb[0].mxu0
      %v2386 = vadd.f32 %v2285, %v2385
      %v2387 = vpop.f32.mrb[0].mxu0
      %v2388 = vadd.f32 %v2287, %v2387
      %v2389 = vpop.f32.mrb[0].mxu0
      %v2390 = vadd.f32 %v2289, %v2389
      %v2391 = vpop.f32.mrb[0].mxu0
      %v2392 = vadd.f32 %v2291, %v2391
      %2393 = vmatprep.mubr.bf16.mxu0 %v763
      %2394 = vmatmul.mubr.bf16.gmra.mrb[0].mxu0 %v762
      %v2395 = vpop.f32.mrb[0].mxu0
      %v2396 = vadd.f32 %v2295, %v2395
      %v2397 = vpop.f32.mrb[0].mxu0
      %v2398 = vadd.f32 %v2297, %v2397
      %v2399 = vpop.f32.mrb[0].mxu0
      %v2400 = vadd.f32 %v2299, %v2399
      %v2401 = vpop.f32.mrb[0].mxu0
      %v2402 = vadd.f32 %v2301, %v2401
      %2403 = vmatprep.mubr.bf16.mxu0 %v770
      %2404 = vmatmul.mubr.bf16.gmra.mrb[0].mxu0 %v769
      %v2405 = vpop.f32.mrb[0].mxu0
      %v2406 = vadd.f32 %v2305, %v2405
      %v2407 = vpop.f32.mrb[0].mxu0
      %v2408 = vadd.f32 %v2307, %v2407
      %v2409 = vpop.f32.mrb[0].mxu0
      %v2410 = vadd.f32 %v2309, %v2409
      %v2411 = vpop.f32.mrb[0].mxu0
      %v2412 = vadd.f32 %v2311, %v2411
      %2413 = vmatprep.mubr.bf16.mxu0 %v777
      %2414 = vmatmul.mubr.bf16.gmra.mrb[0].mxu0 %v776
      %v2415 = vpop.f32.mrb[0].mxu0
      %v2416 = vadd.f32 %v2315, %v2415
      %v2417 = vpop.f32.mrb[0].mxu0
      %v2418 = vadd.f32 %v2317, %v2417
      %v2419 = vpop.f32.mrb[0].mxu0
      %v2420 = vadd.f32 %v2319, %v2419
      %v2421 = vpop.f32.mrb[0].mxu0
      %v2422 = vadd.f32 %v2321, %v2421
      %2423 = vmatprep.mubr.bf16.mxu0 %v784
      %2424 = vmatmul.mubr.bf16.gmra.mrb[0].mxu0 %v783
      %v2425 = vpop.f32.mrb[0].mxu0
      %v2426 = vadd.f32 %v2325, %v2425
      %v2427 = vpop.f32.mrb[0].mxu0
      %v2428 = vadd.f32 %v2327, %v2427
      %v2429 = vpop.f32.mrb[0].mxu0
      %v2430 = vadd.f32 %v2329, %v2429
      %v2431 = vpop.f32.mrb[0].mxu0
      %v2432 = vadd.f32 %v2331, %v2431
      %2433 = vmatprep.mubr.bf16.mxu0 %v791
      %2434 = vmatmul.mubr.bf16.gmra.mrb[0].mxu0 %v790
      %v2435 = vpop.f32.mrb[0].mxu0
      %v2436 = vadd.f32 %v2335, %v2435
      %v2437 = vpop.f32.mrb[0].mxu0
      %v2438 = vadd.f32 %v2337, %v2437
      %v2439 = vpop.f32.mrb[0].mxu0
      %v2440 = vadd.f32 %v2339, %v2439
      %v2441 = vpop.f32.mrb[0].mxu0
      %v2442 = vadd.f32 %v2341, %v2441
      %2443 = vmatprep.mubr.bf16.mxu0 %v798
      %2444 = vmatmul.mubr.bf16.gmra.mrb[0].mxu0 %v797
      %v2445 = vpop.f32.mrb[0].mxu0
      %v2446 = vadd.f32 %v2345, %v2445
      %v2447 = vpop.f32.mrb[0].mxu0
      %v2448 = vadd.f32 %v2347, %v2447
      %v2449 = vpop.f32.mrb[0].mxu0
      %v2450 = vpop.f32.mrb[0].mxu0
      %2451 = vdwg.mxu0
      %2452 = vmatprep.subr.bf16.mxu0 %v1563
      %2453 = vmatpush1.bf16.msra.mxu0 %v1562
      %2454 = vmatprep.subr.bf16.mxu0 %v1567
      %2455 = vmatpush1.bf16.msra.mxu0 %v1566
      %2456 = vmatprep.subr.bf16.mxu0 %v1571
      %2457 = vmatpush1.bf16.msra.mxu0 %v1570
      %2458 = vmatprep.subr.bf16.mxu0 %v1575
      %2459 = vmatpush1.bf16.msra.mxu0 %v1574
      %2460 = vmatprep.subr.bf16.mxu0 %v1579
      %2461 = vmatpush1.bf16.msra.mxu0 %v1578
      %2462 = vmatprep.subr.bf16.mxu0 %v1583
      %2463 = vmatpush1.bf16.msra.mxu0 %v1582
      %2464 = vmatprep.subr.bf16.mxu0 %v1587
      %2465 = vmatpush1.bf16.msra.mxu0 %v1586
      %2466 = vmatprep.subr.bf16.mxu0 %v1591
      %2467 = vmatpush1.bf16.msra.mxu0 %v1590
      %2468 = vmatprep.subr.bf16.mxu0 %v1595
      %2469 = vmatpush1.bf16.msra.mxu0 %v1594
      %2470 = vmatprep.subr.bf16.mxu0 %v1599
      %2471 = vmatpush1.bf16.msra.mxu0 %v1598
      %2472 = vmatprep.subr.bf16.mxu0 %v1603
      %2473 = vmatpush1.bf16.msra.mxu0 %v1602
      %2474 = vmatprep.subr.bf16.mxu0 %v1607
      %2475 = vmatpush1.bf16.msra.mxu0 %v1606
      %2476 = vmatprep.subr.bf16.mxu0 %v1611
      %2477 = vmatpush1.bf16.msra.mxu0 %v1610
      %2478 = vmatprep.subr.bf16.mxu0 %v1615
      %2479 = vmatpush1.bf16.msra.mxu0 %v1614
      %2480 = vmatprep.subr.bf16.mxu0 %v1619
      %2481 = vmatpush1.bf16.msra.mxu0 %v1618
      %2482 = vmatprep.subr.bf16.mxu0 %v1623
      %2483 = vmatpush1.bf16.msra.mxu0 %v1622
      %2484 = vmatprep.mubr.bf16.mxu0 %v758
      %2485 = vmatmul.mubr.bf16.gmra.mrb[0].mxu0 %v757
      %v2486 = vpop.f32.mrb[0].mxu0
      %v2487 = vadd.f32 %v2386, %v2486
      %v2488 = vpop.f32.mrb[0].mxu0
      %v2489 = vadd.f32 %v2388, %v2488
      %v2490 = vpop.f32.mrb[0].mxu0
      %v2491 = vadd.f32 %v2390, %v2490
      %v2492 = vpop.f32.mrb[0].mxu0
      %v2493 = vadd.f32 %v2392, %v2492
      %2494 = vmatprep.mubr.bf16.mxu0 %v765
      %2495 = vmatmul.mubr.bf16.gmra.mrb[0].mxu0 %v764
      %v2496 = vpop.f32.mrb[0].mxu0
      %v2497 = vadd.f32 %v2396, %v2496
      %v2498 = vpop.f32.mrb[0].mxu0
      %v2499 = vadd.f32 %v2398, %v2498
      %v2500 = vpop.f32.mrb[0].mxu0
      %v2501 = vadd.f32 %v2400, %v2500
      %v2502 = vpop.f32.mrb[0].mxu0
      %v2503 = vadd.f32 %v2402, %v2502
      %2504 = vmatprep.mubr.bf16.mxu0 %v772
      %2505 = vmatmul.mubr.bf16.gmra.mrb[0].mxu0 %v771
      %v2506 = vpop.f32.mrb[0].mxu0
      %v2507 = vadd.f32 %v2406, %v2506
      %v2508 = vpop.f32.mrb[0].mxu0
      %v2509 = vadd.f32 %v2408, %v2508
      %v2510 = vpop.f32.mrb[0].mxu0
      %v2511 = vadd.f32 %v2410, %v2510
      %v2512 = vpop.f32.mrb[0].mxu0
      %v2513 = vadd.f32 %v2412, %v2512
      %2514 = vmatprep.mubr.bf16.mxu0 %v779
      %2515 = vmatmul.mubr.bf16.gmra.mrb[0].mxu0 %v778
      %v2516 = vpop.f32.mrb[0].mxu0
      %v2517 = vadd.f32 %v2416, %v2516
      %v2518 = vpop.f32.mrb[0].mxu0
      %v2519 = vadd.f32 %v2418, %v2518
      %v2520 = vpop.f32.mrb[0].mxu0
      %v2521 = vadd.f32 %v2420, %v2520
      %v2522 = vpop.f32.mrb[0].mxu0
      %v2523 = vadd.f32 %v2422, %v2522
      %2524 = vmatprep.mubr.bf16.mxu0 %v786
      %2525 = vmatmul.mubr.bf16.gmra.mrb[0].mxu0 %v785
      %v2526 = vpop.f32.mrb[0].mxu0
      %v2527 = vadd.f32 %v2426, %v2526
      %v2528 = vpop.f32.mrb[0].mxu0
      %v2529 = vadd.f32 %v2428, %v2528
      %v2530 = vpop.f32.mrb[0].mxu0
      %v2531 = vadd.f32 %v2430, %v2530
      %v2532 = vpop.f32.mrb[0].mxu0
      %v2533 = vadd.f32 %v2432, %v2532
      %2534 = vmatprep.mubr.bf16.mxu0 %v793
      %2535 = vmatmul.mubr.bf16.gmra.mrb[0].mxu0 %v792
      %v2536 = vpop.f32.mrb[0].mxu0
      %v2537 = vadd.f32 %v2436, %v2536
      %v2538 = vpop.f32.mrb[0].mxu0
      %v2539 = vadd.f32 %v2438, %v2538
      %v2540 = vpop.f32.mrb[0].mxu0
      %v2541 = vadd.f32 %v2440, %v2540
      %v2542 = vpop.f32.mrb[0].mxu0
      %v2543 = vadd.f32 %v2442, %v2542
      %2544 = vmatprep.mubr.bf16.mxu0 %v800
      %2545 = vmatmul.mubr.bf16.gmra.mrb[0].mxu0 %v799
      %v2546 = vpop.f32.mrb[0].mxu0
      %v2547 = vadd.f32 %v2446, %v2546
      %v2548 = vpop.f32.mrb[0].mxu0
      %v2549 = vadd.f32 %v2448, %v2548
      %v2550 = vpop.f32.mrb[0].mxu0
      %v2551 = vpop.f32.mrb[0].mxu0
      %2552 = vdwg.mxu0
      %2553 = vmatprep.subr.bf16.mxu0 %v1627
      %2554 = vmatpush1.bf16.msra.mxu0 %v1626
      %2555 = vmatprep.subr.bf16.mxu0 0
      %2556 = vmatpush1.bf16.msra.mxu0 0
      %2557 = vmatprep.subr.bf16.mxu0 0
      %2558 = vmatpush1.bf16.msra.mxu0 0
      %2559 = vmatprep.subr.bf16.mxu0 0
      %2560 = vmatpush1.bf16.msra.mxu0 0
      %2561 = vmatprep.subr.bf16.mxu0 0
      %2562 = vmatpush1.bf16.msra.mxu0 0
      %2563 = vmatprep.subr.bf16.mxu0 0
      %2564 = vmatpush1.bf16.msra.mxu0 0
      %2565 = vmatprep.subr.bf16.mxu0 0
      %2566 = vmatpush1.bf16.msra.mxu0 0
      %2567 = vmatprep.subr.bf16.mxu0 0
      %2568 = vmatpush1.bf16.msra.mxu0 0
      %2569 = vmatprep.subr.bf16.mxu0 0
      %2570 = vmatpush1.bf16.msra.mxu0 0
      %2571 = vmatprep.subr.bf16.mxu0 0
      %2572 = vmatpush1.bf16.msra.mxu0 0
      %2573 = vmatprep.subr.bf16.mxu0 0
      %2574 = vmatpush1.bf16.msra.mxu0 0
      %2575 = vmatprep.subr.bf16.mxu0 0
      %2576 = vmatpush1.bf16.msra.mxu0 0
      %2577 = vmatprep.subr.bf16.mxu0 0
      %2578 = vmatpush1.bf16.msra.mxu0 0
      %2579 = vmatprep.subr.bf16.mxu0 0
      %2580 = vmatpush1.bf16.msra.mxu0 0
      %2581 = vmatprep.subr.bf16.mxu0 0
      %2582 = vmatpush1.bf16.msra.mxu0 0
      %2583 = vmatprep.subr.bf16.mxu0 0
      %2584 = vmatpush1.bf16.msra.mxu0 0
      %2585 = vmatprep.mubr.bf16.mxu0 0
      %2586 = vmatmul.mubr.bf16.gmra.mrb[0].mxu0 %v1826
      %v2587 = vpop.f32.mrb[0].mxu0
      %v2588 = vadd.f32 %v2487, %v2587
      %v2589 = vpop.f32.mrb[0].mxu0
      %v2590 = vadd.f32 %v2489, %v2589
      %v2591 = vpop.f32.mrb[0].mxu0
      %v2592 = vadd.f32 %v2491, %v2591
      %v2593 = vpop.f32.mrb[0].mxu0
      %v2594 = vadd.f32 %v2493, %v2593
      %2595 = vmatprep.mubr.bf16.mxu0 0
      %2596 = vmatmul.mubr.bf16.gmra.mrb[0].mxu0 %v1829
      %v2597 = vpop.f32.mrb[0].mxu0
      %v2598 = vadd.f32 %v2497, %v2597
      %v2599 = vpop.f32.mrb[0].mxu0
      %v2600 = vadd.f32 %v2499, %v2599
      %v2601 = vpop.f32.mrb[0].mxu0
      %v2602 = vadd.f32 %v2501, %v2601
      %v2603 = vpop.f32.mrb[0].mxu0
      %v2604 = vadd.f32 %v2503, %v2603
      %2605 = vmatprep.mubr.bf16.mxu0 0
      %2606 = vmatmul.mubr.bf16.gmra.mrb[0].mxu0 %v1832
      %v2607 = vpop.f32.mrb[0].mxu0
      %v2608 = vadd.f32 %v2507, %v2607
      %v2609 = vpop.f32.mrb[0].mxu0
      %v2610 = vadd.f32 %v2509, %v2609
      %v2611 = vpop.f32.mrb[0].mxu0
      %v2612 = vadd.f32 %v2511, %v2611
      %v2613 = vpop.f32.mrb[0].mxu0
      %v2614 = vadd.f32 %v2513, %v2613
      %2615 = vmatprep.mubr.bf16.mxu0 0
      %2616 = vmatmul.mubr.bf16.gmra.mrb[0].mxu0 %v1835
      %v2617 = vpop.f32.mrb[0].mxu0
      %v2618 = vadd.f32 %v2517, %v2617
      %v2619 = vpop.f32.mrb[0].mxu0
      %v2620 = vadd.f32 %v2519, %v2619
      %v2621 = vpop.f32.mrb[0].mxu0
      %v2622 = vadd.f32 %v2521, %v2621
      %v2623 = vpop.f32.mrb[0].mxu0
      %v2624 = vadd.f32 %v2523, %v2623
      %2625 = vmatprep.mubr.bf16.mxu0 0
      %2626 = vmatmul.mubr.bf16.gmra.mrb[0].mxu0 %v1838
      %v2627 = vpop.f32.mrb[0].mxu0
      %v2628 = vadd.f32 %v2527, %v2627
      %v2629 = vpop.f32.mrb[0].mxu0
      %v2630 = vadd.f32 %v2529, %v2629
      %v2631 = vpop.f32.mrb[0].mxu0
      %v2632 = vadd.f32 %v2531, %v2631
      %v2633 = vpop.f32.mrb[0].mxu0
      %v2634 = vadd.f32 %v2533, %v2633
      %2635 = vmatprep.mubr.bf16.mxu0 0
      %2636 = vmatmul.mubr.bf16.gmra.mrb[0].mxu0 %v1841
      %v2637 = vpop.f32.mrb[0].mxu0
      %v2638 = vadd.f32 %v2537, %v2637
      %v2639 = vpop.f32.mrb[0].mxu0
      %v2640 = vadd.f32 %v2539, %v2639
      %v2641 = vpop.f32.mrb[0].mxu0
      %v2642 = vadd.f32 %v2541, %v2641
      %v2643 = vpop.f32.mrb[0].mxu0
      %v2644 = vadd.f32 %v2543, %v2643
      %2645 = vmatprep.mubr.bf16.mxu0 0
      %2646 = vmatmul.mubr.bf16.gmra.mrb[0].mxu0 %v1844
      %v2647 = vpop.f32.mrb[0].mxu0
      %v2648 = vadd.f32 %v2547, %v2647
      %v2649 = vpop.f32.mrb[0].mxu0
      %v2650 = vadd.f32 %v2549, %v2649
      %v2651 = vpop.f32.mrb[0].mxu0
      %v2652 = vpop.f32.mrb[0].mxu0
      %2653 = vdwg.mxu0
      %v2654 = vmax.f32 %v2184, 0.0
      %v2655 = vmax.f32 %v2186, 0.0
      %v2656 = vmax.f32 %v2588, 0.0
      %v2657 = vmax.f32 %v2590, 0.0
      %v2658 = vmax.f32 %v2188, 0.0
      %v2659 = vmax.f32 %v2190, 0.0
      %v2660 = vmax.f32 %v2592, 0.0
      %v2661 = vmax.f32 %v2594, 0.0
      %v2662 = vmax.f32 %v2194, 0.0
      %v2663 = vmax.f32 %v2196, 0.0
      %v2664 = vmax.f32 %v2598, 0.0
      %v2665 = vmax.f32 %v2600, 0.0
      %v2666 = vmax.f32 %v2198, 0.0
      %v2667 = vmax.f32 %v2200, 0.0
      %v2668 = vmax.f32 %v2602, 0.0
      %v2669 = vmax.f32 %v2604, 0.0
      %v2670 = vmax.f32 %v2204, 0.0
      %v2671 = vmax.f32 %v2206, 0.0
      %v2672 = vmax.f32 %v2608, 0.0
      %v2673 = vmax.f32 %v2610, 0.0
      %v2674 = vmax.f32 %v2208, 0.0
      %v2675 = vmax.f32 %v2210, 0.0
      %v2676 = vmax.f32 %v2612, 0.0
      %v2677 = vmax.f32 %v2614, 0.0
      %v2678 = vmax.f32 %v2214, 0.0
      %v2679 = vmax.f32 %v2216, 0.0
      %v2680 = vmax.f32 %v2618, 0.0
      %v2681 = vmax.f32 %v2620, 0.0
      %v2682 = vmax.f32 %v2218, 0.0
      %v2683 = vmax.f32 %v2220, 0.0
      %v2684 = vmax.f32 %v2622, 0.0
      %v2685 = vmax.f32 %v2624, 0.0
      %v2686 = vmax.f32 %v2224, 0.0
      %v2687 = vmax.f32 %v2226, 0.0
      %v2688 = vmax.f32 %v2628, 0.0
      %v2689 = vmax.f32 %v2630, 0.0
      %v2690 = vmax.f32 %v2228, 0.0
      %v2691 = vmax.f32 %v2230, 0.0
      %v2692 = vmax.f32 %v2632, 0.0
      %v2693 = vmax.f32 %v2634, 0.0
      %v2694 = vmax.f32 %v2234, 0.0
      %v2695 = vmax.f32 %v2236, 0.0
      %v2696 = vmax.f32 %v2638, 0.0
      %v2697 = vmax.f32 %v2640, 0.0
      %v2698 = vmax.f32 %v2238, 0.0
      %v2699 = vmax.f32 %v2240, 0.0
      %v2700 = vmax.f32 %v2642, 0.0
      %v2701 = vmax.f32 %v2644, 0.0
      %v2702 = vmax.f32 %v2244, 0.0
      %v2703 = vmax.f32 %v2246, 0.0
      %v2704 = vmax.f32 %v2648, 0.0
      %v2705 = vmax.f32 %v2650, 0.0
      %v2706 = vpack.c.bf16 %v2658, %v2654
      %v2707 = vpack.c.bf16 %v2659, %v2655
      %v2708 = vpack.c.bf16 %v2660, %v2656
      %v2709 = vpack.c.bf16 %v2661, %v2657
      %v2710 = vpack.c.bf16 %v2666, %v2662
      %v2711 = vpack.c.bf16 %v2667, %v2663
      %v2712 = vpack.c.bf16 %v2668, %v2664
      %v2713 = vpack.c.bf16 %v2669, %v2665
      %v2714 = vpack.c.bf16 %v2674, %v2670
      %v2715 = vpack.c.bf16 %v2675, %v2671
      %v2716 = vpack.c.bf16 %v2676, %v2672
      %v2717 = vpack.c.bf16 %v2677, %v2673
      %v2718 = vpack.c.bf16 %v2682, %v2678
      %v2719 = vpack.c.bf16 %v2683, %v2679
      %v2720 = vpack.c.bf16 %v2684, %v2680
      %v2721 = vpack.c.bf16 %v2685, %v2681
      %v2722 = vpack.c.bf16 %v2690, %v2686
      %v2723 = vpack.c.bf16 %v2691, %v2687
      %v2724 = vpack.c.bf16 %v2692, %v2688
      %v2725 = vpack.c.bf16 %v2693, %v2689
      %v2726 = vpack.c.bf16 %v2698, %v2694
      %v2727 = vpack.c.bf16 %v2699, %v2695
      %v2728 = vpack.c.bf16 %v2700, %v2696
      %v2729 = vpack.c.bf16 %v2701, %v2697
      %v2730 = vpack.c.bf16 %v2702, %v2702
      %v2731 = vpack.c.bf16 %v2703, %v2703
      %v2732 = vpack.c.bf16 %v2704, %v2704
      %v2733 = vpack.c.bf16 %v2705, %v2705
      %v2734 = vld [vmem:[%s3] sm:$0xff]
      %v2735 = vld [vmem:[%s3 + $0x8] sm:$0xff]
      %v2736 = vld [vmem:[%s3 + $0x10] sm:$0xff]
      %v2737 = vld [vmem:[%s3 + $0x18] sm:$0xff]
      %v2738 = vld [vmem:[%s3 + $0x20] sm:$0xff]
      %v2739 = vld [vmem:[%s3 + $0x28] sm:$0xff]
      %v2740 = vld [vmem:[%s3 + $0x30] sm:$0xff]
      %v2741 = vld [vmem:[%s3 + $0x38] sm:$0xff]
      %v2742 = vld [vmem:[%s3 + $0x40] sm:$0xff]
      %v2743 = vld [vmem:[%s3 + $0x48] sm:$0xff]
      %v2744 = vld [vmem:[%s3 + $0x50] sm:$0xff]
      %v2745 = vld [vmem:[%s3 + $0x58] sm:$0xff]
      %v2746 = vld [vmem:[%s3 + $0x60] sm:$0xff]
      %v2747 = vld [vmem:[%s3 + $0x68] sm:$0xff]
      %v2748 = vld [vmem:[%s3 + $0x70] sm:$0xff]
      %v2749 = vld [vmem:[%s3 + $0x78] sm:$0xff]
      %v2750 = vld [vmem:[%s3 + $0x80] sm:$0xff]
      %v2751 = vld [vmem:[%s3 + $0x88] sm:$0xff]
      %v2752 = vld [vmem:[%s3 + $0x90] sm:$0xff]
      %v2753 = vld [vmem:[%s3 + $0x98] sm:$0xff]
      %v2754 = vld [vmem:[%s3 + $0xa0] sm:$0xff]
      %v2755 = vld [vmem:[%s3 + $0xa8] sm:$0xff]
      %v2756 = vld [vmem:[%s3 + $0xb0] sm:$0xff]
      %v2757 = vld [vmem:[%s3 + $0xb8] sm:$0xff]
      %v2758 = vld [vmem:[%s3 + $0xc0] sm:$0xff]
      %v2759 = vld [vmem:[%s3 + $0xc8] sm:$0xff]
      %v2760 = vld [vmem:[%s3 + $0xd0] sm:$0xff]
      %v2761 = vld [vmem:[%s3 + $0xd8] sm:$0xff]
      %v2762 = vld [vmem:[%s3 + $0xe0] sm:$0xff]
      %v2763 = vld [vmem:[%s3 + $0xe8] sm:$0xff]
      %v2764 = vld [vmem:[%s3 + $0xf0] sm:$0xff]
      %v2765 = vld [vmem:[%s3 + $0xf8] sm:$0xff]
      %v2766 = vld [vmem:[%s3 + $0x100] sm:$0xff]
      %v2767 = vld [vmem:[%s3 + $0x108] sm:$0xff]
      %v2768 = vld [vmem:[%s3 + $0x110] sm:$0xff]
      %v2769 = vld [vmem:[%s3 + $0x118] sm:$0xff]
      %v2770 = vld [vmem:[%s3 + $0x120] sm:$0xff]
      %v2771 = vld [vmem:[%s3 + $0x128] sm:$0xff]
      %v2772 = vld [vmem:[%s3 + $0x130] sm:$0xff]
      %v2773 = vld [vmem:[%s3 + $0x138] sm:$0xff]
      %v2774 = vld [vmem:[%s3 + $0x140] sm:$0xff]
      %v2775 = vld [vmem:[%s3 + $0x148] sm:$0xff]
      %v2776 = vld [vmem:[%s3 + $0x150] sm:$0xff]
      %v2777 = vld [vmem:[%s3 + $0x158] sm:$0xff]
      %v2778 = vld [vmem:[%s3 + $0x160] sm:$0xff]
      %v2779 = vld [vmem:[%s3 + $0x168] sm:$0xff]
      %v2780 = vld [vmem:[%s3 + $0x170] sm:$0xff]
      %v2781 = vld [vmem:[%s3 + $0x178] sm:$0xff]
      %v2782 = vld [vmem:[%s3 + $0x180] sm:$0xff]
      %v2783 = vld [vmem:[%s3 + $0x188] sm:$0xff]
      %v2784 = vld [vmem:[%s3 + $0x190] sm:$0xff]
      %v2785 = vld [vmem:[%s3 + $0x198] sm:$0xff]
      %v2786 = vld [vmem:[%s3 + $0x1a0] sm:$0xff]
      %v2787 = vld [vmem:[%s3 + $0x1a8] sm:$0xff]
      %v2788 = vld [vmem:[%s3 + $0x1b0] sm:$0xff]
      %v2789 = vld [vmem:[%s3 + $0x1b8] sm:$0xff]
      %v2790 = vld [vmem:[%s3 + $0x1c0] sm:$0xff]
      %v2791 = vld [vmem:[%s3 + $0x1c8] sm:$0xff]
      %v2792 = vld [vmem:[%s3 + $0x1d0] sm:$0xff]
      %v2793 = vld [vmem:[%s3 + $0x1d8] sm:$0xff]
      %v2794 = vld [vmem:[%s3 + $0x1e0] sm:$0xff]
      %v2795 = vld [vmem:[%s3 + $0x1e8] sm:$0xff]
      %v2796 = vld [vmem:[%s3 + $0x1f0] sm:$0xff]
      %v2797 = vld [vmem:[%s3 + $0x1f8] sm:$0xff]
      %v2798 = vld [vmem:[%s4] sm:$0x3]
      %v2800 = vlaneseq
      %v2801 = vshrl.u32 %v2800, 7
      %v2802 = vsub.s32 0, %v2801
      %v2803 = vrot.slane %v2798, %v2802
      %v2804 = vlaneseq
      %v2805 = vshrl.u32 %v2804, 7
      %v2806 = vsub.s32 1, %v2805
      %v2807 = vrot.slane %v2798, %v2806
      %v2874 = vunpack.c.l.b16 %v2734
      %v2875 = vunpack.c.h.b16 %v2734
      %v2876 = vunpack.c.l.b16 %v2735
      %v2877 = vunpack.c.h.b16 %v2735
      %v2878 = vunpack.c.l.b16 %v2736
      %v2879 = vunpack.c.h.b16 %v2736
      %v2880 = vunpack.c.l.b16 %v2737
      %v2881 = vunpack.c.h.b16 %v2737
      %v2882 = vunpack.c.l.b16 %v2738
      %v2883 = vunpack.c.h.b16 %v2738
      %v2884 = vunpack.c.l.b16 %v2739
      %v2885 = vunpack.c.h.b16 %v2739
      %v2886 = vunpack.c.l.b16 %v2740
      %v2887 = vunpack.c.h.b16 %v2740
      %v2888 = vunpack.c.l.b16 %v2741
      %v2889 = vunpack.c.h.b16 %v2741
      %v2890 = vunpack.c.l.b16 %v2742
      %v2891 = vunpack.c.h.b16 %v2742
      %v2892 = vunpack.c.l.b16 %v2743
      %v2893 = vunpack.c.h.b16 %v2743
      %v2894 = vunpack.c.l.b16 %v2744
      %v2895 = vunpack.c.h.b16 %v2744
      %v2896 = vunpack.c.l.b16 %v2745
      %v2897 = vunpack.c.h.b16 %v2745
      %v2898 = vunpack.c.l.b16 %v2746
      %v2899 = vunpack.c.h.b16 %v2746
      %v2900 = vunpack.c.l.b16 %v2747
      %v2901 = vunpack.c.h.b16 %v2747
      %v2902 = vunpack.c.l.b16 %v2748
      %v2903 = vunpack.c.h.b16 %v2748
      %v2904 = vunpack.c.l.b16 %v2749
      %v2905 = vunpack.c.h.b16 %v2749
      %v2906 = vunpack.c.l.b16 %v2750
      %v2907 = vunpack.c.h.b16 %v2750
      %v2908 = vunpack.c.l.b16 %v2751
      %v2909 = vunpack.c.h.b16 %v2751
      %v2910 = vunpack.c.l.b16 %v2752
      %v2911 = vunpack.c.h.b16 %v2752
      %v2912 = vunpack.c.l.b16 %v2753
      %v2913 = vunpack.c.h.b16 %v2753
      %v2914 = vunpack.c.l.b16 %v2754
      %v2915 = vunpack.c.h.b16 %v2754
      %v2916 = vunpack.c.l.b16 %v2755
      %v2917 = vunpack.c.h.b16 %v2755
      %v2918 = vunpack.c.l.b16 %v2756
      %v2919 = vunpack.c.h.b16 %v2756
      %v2920 = vunpack.c.l.b16 %v2757
      %v2921 = vunpack.c.h.b16 %v2757
      %v2922 = vunpack.c.l.b16 %v2758
      %v2923 = vunpack.c.h.b16 %v2758
      %v2924 = vunpack.c.l.b16 %v2759
      %v2925 = vunpack.c.h.b16 %v2759
      %v2926 = vunpack.c.l.b16 %v2760
      %v2927 = vunpack.c.h.b16 %v2760
      %v2928 = vunpack.c.l.b16 %v2761
      %v2929 = vunpack.c.h.b16 %v2761
      %v2930 = vunpack.c.l.b16 %v2762
      %v2931 = vunpack.c.h.b16 %v2762
      %v2932 = vunpack.c.l.b16 %v2763
      %v2933 = vunpack.c.h.b16 %v2763
      %v2934 = vunpack.c.l.b16 %v2764
      %v2935 = vunpack.c.h.b16 %v2764
      %v2936 = vunpack.c.l.b16 %v2765
      %v2937 = vunpack.c.h.b16 %v2765
      %v2938 = vunpack.c.l.b16 %v2766
      %v2939 = vunpack.c.h.b16 %v2766
      %v2940 = vunpack.c.l.b16 %v2767
      %v2941 = vunpack.c.h.b16 %v2767
      %v2942 = vunpack.c.l.b16 %v2768
      %v2943 = vunpack.c.h.b16 %v2768
      %v2944 = vunpack.c.l.b16 %v2769
      %v2945 = vunpack.c.h.b16 %v2769
      %v2946 = vunpack.c.l.b16 %v2770
      %v2947 = vunpack.c.h.b16 %v2770
      %v2948 = vunpack.c.l.b16 %v2771
      %v2949 = vunpack.c.h.b16 %v2771
      %v2950 = vunpack.c.l.b16 %v2772
      %v2951 = vunpack.c.h.b16 %v2772
      %v2952 = vunpack.c.l.b16 %v2773
      %v2953 = vunpack.c.h.b16 %v2773
      %v2954 = vunpack.c.l.b16 %v2774
      %v2955 = vunpack.c.h.b16 %v2774
      %v2956 = vunpack.c.l.b16 %v2775
      %v2957 = vunpack.c.h.b16 %v2775
      %v2958 = vunpack.c.l.b16 %v2776
      %v2959 = vunpack.c.h.b16 %v2776
      %v2960 = vunpack.c.l.b16 %v2777
      %v2961 = vunpack.c.h.b16 %v2777
      %v2962 = vunpack.c.l.b16 %v2778
      %v2963 = vunpack.c.h.b16 %v2778
      %v2964 = vunpack.c.l.b16 %v2779
      %v2965 = vunpack.c.h.b16 %v2779
      %v2966 = vunpack.c.l.b16 %v2780
      %v2967 = vunpack.c.h.b16 %v2780
      %v2968 = vunpack.c.l.b16 %v2781
      %v2969 = vunpack.c.h.b16 %v2781
      %v2970 = vunpack.c.l.b16 %v2782
      %v2971 = vunpack.c.h.b16 %v2782
      %v2972 = vunpack.c.l.b16 %v2783
      %v2973 = vunpack.c.h.b16 %v2783
      %v2974 = vunpack.c.l.b16 %v2784
      %v2975 = vunpack.c.h.b16 %v2784
      %v2976 = vunpack.c.l.b16 %v2785
      %v2977 = vunpack.c.h.b16 %v2785
      %v2978 = vunpack.c.l.b16 %v2786
      %v2979 = vunpack.c.h.b16 %v2786
      %v2980 = vunpack.c.l.b16 %v2787
      %v2981 = vunpack.c.h.b16 %v2787
      %v2982 = vunpack.c.l.b16 %v2788
      %v2983 = vunpack.c.h.b16 %v2788
      %v2984 = vunpack.c.l.b16 %v2789
      %v2985 = vunpack.c.h.b16 %v2789
      %v2986 = vunpack.c.l.b16 %v2790
      %v2987 = vunpack.c.h.b16 %v2790
      %v2988 = vunpack.c.l.b16 %v2791
      %v2989 = vunpack.c.h.b16 %v2791
      %v2990 = vunpack.c.l.b16 %v2792
      %v2991 = vunpack.c.h.b16 %v2792
      %v2992 = vunpack.c.l.b16 %v2793
      %v2993 = vunpack.c.h.b16 %v2793
      %v2994 = vunpack.c.l.b16 %v2794
      %v2995 = vunpack.c.h.b16 %v2794
      %v2996 = vunpack.c.l.b16 %v2795
      %v2997 = vunpack.c.h.b16 %v2795
      %v2998 = vunpack.c.l.b16 %v2796
      %v2999 = vunpack.c.h.b16 %v2796
      %v3000 = vunpack.c.l.b16 %v2797
      %v3001 = vunpack.c.h.b16 %v2797
      %v3002 = vpack.c.b16 %v2876, %v2874
      %v3003 = vpack.c.b16 %v2877, %v2875
      %v3004 = vpack.c.b16 %v2880, %v2878
      %v3005 = vpack.c.b16 %v2881, %v2879
      %v3006 = vpack.c.b16 %v2884, %v2882
      %v3007 = vpack.c.b16 %v2885, %v2883
      %v3008 = vpack.c.b16 %v2888, %v2886
      %v3009 = vpack.c.b16 %v2889, %v2887
      %v3010 = vpack.c.b16 %v2892, %v2890
      %v3011 = vpack.c.b16 %v2893, %v2891
      %v3012 = vpack.c.b16 %v2896, %v2894
      %v3013 = vpack.c.b16 %v2897, %v2895
      %v3014 = vpack.c.b16 %v2900, %v2898
      %v3015 = vpack.c.b16 %v2901, %v2899
      %v3016 = vpack.c.b16 %v2904, %v2902
      %v3017 = vpack.c.b16 %v2905, %v2903
      %v3018 = vpack.c.b16 %v2908, %v2906
      %v3019 = vpack.c.b16 %v2909, %v2907
      %v3020 = vpack.c.b16 %v2912, %v2910
      %v3021 = vpack.c.b16 %v2913, %v2911
      %v3022 = vpack.c.b16 %v2916, %v2914
      %v3023 = vpack.c.b16 %v2917, %v2915
      %v3024 = vpack.c.b16 %v2920, %v2918
      %v3025 = vpack.c.b16 %v2921, %v2919
      %v3026 = vpack.c.b16 %v2924, %v2922
      %v3027 = vpack.c.b16 %v2925, %v2923
      %v3028 = vpack.c.b16 %v2928, %v2926
      %v3029 = vpack.c.b16 %v2929, %v2927
      %v3030 = vpack.c.b16 %v2932, %v2930
      %v3031 = vpack.c.b16 %v2933, %v2931
      %v3032 = vpack.c.b16 %v2936, %v2934
      %v3033 = vpack.c.b16 %v2937, %v2935
      %v3034 = vpack.c.b16 %v2940, %v2938
      %v3035 = vpack.c.b16 %v2941, %v2939
      %v3036 = vpack.c.b16 %v2944, %v2942
      %v3037 = vpack.c.b16 %v2945, %v2943
      %v3038 = vpack.c.b16 %v2948, %v2946
      %v3039 = vpack.c.b16 %v2949, %v2947
      %v3040 = vpack.c.b16 %v2952, %v2950
      %v3041 = vpack.c.b16 %v2953, %v2951
      %v3042 = vpack.c.b16 %v2956, %v2954
      %v3043 = vpack.c.b16 %v2957, %v2955
      %v3044 = vpack.c.b16 %v2960, %v2958
      %v3045 = vpack.c.b16 %v2961, %v2959
      %v3046 = vpack.c.b16 %v2964, %v2962
      %v3047 = vpack.c.b16 %v2965, %v2963
      %v3048 = vpack.c.b16 %v2968, %v2966
      %v3049 = vpack.c.b16 %v2969, %v2967
      %v3050 = vpack.c.b16 %v2972, %v2970
      %v3051 = vpack.c.b16 %v2973, %v2971
      %v3052 = vpack.c.b16 %v2976, %v2974
      %v3053 = vpack.c.b16 %v2977, %v2975
      %v3054 = vpack.c.b16 %v2980, %v2978
      %v3055 = vpack.c.b16 %v2981, %v2979
      %v3056 = vpack.c.b16 %v2984, %v2982
      %v3057 = vpack.c.b16 %v2985, %v2983
      %v3058 = vpack.c.b16 %v2988, %v2986
      %v3059 = vpack.c.b16 %v2989, %v2987
      %v3060 = vpack.c.b16 %v2992, %v2990
      %v3061 = vpack.c.b16 %v2993, %v2991
      %v3062 = vpack.c.b16 %v2996, %v2994
      %v3063 = vpack.c.b16 %v2997, %v2995
      %v3064 = vpack.c.b16 %v3000, %v2998
      %v3065 = vpack.c.b16 %v3001, %v2999
      %3130 = vmatprep.subr.bf16.mxu0 %v3003
      %3131 = vmatpush1.bf16.msra.mxu0 %v3002
      %3132 = vmatprep.subr.bf16.mxu0 %v3005
      %3133 = vmatpush1.bf16.msra.mxu0 %v3004
      %3134 = vmatprep.subr.bf16.mxu0 %v3007
      %3135 = vmatpush1.bf16.msra.mxu0 %v3006
      %3136 = vmatprep.subr.bf16.mxu0 %v3009
      %3137 = vmatpush1.bf16.msra.mxu0 %v3008
      %3138 = vmatprep.subr.bf16.mxu0 %v3011
      %3139 = vmatpush1.bf16.msra.mxu0 %v3010
      %3140 = vmatprep.subr.bf16.mxu0 %v3013
      %3141 = vmatpush1.bf16.msra.mxu0 %v3012
      %3142 = vmatprep.subr.bf16.mxu0 %v3015
      %3143 = vmatpush1.bf16.msra.mxu0 %v3014
      %3144 = vmatprep.subr.bf16.mxu0 %v3017
      %3145 = vmatpush1.bf16.msra.mxu0 %v3016
      %3146 = vmatprep.subr.bf16.mxu0 %v3019
      %3147 = vmatpush1.bf16.msra.mxu0 %v3018
      %3148 = vmatprep.subr.bf16.mxu0 %v3021
      %3149 = vmatpush1.bf16.msra.mxu0 %v3020
      %3150 = vmatprep.subr.bf16.mxu0 %v3023
      %3151 = vmatpush1.bf16.msra.mxu0 %v3022
      %3152 = vmatprep.subr.bf16.mxu0 %v3025
      %3153 = vmatpush1.bf16.msra.mxu0 %v3024
      %3154 = vmatprep.subr.bf16.mxu0 %v3027
      %3155 = vmatpush1.bf16.msra.mxu0 %v3026
      %3156 = vmatprep.subr.bf16.mxu0 %v3029
      %3157 = vmatpush1.bf16.msra.mxu0 %v3028
      %3158 = vmatprep.subr.bf16.mxu0 %v3031
      %3159 = vmatpush1.bf16.msra.mxu0 %v3030
      %3160 = vmatprep.subr.bf16.mxu0 %v3033
      %3161 = vmatpush1.bf16.msra.mxu0 %v3032
      %3162 = vmatprep.mubr.bf16.mxu0 %v2707
      %3163 = vmatmul.mubr.bf16.gmra.mrb[0].mxu0 %v2706
      %v3164 = vpop.f32.mrb[0].mxu0
      %v3165 = vadd.f32 %v2803, %v3164
      %v3166 = vpop.f32.mrb[0].mxu0
      %v3167 = vadd.f32 %v2807, %v3166
      %v3168 = vpop.f32.mrb[0].mxu0
      %v3169 = vadd.f32 %v2803, %v3168
      %v3170 = vpop.f32.mrb[0].mxu0
      %v3171 = vadd.f32 %v2807, %v3170
      %3172 = vmatprep.mubr.bf16.mxu0 %v2711
      %3173 = vmatmul.mubr.bf16.gmra.mrb[0].mxu0 %v2710
      %v3174 = vpop.f32.mrb[0].mxu0
      %v3175 = vadd.f32 %v2803, %v3174
      %v3176 = vpop.f32.mrb[0].mxu0
      %v3177 = vadd.f32 %v2807, %v3176
      %v3178 = vpop.f32.mrb[0].mxu0
      %v3179 = vadd.f32 %v2803, %v3178
      %v3180 = vpop.f32.mrb[0].mxu0
      %v3181 = vadd.f32 %v2807, %v3180
      %3182 = vmatprep.mubr.bf16.mxu0 %v2715
      %3183 = vmatmul.mubr.bf16.gmra.mrb[0].mxu0 %v2714
      %v3184 = vpop.f32.mrb[0].mxu0
      %v3185 = vadd.f32 %v2803, %v3184
      %v3186 = vpop.f32.mrb[0].mxu0
      %v3187 = vadd.f32 %v2807, %v3186
      %v3188 = vpop.f32.mrb[0].mxu0
      %v3189 = vadd.f32 %v2803, %v3188
      %v3190 = vpop.f32.mrb[0].mxu0
      %v3191 = vadd.f32 %v2807, %v3190
      %3192 = vmatprep.mubr.bf16.mxu0 %v2719
      %3193 = vmatmul.mubr.bf16.gmra.mrb[0].mxu0 %v2718
      %v3194 = vpop.f32.mrb[0].mxu0
      %v3195 = vadd.f32 %v2803, %v3194
      %v3196 = vpop.f32.mrb[0].mxu0
      %v3197 = vadd.f32 %v2807, %v3196
      %v3198 = vpop.f32.mrb[0].mxu0
      %v3199 = vadd.f32 %v2803, %v3198
      %v3200 = vpop.f32.mrb[0].mxu0
      %v3201 = vadd.f32 %v2807, %v3200
      %3202 = vmatprep.mubr.bf16.mxu0 %v2723
      %3203 = vmatmul.mubr.bf16.gmra.mrb[0].mxu0 %v2722
      %v3204 = vpop.f32.mrb[0].mxu0
      %v3205 = vadd.f32 %v2803, %v3204
      %v3206 = vpop.f32.mrb[0].mxu0
      %v3207 = vadd.f32 %v2807, %v3206
      %v3208 = vpop.f32.mrb[0].mxu0
      %v3209 = vadd.f32 %v2803, %v3208
      %v3210 = vpop.f32.mrb[0].mxu0
      %v3211 = vadd.f32 %v2807, %v3210
      %3212 = vmatprep.mubr.bf16.mxu0 %v2727
      %3213 = vmatmul.mubr.bf16.gmra.mrb[0].mxu0 %v2726
      %v3214 = vpop.f32.mrb[0].mxu0
      %v3215 = vadd.f32 %v2803, %v3214
      %v3216 = vpop.f32.mrb[0].mxu0
      %v3217 = vadd.f32 %v2807, %v3216
      %v3218 = vpop.f32.mrb[0].mxu0
      %v3219 = vadd.f32 %v2803, %v3218
      %v3220 = vpop.f32.mrb[0].mxu0
      %v3221 = vadd.f32 %v2807, %v3220
      %3222 = vmatprep.mubr.bf16.mxu0 %v2731
      %3223 = vmatmul.mubr.bf16.gmra.mrb[0].mxu0 %v2730
      %v3224 = vpop.f32.mrb[0].mxu0
      %v3225 = vadd.f32 %v2803, %v3224
      %v3226 = vpop.f32.mrb[0].mxu0
      %v3227 = vadd.f32 %v2807, %v3226
      %v3228 = vpop.f32.mrb[0].mxu0
      %v3229 = vpop.f32.mrb[0].mxu0
      %3230 = vdwg.mxu0
      %3231 = vmatprep.subr.bf16.mxu0 %v3035
      %3232 = vmatpush1.bf16.msra.mxu0 %v3034
      %3233 = vmatprep.subr.bf16.mxu0 %v3037
      %3234 = vmatpush1.bf16.msra.mxu0 %v3036
      %3235 = vmatprep.subr.bf16.mxu0 %v3039
      %3236 = vmatpush1.bf16.msra.mxu0 %v3038
      %3237 = vmatprep.subr.bf16.mxu0 %v3041
      %3238 = vmatpush1.bf16.msra.mxu0 %v3040
      %3239 = vmatprep.subr.bf16.mxu0 %v3043
      %3240 = vmatpush1.bf16.msra.mxu0 %v3042
      %3241 = vmatprep.subr.bf16.mxu0 %v3045
      %3242 = vmatpush1.bf16.msra.mxu0 %v3044
      %3243 = vmatprep.subr.bf16.mxu0 %v3047
      %3244 = vmatpush1.bf16.msra.mxu0 %v3046
      %3245 = vmatprep.subr.bf16.mxu0 %v3049
      %3246 = vmatpush1.bf16.msra.mxu0 %v3048
      %3247 = vmatprep.subr.bf16.mxu0 %v3051
      %3248 = vmatpush1.bf16.msra.mxu0 %v3050
      %3249 = vmatprep.subr.bf16.mxu0 %v3053
      %3250 = vmatpush1.bf16.msra.mxu0 %v3052
      %3251 = vmatprep.subr.bf16.mxu0 %v3055
      %3252 = vmatpush1.bf16.msra.mxu0 %v3054
      %3253 = vmatprep.subr.bf16.mxu0 %v3057
      %3254 = vmatpush1.bf16.msra.mxu0 %v3056
      %3255 = vmatprep.subr.bf16.mxu0 %v3059
      %3256 = vmatpush1.bf16.msra.mxu0 %v3058
      %3257 = vmatprep.subr.bf16.mxu0 %v3061
      %3258 = vmatpush1.bf16.msra.mxu0 %v3060
      %3259 = vmatprep.subr.bf16.mxu0 %v3063
      %3260 = vmatpush1.bf16.msra.mxu0 %v3062
      %3261 = vmatprep.subr.bf16.mxu0 %v3065
      %3262 = vmatpush1.bf16.msra.mxu0 %v3064
      %3263 = vmatprep.mubr.bf16.mxu0 %v2709
      %3264 = vmatmul.mubr.bf16.gmra.mrb[0].mxu0 %v2708
      %v3265 = vpop.f32.mrb[0].mxu0
      %v3266 = vadd.f32 %v3165, %v3265
      %v3267 = vpop.f32.mrb[0].mxu0
      %v3268 = vadd.f32 %v3167, %v3267
      %v3269 = vpop.f32.mrb[0].mxu0
      %v3270 = vadd.f32 %v3169, %v3269
      %v3271 = vpop.f32.mrb[0].mxu0
      %v3272 = vadd.f32 %v3171, %v3271
      %3273 = vmatprep.mubr.bf16.mxu0 %v2713
      %3274 = vmatmul.mubr.bf16.gmra.mrb[0].mxu0 %v2712
      %v3275 = vpop.f32.mrb[0].mxu0
      %v3276 = vadd.f32 %v3175, %v3275
      %v3277 = vpop.f32.mrb[0].mxu0
      %v3278 = vadd.f32 %v3177, %v3277
      %v3279 = vpop.f32.mrb[0].mxu0
      %v3280 = vadd.f32 %v3179, %v3279
      %v3281 = vpop.f32.mrb[0].mxu0
      %v3282 = vadd.f32 %v3181, %v3281
      %3283 = vmatprep.mubr.bf16.mxu0 %v2717
      %3284 = vmatmul.mubr.bf16.gmra.mrb[0].mxu0 %v2716
      %v3285 = vpop.f32.mrb[0].mxu0
      %v3286 = vadd.f32 %v3185, %v3285
      %v3287 = vpop.f32.mrb[0].mxu0
      %v3288 = vadd.f32 %v3187, %v3287
      %v3289 = vpop.f32.mrb[0].mxu0
      %v3290 = vadd.f32 %v3189, %v3289
      %v3291 = vpop.f32.mrb[0].mxu0
      %v3292 = vadd.f32 %v3191, %v3291
      %3293 = vmatprep.mubr.bf16.mxu0 %v2721
      %3294 = vmatmul.mubr.bf16.gmra.mrb[0].mxu0 %v2720
      %v3295 = vpop.f32.mrb[0].mxu0
      %v3296 = vadd.f32 %v3195, %v3295
      %v3297 = vpop.f32.mrb[0].mxu0
      %v3298 = vadd.f32 %v3197, %v3297
      %v3299 = vpop.f32.mrb[0].mxu0
      %v3300 = vadd.f32 %v3199, %v3299
      %v3301 = vpop.f32.mrb[0].mxu0
      %v3302 = vadd.f32 %v3201, %v3301
      %3303 = vmatprep.mubr.bf16.mxu0 %v2725
      %3304 = vmatmul.mubr.bf16.gmra.mrb[0].mxu0 %v2724
      %v3305 = vpop.f32.mrb[0].mxu0
      %v3306 = vadd.f32 %v3205, %v3305
      %v3307 = vpop.f32.mrb[0].mxu0
      %v3308 = vadd.f32 %v3207, %v3307
      %v3309 = vpop.f32.mrb[0].mxu0
      %v3310 = vadd.f32 %v3209, %v3309
      %v3311 = vpop.f32.mrb[0].mxu0
      %v3312 = vadd.f32 %v3211, %v3311
      %3313 = vmatprep.mubr.bf16.mxu0 %v2729
      %3314 = vmatmul.mubr.bf16.gmra.mrb[0].mxu0 %v2728
      %v3315 = vpop.f32.mrb[0].mxu0
      %v3316 = vadd.f32 %v3215, %v3315
      %v3317 = vpop.f32.mrb[0].mxu0
      %v3318 = vadd.f32 %v3217, %v3317
      %v3319 = vpop.f32.mrb[0].mxu0
      %v3320 = vadd.f32 %v3219, %v3319
      %v3321 = vpop.f32.mrb[0].mxu0
      %v3322 = vadd.f32 %v3221, %v3321
      %3323 = vmatprep.mubr.bf16.mxu0 %v2733
      %3324 = vmatmul.mubr.bf16.gmra.mrb[0].mxu0 %v2732
      %v3325 = vpop.f32.mrb[0].mxu0
      %v3326 = vadd.f32 %v3225, %v3325
      %v3327 = vpop.f32.mrb[0].mxu0
      %v3328 = vadd.f32 %v3227, %v3327
      %v3329 = vpop.f32.mrb[0].mxu0
      %v3330 = vpop.f32.mrb[0].mxu0
      %3331 = vdwg.mxu0
      %v3332 = vmax.f32 %v3266, 0.0
      %v3333 = vmax.f32 %v3268, 0.0
      %v3334 = vmax.f32 %v3270, 0.0
      %v3335 = vmax.f32 %v3272, 0.0
      %v3336 = vmax.f32 %v3276, 0.0
      %v3337 = vmax.f32 %v3278, 0.0
      %v3338 = vmax.f32 %v3280, 0.0
      %v3339 = vmax.f32 %v3282, 0.0
      %v3340 = vmax.f32 %v3286, 0.0
      %v3341 = vmax.f32 %v3288, 0.0
      %v3342 = vmax.f32 %v3290, 0.0
      %v3343 = vmax.f32 %v3292, 0.0
      %v3344 = vmax.f32 %v3296, 0.0
      %v3345 = vmax.f32 %v3298, 0.0
      %v3346 = vmax.f32 %v3300, 0.0
      %v3347 = vmax.f32 %v3302, 0.0
      %v3348 = vmax.f32 %v3306, 0.0
      %v3349 = vmax.f32 %v3308, 0.0
      %v3350 = vmax.f32 %v3310, 0.0
      %v3351 = vmax.f32 %v3312, 0.0
      %v3352 = vmax.f32 %v3316, 0.0
      %v3353 = vmax.f32 %v3318, 0.0
      %v3354 = vmax.f32 %v3320, 0.0
      %v3355 = vmax.f32 %v3322, 0.0
      %v3356 = vmax.f32 %v3326, 0.0
      %v3357 = vmax.f32 %v3328, 0.0
      %v3358 = vpack.c.bf16 %v3334, %v3332
      %v3359 = vpack.c.bf16 %v3335, %v3333
      %v3360 = vpack.c.bf16 %v3338, %v3336
      %v3361 = vpack.c.bf16 %v3339, %v3337
      %v3362 = vpack.c.bf16 %v3342, %v3340
      %v3363 = vpack.c.bf16 %v3343, %v3341
      %v3364 = vpack.c.bf16 %v3346, %v3344
      %v3365 = vpack.c.bf16 %v3347, %v3345
      %v3366 = vpack.c.bf16 %v3350, %v3348
      %v3367 = vpack.c.bf16 %v3351, %v3349
      %v3368 = vpack.c.bf16 %v3354, %v3352
      %v3369 = vpack.c.bf16 %v3355, %v3353
      %v3370 = vpack.c.bf16 %v3356, %v3356
      %v3371 = vpack.c.bf16 %v3357, %v3357
      %v3372 = vld [vmem:[%s5] sm:$0xf]
      %v3373 = vld [vmem:[%s5 + $0x4] sm:$0xf]
      %v3374 = vld [vmem:[%s5 + $0x8] sm:$0xf]
      %v3375 = vld [vmem:[%s5 + $0xc] sm:$0xf]
      %v3376 = vld [vmem:[%s5 + $0x10] sm:$0xf]
      %v3377 = vld [vmem:[%s5 + $0x14] sm:$0xf]
      %v3378 = vld [vmem:[%s5 + $0x18] sm:$0xf]
      %v3379 = vld [vmem:[%s5 + $0x1c] sm:$0xf]
      %v3380 = vld [vmem:[%s5 + $0x20] sm:$0xf]
      %v3381 = vld [vmem:[%s5 + $0x24] sm:$0xf]
      %v3382 = vld [vmem:[%s5 + $0x28] sm:$0xf]
      %v3383 = vld [vmem:[%s5 + $0x2c] sm:$0xf]
      %v3384 = vld [vmem:[%s5 + $0x30] sm:$0xf]
      %v3385 = vld [vmem:[%s5 + $0x34] sm:$0xf]
      %v3386 = vld [vmem:[%s5 + $0x38] sm:$0xf]
      %v3387 = vld [vmem:[%s5 + $0x3c] sm:$0xf]
      %v3388 = vld [vmem:[%s5 + $0x40] sm:$0xf]
      %v3389 = vld [vmem:[%s5 + $0x44] sm:$0xf]
      %v3390 = vld [vmem:[%s5 + $0x48] sm:$0xf]
      %v3391 = vld [vmem:[%s5 + $0x4c] sm:$0xf]
      %v3392 = vld [vmem:[%s5 + $0x50] sm:$0xf]
      %v3393 = vld [vmem:[%s5 + $0x54] sm:$0xf]
      %v3394 = vld [vmem:[%s5 + $0x58] sm:$0xf]
      %v3395 = vld [vmem:[%s5 + $0x5c] sm:$0xf]
      %v3396 = vld [vmem:[%s5 + $0x60] sm:$0xf]
      %v3397 = vld [vmem:[%s5 + $0x64] sm:$0xf]
      %v3398 = vld [vmem:[%s5 + $0x68] sm:$0xf]
      %v3399 = vld [vmem:[%s5 + $0x6c] sm:$0xf]
      %v3400 = vld [vmem:[%s5 + $0x70] sm:$0xf]
      %v3401 = vld [vmem:[%s5 + $0x74] sm:$0xf]
      %v3402 = vld [vmem:[%s5 + $0x78] sm:$0xf]
      %v3403 = vld [vmem:[%s5 + $0x7c] sm:$0xf]
      %v3404 = vld [vmem:[%s6] sm:$0x1]
      %v3406 = vlaneseq
      %v3407 = vshrl.u32 %v3406, 7
      %v3408 = vsub.s32 0, %v3407
      %v3409 = vrot.slane %v3404, %v3408
      %v3443 = vunpack.c.l.b16 %v3372
      %v3444 = vunpack.c.l.b16 %v3373
      %v3445 = vunpack.c.l.b16 %v3374
      %v3446 = vunpack.c.l.b16 %v3375
      %v3447 = vunpack.c.l.b16 %v3376
      %v3448 = vunpack.c.l.b16 %v3377
      %v3449 = vunpack.c.l.b16 %v3378
      %v3450 = vunpack.c.l.b16 %v3379
      %v3451 = vunpack.c.l.b16 %v3380
      %v3452 = vunpack.c.l.b16 %v3381
      %v3453 = vunpack.c.l.b16 %v3382
      %v3454 = vunpack.c.l.b16 %v3383
      %v3455 = vunpack.c.l.b16 %v3384
      %v3456 = vunpack.c.l.b16 %v3385
      %v3457 = vunpack.c.l.b16 %v3386
      %v3458 = vunpack.c.l.b16 %v3387
      %v3459 = vunpack.c.l.b16 %v3388
      %v3460 = vunpack.c.l.b16 %v3389
      %v3461 = vunpack.c.l.b16 %v3390
      %v3462 = vunpack.c.l.b16 %v3391
      %v3463 = vunpack.c.l.b16 %v3392
      %v3464 = vunpack.c.l.b16 %v3393
      %v3465 = vunpack.c.l.b16 %v3394
      %v3466 = vunpack.c.l.b16 %v3395
      %v3467 = vunpack.c.l.b16 %v3396
      %v3468 = vunpack.c.l.b16 %v3397
      %v3469 = vunpack.c.l.b16 %v3398
      %v3470 = vunpack.c.l.b16 %v3399
      %v3471 = vunpack.c.l.b16 %v3400
      %v3472 = vunpack.c.l.b16 %v3401
      %v3473 = vunpack.c.l.b16 %v3402
      %v3474 = vunpack.c.l.b16 %v3403
      %v3475 = vpack.c.b16 %v3444, %v3443
      %v3476 = vpack.c.b16 %v3446, %v3445
      %v3477 = vpack.c.b16 %v3448, %v3447
      %v3478 = vpack.c.b16 %v3450, %v3449
      %v3479 = vpack.c.b16 %v3452, %v3451
      %v3480 = vpack.c.b16 %v3454, %v3453
      %v3481 = vpack.c.b16 %v3456, %v3455
      %v3482 = vpack.c.b16 %v3458, %v3457
      %v3483 = vpack.c.b16 %v3460, %v3459
      %v3484 = vpack.c.b16 %v3462, %v3461
      %v3485 = vpack.c.b16 %v3464, %v3463
      %v3486 = vpack.c.b16 %v3466, %v3465
      %v3487 = vpack.c.b16 %v3468, %v3467
      %v3488 = vpack.c.b16 %v3470, %v3469
      %v3489 = vpack.c.b16 %v3472, %v3471
      %v3490 = vpack.c.b16 %v3474, %v3473
      %3507 = vmatprep.subr.bf16.mxu0 0
      %3508 = vmatpush1.bf16.msra.mxu0 %v3475
      %3509 = vmatprep.subr.bf16.mxu0 0
      %3510 = vmatpush1.bf16.msra.mxu0 %v3476
      %3511 = vmatprep.subr.bf16.mxu0 0
      %3512 = vmatpush1.bf16.msra.mxu0 %v3477
      %3513 = vmatprep.subr.bf16.mxu0 0
      %3514 = vmatpush1.bf16.msra.mxu0 %v3478
      %3515 = vmatprep.subr.bf16.mxu0 0
      %3516 = vmatpush1.bf16.msra.mxu0 %v3479
      %3517 = vmatprep.subr.bf16.mxu0 0
      %3518 = vmatpush1.bf16.msra.mxu0 %v3480
      %3519 = vmatprep.subr.bf16.mxu0 0
      %3520 = vmatpush1.bf16.msra.mxu0 %v3481
      %3521 = vmatprep.subr.bf16.mxu0 0
      %3522 = vmatpush1.bf16.msra.mxu0 %v3482
      %3523 = vmatprep.subr.bf16.mxu0 0
      %3524 = vmatpush1.bf16.msra.mxu0 %v3483
      %3525 = vmatprep.subr.bf16.mxu0 0
      %3526 = vmatpush1.bf16.msra.mxu0 %v3484
      %3527 = vmatprep.subr.bf16.mxu0 0
      %3528 = vmatpush1.bf16.msra.mxu0 %v3485
      %3529 = vmatprep.subr.bf16.mxu0 0
      %3530 = vmatpush1.bf16.msra.mxu0 %v3486
      %3531 = vmatprep.subr.bf16.mxu0 0
      %3532 = vmatpush1.bf16.msra.mxu0 %v3487
      %3533 = vmatprep.subr.bf16.mxu0 0
      %3534 = vmatpush1.bf16.msra.mxu0 %v3488
      %3535 = vmatprep.subr.bf16.mxu0 0
      %3536 = vmatpush1.bf16.msra.mxu0 %v3489
      %3537 = vmatprep.subr.bf16.mxu0 0
      %3538 = vmatpush1.bf16.msra.mxu0 %v3490
      %3539 = vmatprep.mubr.bf16.mxu0 %v3359
      %3540 = vmatmul.mubr.bf16.gmra.mrb[0].mxu0 %v3358
      %v3541 = vpop.f32.mrb[0].mxu0
      %v3542 = vadd.f32 %v3409, %v3541
      %v3543 = vpop.f32.mrb[0].mxu0
      %v3544 = vpop.f32.mrb[0].mxu0
      %v3545 = vadd.f32 %v3409, %v3544
      %v3546 = vpop.f32.mrb[0].mxu0
      %3547 = vmatprep.mubr.bf16.mxu0 %v3361
      %3548 = vmatmul.mubr.bf16.gmra.mrb[0].mxu0 %v3360
      %v3549 = vpop.f32.mrb[0].mxu0
      %v3550 = vadd.f32 %v3409, %v3549
      %v3551 = vpop.f32.mrb[0].mxu0
      %v3552 = vpop.f32.mrb[0].mxu0
      %v3553 = vadd.f32 %v3409, %v3552
      %v3554 = vpop.f32.mrb[0].mxu0
      %3555 = vmatprep.mubr.bf16.mxu0 %v3363
      %3556 = vmatmul.mubr.bf16.gmra.mrb[0].mxu0 %v3362
      %v3557 = vpop.f32.mrb[0].mxu0
      %v3558 = vadd.f32 %v3409, %v3557
      %v3559 = vpop.f32.mrb[0].mxu0
      %v3560 = vpop.f32.mrb[0].mxu0
      %v3561 = vadd.f32 %v3409, %v3560
      %v3562 = vpop.f32.mrb[0].mxu0
      %3563 = vmatprep.mubr.bf16.mxu0 %v3365
      %3564 = vmatmul.mubr.bf16.gmra.mrb[0].mxu0 %v3364
      %v3565 = vpop.f32.mrb[0].mxu0
      %v3566 = vadd.f32 %v3409, %v3565
      %v3567 = vpop.f32.mrb[0].mxu0
      %v3568 = vpop.f32.mrb[0].mxu0
      %v3569 = vadd.f32 %v3409, %v3568
      %v3570 = vpop.f32.mrb[0].mxu0
      %3571 = vmatprep.mubr.bf16.mxu0 %v3367
      %3572 = vmatmul.mubr.bf16.gmra.mrb[0].mxu0 %v3366
      %v3573 = vpop.f32.mrb[0].mxu0
      %v3574 = vadd.f32 %v3409, %v3573
      %v3575 = vpop.f32.mrb[0].mxu0
      %v3576 = vpop.f32.mrb[0].mxu0
      %v3577 = vadd.f32 %v3409, %v3576
      %v3578 = vpop.f32.mrb[0].mxu0
      %3579 = vmatprep.mubr.bf16.mxu0 %v3369
      %3580 = vmatmul.mubr.bf16.gmra.mrb[0].mxu0 %v3368
      %v3581 = vpop.f32.mrb[0].mxu0
      %v3582 = vadd.f32 %v3409, %v3581
      %v3583 = vpop.f32.mrb[0].mxu0
      %v3584 = vpop.f32.mrb[0].mxu0
      %v3585 = vadd.f32 %v3409, %v3584
      %v3586 = vpop.f32.mrb[0].mxu0
      %3587 = vmatprep.mubr.bf16.mxu0 %v3371
      %3588 = vmatmul.mubr.bf16.gmra.mrb[0].mxu0 %v3370
      %v3589 = vpop.f32.mrb[0].mxu0
      %v3590 = vadd.f32 %v3409, %v3589
      %v3591 = vpop.f32.mrb[0].mxu0
      %v3592 = vpop.f32.mrb[0].mxu0
      %v3593 = vpop.f32.mrb[0].mxu0
      %3594 = vdwg.mxu0
      %v3595 = vmax.f32 %v3542, 0.0
      %v3596 = vmax.f32 %v3545, 0.0
      %v3597 = vmax.f32 %v3550, 0.0
      %v3598 = vmax.f32 %v3553, 0.0
      %v3599 = vmax.f32 %v3558, 0.0
      %v3600 = vmax.f32 %v3561, 0.0
      %v3601 = vmax.f32 %v3566, 0.0
      %v3602 = vmax.f32 %v3569, 0.0
      %v3603 = vmax.f32 %v3574, 0.0
      %v3604 = vmax.f32 %v3577, 0.0
      %v3605 = vmax.f32 %v3582, 0.0
      %v3606 = vmax.f32 %v3585, 0.0
      %v3607 = vmax.f32 %v3590, 0.0
      %v3608 = vpack.c.bf16 %v3596, %v3595
      %v3609 = vpack.c.bf16 %v3598, %v3597
      %v3610 = vpack.c.bf16 %v3600, %v3599
      %v3611 = vpack.c.bf16 %v3602, %v3601
      %v3612 = vpack.c.bf16 %v3604, %v3603
      %v3613 = vpack.c.bf16 %v3606, %v3605
      %v3614 = vpack.c.bf16 %v3607, %v3607
      %v3615 = vld [vmem:[%s7] sm:$0xf]
      %v3616 = vld [vmem:[%s7 + $0x4] sm:$0xf]
      %v3617 = vld [vmem:[%s7 + $0x8] sm:$0xf]
      %v3618 = vld [vmem:[%s7 + $0xc] sm:$0xf]
      %v3619 = vld [vmem:[%s7 + $0x10] sm:$0xf]
      %v3620 = vld [vmem:[%s7 + $0x14] sm:$0xf]
      %v3621 = vld [vmem:[%s7 + $0x18] sm:$0xf]
      %v3622 = vld [vmem:[%s7 + $0x1c] sm:$0xf]
      %v3623 = vld [vmem:[%s7 + $0x20] sm:$0xf]
      %v3624 = vld [vmem:[%s7 + $0x24] sm:$0xf]
      %v3625 = vld [vmem:[%s7 + $0x28] sm:$0xf]
      %v3626 = vld [vmem:[%s7 + $0x2c] sm:$0xf]
      %v3627 = vld [vmem:[%s7 + $0x30] sm:$0xf]
      %v3628 = vld [vmem:[%s7 + $0x34] sm:$0xf]
      %v3629 = vld [vmem:[%s7 + $0x38] sm:$0xf]
      %v3630 = vld [vmem:[%s7 + $0x3c] sm:$0xf]
      %v3631 = vld [vmem:[%s8] sm:$0x1]
      %v3633 = vlaneseq
      %v3634 = vshrl.u32 %v3633, 7
      %v3635 = vsub.s32 0, %v3634
      %v3636 = vrot.slane %v3631, %v3635
      %v3654 = vunpack.c.l.b16 %v3615
      %v3655 = vunpack.c.l.b16 %v3616
      %v3656 = vunpack.c.l.b16 %v3617
      %v3657 = vunpack.c.l.b16 %v3618
      %v3658 = vunpack.c.l.b16 %v3619
      %v3659 = vunpack.c.l.b16 %v3620
      %v3660 = vunpack.c.l.b16 %v3621
      %v3661 = vunpack.c.l.b16 %v3622
      %v3662 = vunpack.c.l.b16 %v3623
      %v3663 = vunpack.c.l.b16 %v3624
      %v3664 = vunpack.c.l.b16 %v3625
      %v3665 = vunpack.c.l.b16 %v3626
      %v3666 = vunpack.c.l.b16 %v3627
      %v3667 = vunpack.c.l.b16 %v3628
      %v3668 = vunpack.c.l.b16 %v3629
      %v3669 = vunpack.c.l.b16 %v3630
      %v3670 = vpack.c.b16 %v3655, %v3654
      %v3671 = vpack.c.b16 %v3657, %v3656
      %v3672 = vpack.c.b16 %v3659, %v3658
      %v3673 = vpack.c.b16 %v3661, %v3660
      %v3674 = vpack.c.b16 %v3663, %v3662
      %v3675 = vpack.c.b16 %v3665, %v3664
      %v3676 = vpack.c.b16 %v3667, %v3666
      %v3677 = vpack.c.b16 %v3669, %v3668
      %3686 = vmatprep.subr.bf16.mxu0 0
      %3687 = vmatpush1.bf16.msra.mxu0 %v3670
      %3688 = vmatprep.subr.bf16.mxu0 0
      %3689 = vmatpush1.bf16.msra.mxu0 %v3671
      %3690 = vmatprep.subr.bf16.mxu0 0
      %3691 = vmatpush1.bf16.msra.mxu0 %v3672
      %3692 = vmatprep.subr.bf16.mxu0 0
      %3693 = vmatpush1.bf16.msra.mxu0 %v3673
      %3694 = vmatprep.subr.bf16.mxu0 0
      %3695 = vmatpush1.bf16.msra.mxu0 %v3674
      %3696 = vmatprep.subr.bf16.mxu0 0
      %3697 = vmatpush1.bf16.msra.mxu0 %v3675
      %3698 = vmatprep.subr.bf16.mxu0 0
      %3699 = vmatpush1.bf16.msra.mxu0 %v3676
      %3700 = vmatprep.subr.bf16.mxu0 0
      %3701 = vmatpush1.bf16.msra.mxu0 %v3677
      %3702 = vmatprep.subr.bf16.mxu0 0
      %3703 = vmatpush1.bf16.msra.mxu0 0
      %3704 = vmatprep.subr.bf16.mxu0 0
      %3705 = vmatpush1.bf16.msra.mxu0 0
      %3706 = vmatprep.subr.bf16.mxu0 0
      %3707 = vmatpush1.bf16.msra.mxu0 0
      %3708 = vmatprep.subr.bf16.mxu0 0
      %3709 = vmatpush1.bf16.msra.mxu0 0
      %3710 = vmatprep.subr.bf16.mxu0 0
      %3711 = vmatpush1.bf16.msra.mxu0 0
      %3712 = vmatprep.subr.bf16.mxu0 0
      %3713 = vmatpush1.bf16.msra.mxu0 0
      %3714 = vmatprep.subr.bf16.mxu0 0
      %3715 = vmatpush1.bf16.msra.mxu0 0
      %3716 = vmatprep.subr.bf16.mxu0 0
      %3717 = vmatpush1.bf16.msra.mxu0 0
      %3718 = vmatprep.mubr.bf16.mxu0 0
      %3719 = vmatmul.mubr.bf16.gmra.mrb[0].mxu0 %v3608
      %v3720 = vpop.f32.mrb[0].mxu0
      %v3721 = vadd.f32 %v3636, %v3720
      %v3722 = vpop.f32.mrb[0].mxu0
      %v3723 = vpop.f32.mrb[0].mxu0
      %v3724 = vadd.f32 %v3636, %v3723
      %v3725 = vpop.f32.mrb[0].mxu0
      %3726 = vmatprep.mubr.bf16.mxu0 0
      %3727 = vmatmul.mubr.bf16.gmra.mrb[0].mxu0 %v3609
      %v3728 = vpop.f32.mrb[0].mxu0
      %v3729 = vadd.f32 %v3636, %v3728
      %v3730 = vpop.f32.mrb[0].mxu0
      %v3731 = vpop.f32.mrb[0].mxu0
      %v3732 = vadd.f32 %v3636, %v3731
      %v3733 = vpop.f32.mrb[0].mxu0
      %3734 = vmatprep.mubr.bf16.mxu0 0
      %3735 = vmatmul.mubr.bf16.gmra.mrb[0].mxu0 %v3610
      %v3736 = vpop.f32.mrb[0].mxu0
      %v3737 = vadd.f32 %v3636, %v3736
      %v3738 = vpop.f32.mrb[0].mxu0
      %v3739 = vpop.f32.mrb[0].mxu0
      %v3740 = vadd.f32 %v3636, %v3739
      %v3741 = vpop.f32.mrb[0].mxu0
      %3742 = vmatprep.mubr.bf16.mxu0 0
      %3743 = vmatmul.mubr.bf16.gmra.mrb[0].mxu0 %v3611
      %v3744 = vpop.f32.mrb[0].mxu0
      %v3745 = vadd.f32 %v3636, %v3744
      %v3746 = vpop.f32.mrb[0].mxu0
      %v3747 = vpop.f32.mrb[0].mxu0
      %v3748 = vadd.f32 %v3636, %v3747
      %v3749 = vpop.f32.mrb[0].mxu0
      %3750 = vmatprep.mubr.bf16.mxu0 0
      %3751 = vmatmul.mubr.bf16.gmra.mrb[0].mxu0 %v3612
      %v3752 = vpop.f32.mrb[0].mxu0
      %v3753 = vadd.f32 %v3636, %v3752
      %v3754 = vpop.f32.mrb[0].mxu0
      %v3755 = vpop.f32.mrb[0].mxu0
      %v3756 = vadd.f32 %v3636, %v3755
      %v3757 = vpop.f32.mrb[0].mxu0
      %3758 = vmatprep.mubr.bf16.mxu0 0
      %3759 = vmatmul.mubr.bf16.gmra.mrb[0].mxu0 %v3613
      %v3760 = vpop.f32.mrb[0].mxu0
      %v3761 = vadd.f32 %v3636, %v3760
      %v3762 = vpop.f32.mrb[0].mxu0
      %v3763 = vpop.f32.mrb[0].mxu0
      %v3764 = vadd.f32 %v3636, %v3763
      %v3765 = vpop.f32.mrb[0].mxu0
      %3766 = vmatprep.mubr.bf16.mxu0 0
      %3767 = vmatmul.mubr.bf16.gmra.mrb[0].mxu0 %v3614
      %v3768 = vpop.f32.mrb[0].mxu0
      %v3769 = vadd.f32 %v3636, %v3768
      %v3770 = vpop.f32.mrb[0].mxu0
      %v3771 = vpop.f32.mrb[0].mxu0
      %v3772 = vpop.f32.mrb[0].mxu0
      %3773 = vdwg.mxu0
      %3774 = vst [vmem:[%s337] sm:$0xff] %v3721
      %3775 = vst [vmem:[%s337 + $0x8] sm:$0xff] %v3724
      %3776 = vst [vmem:[%s337 + $0x10] sm:$0xff] %v3729
      %3777 = vst [vmem:[%s337 + $0x18] sm:$0xff] %v3732
      %3778 = vst [vmem:[%s337 + $0x20] sm:$0xff] %v3737
      %3779 = vst [vmem:[%s337 + $0x28] sm:$0xff] %v3740
      %3780 = vst [vmem:[%s337 + $0x30] sm:$0xff] %v3745
      %3781 = vst [vmem:[%s337 + $0x38] sm:$0xff] %v3748
      %3782 = vst [vmem:[%s337 + $0x40] sm:$0xff] %v3753
      %3783 = vst [vmem:[%s337 + $0x48] sm:$0xff] %v3756
      %3784 = vst [vmem:[%s337 + $0x50] sm:$0xff] %v3761
      %3785 = vst [vmem:[%s337 + $0x58] sm:$0xff] %v3764
      %3786 = vst [vmem:[%s337 + $0x60] sm:$0xff] %v3769
      %s3787 = smul.u32 13, %s20
      %p3788 = scmp.lt.s32.totalorder %s3787, 25
      %s3789 = scalar_select %p3788, %s3787, 25
      %s3790 = smul.addr %s3789, 8
      %s3791 = scalar_lea.vmem %s9, %s3790
      // Predicated region
      $region57: #{simple_encoder_forward.1} parent=55 // pred_check
        %p3792 = pneg %p232
      $region58: #{simple_encoder_forward.1} parent=55 // pred_check_branch
        %3794 = sbr.rel (%p3792) target = $region60
      $region59: #{simple_encoder_forward.1} parent=55 // pred_region
        %s3795 = smul.u32 13, %s20
      $region60: #{simple_encoder_forward.1} parent=55 // pred_fallthru
        _
    $region56: #{simple_encoder_forward.1} parent=5 // pred_fallthru
      _
    %p3796 = scmp.le.s32.totalorder 2, %s15
    // Predicated region
    $region61: #{simple_encoder_forward.1} parent=5 // pred_check
      %p3797 = pneg %p3796
    $region62: #{simple_encoder_forward.1} parent=5 // pred_check_branch
      %3799 = sbr.rel (%p3797) target = $region64
    $region63: #{simple_encoder_forward.1} parent=5 // pred_region
      %s3800 = ssub.s32 %s15, 2
      // Predicated region
      $region65: #{simple_encoder_forward.1} parent=63 // pred_check
        %p3801 = pneg %p238
      $region66: #{simple_encoder_forward.1} parent=63 // pred_check_branch
        %3803 = sbr.rel (%p3801) target = $region68
      $region67: #{simple_encoder_forward.1} parent=63 // pred_region
        %s3804 = smul.u32 13, %s21
        %p3805 = scmp.lt.s32.totalorder %s3804, 25
        %s3806 = scalar_select %p3805, %s3804, 25
        %s3807 = smul.addr %s3806, 8
        %s3808 = scalar_lea.vmem %s9, %s3807
      $region68: #{simple_encoder_forward.1} parent=63 // pred_fallthru
        _
    $region64: #{simple_encoder_forward.1} parent=5 // pred_fallthru
      _
  $region6: #{simple_encoder_forward.1} parent=0 // loop_footer
    %s19 = sadd.s32 1, %s15
  $region7: #{simple_encoder_forward.1} parent=0 // loop_footer_branch
    %14 = sbr.rel target = $region3
  $region8: #{simple_encoder_forward.1} parent=0 // loop_exit
    _

</llo_original>
